<compile_context>
chip_gen: v6e
topology: v6e:2x2x1
jax: 0.10.0
libtpu: 0.0.40
codegen_flags: <defaults>
</compile_context>

<pallas_src>
import numpy as np
import jax
import jax.numpy as jnp
from jax.experimental import pallas as pl
from jax.experimental.pallas import tpu as pltpu

# ----------------------------- model constants ------------------------------
SAMPLING_RATE = 16000
BLOCK_SIZE = 16          # block_size of the reference module (small demo size)
N_UNIT = 32              # units feature dim (reference default 256)
DIM = 64                 # Unit2Control model dim (reference hard-codes 256)
HEADS = 4                # attention heads (reference uses 8)
DH = DIM // HEADS
N_LAYERS = 3             # PCmer layers
CONF_INNER = 2 * DIM     # conformer expansion_factor = 2
DW_KERNEL = 31           # conformer depthwise kernel size
DW_PAD = DW_KERNEL // 2
KF = BLOCK_SIZE + 1
N2 = 2 * BLOCK_SIZE
LOG128 = float(np.log(128.0))
PAD_SENTINEL = 1e30      # sentinel marking zero-padded frame positions for the sinc
ATTN_SCALE = float(DH) ** -0.5


def _ln(x, g, b, eps=1e-5):
    m = jnp.mean(x, axis=-1, keepdims=True)
    v = jnp.mean((x - m) ** 2, axis=-1, keepdims=True)
    return (x - m) * jax.lax.rsqrt(v + eps) * g + b


# =============================== Pallas kernels =============================

def _frontend_kernel(u_ref, w1_ref, b1_ref, gn_g_ref, gn_b_ref,
                     w2_ref, b2_ref, sc_ref, we_ref, be_ref,
                     o_ref, pad1_ref, pad2_ref):
    """Conv1d(k3) -> GroupNorm(4) -> LeakyReLU -> Conv1d(k3) + scalar embeddings."""
    T = u_ref.shape[1]
    u = u_ref[0]                                             # (T, N_UNIT)

    # conv1 as unfold (in-VMEM padded scratch) + matmul
    pad1_ref[...] = jnp.zeros_like(pad1_ref)
    pad1_ref[1:T + 1, :] = u
    uu = jnp.concatenate(
        [pad1_ref[0:T, :], pad1_ref[1:T + 1, :], pad1_ref[2:T + 2, :]], axis=-1)
    h = jnp.dot(uu, w1_ref[...], preferred_element_type=jnp.float32) + b1_ref[...]

    # GroupNorm(4, DIM), per sample over (T, C//4) per group
    gs = DIM // 4
    parts = []
    for g in range(4):
        hg = h[:, g * gs:(g + 1) * gs]
        m = jnp.mean(hg, keepdims=True)
        v = jnp.mean((hg - m) * (hg - m), keepdims=True)
        parts.append((hg - m) * jax.lax.rsqrt(v + 1e-5))
    h = jnp.concatenate(parts, axis=-1) * gn_g_ref[...] + gn_b_ref[...]
    h = jnp.where(h >= 0.0, h, 0.01 * h)                     # LeakyReLU(0.01)

    # conv2 as unfold + matmul
    pad2_ref[...] = jnp.zeros_like(pad2_ref)
    pad2_ref[1:T + 1, :] = h
    hu = jnp.concatenate(
        [pad2_ref[0:T, :], pad2_ref[1:T + 1, :], pad2_ref[2:T + 2, :]], axis=-1)
    h2 = jnp.dot(hu, w2_ref[...], preferred_element_type=jnp.float32) + b2_ref[...]

    # scalar embeddings: [log1p(f0/700), phase/pi, volume] @ W_emb + sum(biases)
    emb = jnp.dot(sc_ref[0], we_ref[...], preferred_element_type=jnp.float32) + be_ref[...]
    o_ref[0] = h2 + emb


def _pcmer_layer_kernel(x_ref,
                        ln_g_ref, ln_b_ref, wqkv_ref, wo_ref, bo_ref,
                        cln_g_ref, cln_b_ref, pw1_w_ref, pw1_b_ref,
                        dw_w_ref, dw_b_ref, pw2_w_ref, pw2_b_ref,
                        o_ref, dwpad_ref):
    """Fused PCmer layer: MHA block + conformer conv module (one launch per layer)."""
    T = x_ref.shape[1]
    x = x_ref[0]                                             # (T, DIM)

    # ---- self-attention block -------------------------------------------------
    # TODO(synk): reference PCmer uses Performer/FAVOR+ fast attention; exact
    # multi-head softmax attention is used here instead.
    a = _ln(x, ln_g_ref[...], ln_b_ref[...])
    qkv = jnp.dot(a, wqkv_ref[...], preferred_element_type=jnp.float32)   # (T, 3*DIM)
    heads_out = []
    for h in range(HEADS):
        q = qkv[:, h * DH:(h + 1) * DH]
        k = qkv[:, DIM + h * DH:DIM + (h + 1) * DH]
        v = qkv[:, 2 * DIM + h * DH:2 * DIM + (h + 1) * DH]
        s = jax.lax.dot_general(q, k, (((1,), (1,)), ((), ())),
                                preferred_element_type=jnp.float32) * ATTN_SCALE
        s = s - jnp.max(s, axis=-1, keepdims=True)
        p = jnp.exp(s)
        p = p * pl.reciprocal(jnp.sum(p, axis=-1, keepdims=True), approx=True)
        heads_out.append(jnp.dot(p, v, preferred_element_type=jnp.float32))
    o = jnp.concatenate(heads_out, axis=-1)                  # (T, DIM)
    x = x + jnp.dot(o, wo_ref[...], preferred_element_type=jnp.float32) + bo_ref[...]

    # ---- conformer conv module ------------------------------------------------
    c = _ln(x, cln_g_ref[...], cln_b_ref[...])
    c = jnp.dot(c, pw1_w_ref[...], preferred_element_type=jnp.float32) + pw1_b_ref[...]
    a1 = c[:, :CONF_INNER]
    a2 = c[:, CONF_INNER:]
    c = a1 * jax.nn.sigmoid(a2)                              # GLU

    # depthwise conv (kernel 31, 'same'): padded VMEM scratch + unrolled tap loop
    dwpad_ref[...] = jnp.zeros_like(dwpad_ref)
    dwpad_ref[DW_PAD:DW_PAD + T, :] = c
    acc = jnp.zeros((T, CONF_INNER), jnp.float32)
    for kk in range(DW_KERNEL):
        acc = acc + dwpad_ref[kk:kk + T, :] * dw_w_ref[kk:kk + 1, :]
    c = acc + dw_b_ref[...]

    c = c * jax.nn.sigmoid(c)                                # Swish
    c = jnp.dot(c, pw2_w_ref[...], preferred_element_type=jnp.float32) + pw2_b_ref[...]
    o_ref[0] = x + c


def _head_kernel(x_ref, g_ref, b_ref, w_ref, bw_ref, hid_ref, e_ref):
    """Final LayerNorm + dense_out, batch*time flattened into one block."""
    hid = _ln(x_ref[...], g_ref[...], b_ref[...])
    hid_ref[...] = hid
    e_ref[...] = jnp.dot(hid, w_ref[...], preferred_element_type=jnp.float32) + bw_ref[...]


def _dsp_kernel(t_ref, nz_ref, ctrl_ref, dft_ref, idft_ref, o_ref):
    """sinc excitation + windowed rDFT + complex filtering + windowed irDFT.

    Analysis window is folded into dft_ref, synthesis window into idft_ref,
    and the 1/128 noise scale into the exp, so the whole kernel is two matmuls
    plus elementwise EUP/VPU work on a single flattened (B*F, .) block.
    """
    BF = t_ref.shape[0]
    Kf = KF

    # combtooth = sinc(t); PAD_SENTINEL marks zero-padded frame positions -> 0.
    tt = t_ref[...]
    is_pad = jnp.abs(tt) >= 1e20
    tt = jnp.where(is_pad, 1.0, tt)
    pit = jnp.pi * tt
    denom = jnp.where(tt == 0.0, 1.0, pit)
    ct = jnp.where(tt == 0.0, 1.0, jnp.sin(pit) / denom)
    ct = jnp.where(is_pad, 0.0, ct)

    # analysis rDFT of combtooth and noise frames in ONE matmul (rows stacked).
    lhs = jnp.concatenate([ct, nz_ref[...]], axis=0)                       # (2BF, N2)
    spec = jnp.dot(lhs, dft_ref[...], preferred_element_type=jnp.float32)  # (2BF, 2Kf)
    ct_r = spec[:BF, :Kf]
    ct_i = spec[:BF, Kf:]
    nz_r = spec[BF:, :Kf]
    nz_i = spec[BF:, Kf:]

    ctrl = ctrl_ref[...]                                                   # (BF, 3*Kf)
    amp = jnp.exp(ctrl[:, 0:Kf])
    ph = jnp.pi * ctrl[:, Kf:2 * Kf]
    sf_r = amp * jnp.cos(ph)
    sf_i = amp * jnp.sin(ph)
    nf = jnp.exp(ctrl[:, 2 * Kf:3 * Kf] - LOG128)                          # exp(nmag)/128

    sig_r = ct_r * sf_r - ct_i * sf_i + nz_r * nf
    sig_i = ct_r * sf_i + ct_i * sf_r + nz_i * nf

    # inverse rDFT (synthesis window folded into idft_ref) in ONE matmul.
    sig = jnp.concatenate([sig_r, sig_i], axis=-1)                         # (BF, 2Kf)
    o_ref[...] = jnp.dot(sig, idft_ref[...], preferred_element_type=jnp.float32)


# ============================ Pallas call wrappers ===========================

def _row(v):
    return v.reshape(1, -1).astype(jnp.float32)


def _full2(a):
    return pl.BlockSpec(a.shape, lambda b: (0, 0))


def pallas_frontend(p, units, scalars):
    B, T, _ = units.shape
    w_emb = jnp.stack([p['f0_w'], p['ph_w'], p['vol_w']], axis=0).astype(jnp.float32)
    b_emb = (p['f0_b'] + p['ph_b'] + p['vol_b']).reshape(1, DIM).astype(jnp.float32)
    args = (units.astype(jnp.float32), p['stack_w1'], _row(p['stack_b1']),
            _row(p['gn_g']), _row(p['gn_b']), p['stack_w2'], _row(p['stack_b2']),
            scalars.astype(jnp.float32), w_emb, b_emb)
    in_specs = ([pl.BlockSpec((1, T, N_UNIT), lambda b: (b, 0, 0))]
                + [_full2(a) for a in args[1:7]]
                + [pl.BlockSpec((1, T, 3), lambda b: (b, 0, 0))]
                + [_full2(a) for a in args[8:]])
    return pl.pallas_call(
        _frontend_kernel,
        grid=(B,),
        in_specs=in_specs,
        out_specs=pl.BlockSpec((1, T, DIM), lambda b: (b, 0, 0)),
        out_shape=jax.ShapeDtypeStruct((B, T, DIM), jnp.float32),
        scratch_shapes=[pltpu.VMEM((T + 2, N_UNIT), jnp.float32),
                        pltpu.VMEM((T + 2, DIM), jnp.float32)],
        compiler_params=pltpu.CompilerParams(dimension_semantics=("parallel",)),
    )(*args)


def pallas_pcmer_layer(lp, x):
    B, T, _ = x.shape
    args = (x, _row(lp['ln_g']), _row(lp['ln_b']), lp['wqkv'], lp['wo'], _row(lp['bo']),
            _row(lp['cln_g']), _row(lp['cln_b']), lp['pw1_w'], _row(lp['pw1_b']),
            lp['dw_w'], _row(lp['dw_b']), lp['pw2_w'], _row(lp['pw2_b']))
    in_specs = ([pl.BlockSpec((1, T, DIM), lambda b: (b, 0, 0))]
                + [_full2(a) for a in args[1:]])
    return pl.pallas_call(
        _pcmer_layer_kernel,
        grid=(B,),
        in_specs=in_specs,
        out_specs=pl.BlockSpec((1, T, DIM), lambda b: (b, 0, 0)),
        out_shape=jax.ShapeDtypeStruct((B, T, DIM), jnp.float32),
        scratch_shapes=[pltpu.VMEM((T + DW_KERNEL - 1, CONF_INNER), jnp.float32)],
        compiler_params=pltpu.CompilerParams(dimension_semantics=("parallel",)),
    )(*args)


def pallas_head(p, x):
    B, T, _ = x.shape
    M = B * T
    hid, e = pl.pallas_call(
        _head_kernel,
        out_shape=(jax.ShapeDtypeStruct((M, DIM), jnp.float32),
                   jax.ShapeDtypeStruct((M, 3 * KF), jnp.float32)),
    )(x.reshape(M, DIM), _row(p['norm_g']), _row(p['norm_b']),
      p['dense_w'], _row(p['dense_b']))
    return hid.reshape(B, T, DIM), e.reshape(B, T, 3 * KF)


def pallas_spectral_synth(t_frames, nz_frames, ctrl, dftA, idftS):
    BF, n2 = t_frames.shape
    return pl.pallas_call(
        _dsp_kernel,
        out_shape=jax.ShapeDtypeStruct((BF, n2), jnp.float32),
    )(t_frames, nz_frames, ctrl, dftA, idftS)


# ================================= JAX glue =================================

def upsample(signal, factor):
    """DDSP upsample: linear interp, align_corners=True, last-frame hold."""
    B, T, C = signal.shape
    ext = jnp.concatenate([signal, signal[:, -1:, :]], axis=1)       # (B,T+1,C)
    j = jnp.arange(T * factor)
    i = j // factor
    frac = (j % factor).astype(signal.dtype) / factor
    lo = ext[:, i, :]
    hi = ext[:, i + 1, :]
    return lo * (1.0 - frac)[None, :, None] + hi * frac[None, :, None]


def _dft_constants(bs):
    """Analysis / synthesis real-DFT matrices with sqrt-Hann windows folded in."""
    n2 = 2 * bs
    kf = bs + 1
    n = np.arange(n2, dtype=np.float64)[:, None]
    k = np.arange(kf, dtype=np.float64)[None, :]
    ang = 2.0 * np.pi * n * k / n2
    win = np.sqrt(0.5 * (1.0 - np.cos(2.0 * np.pi * np.arange(n2) / n2)))   # sqrt periodic Hann
    dftA = np.concatenate([win[:, None] * np.cos(ang),
                           -(win[:, None] * np.sin(ang))], axis=1)          # (N2, 2*Kf)
    wgt = np.where((np.arange(kf) == 0) | (np.arange(kf) == bs), 1.0, 2.0)[:, None]
    icr = wgt * np.cos(ang.T) / n2
    ici = -wgt * np.sin(ang.T) / n2
    idftS = np.concatenate([icr * win[None, :], ici * win[None, :]], axis=0)  # (2*Kf, N2)
    return jnp.asarray(dftA, jnp.float32), jnp.asarray(idftS, jnp.float32)


def unit2ctrl_forward(p, units, f0_frames, phase_frames, volume_frames):
    scalars = jnp.concatenate([jnp.log1p(f0_frames / 700.0),
                               phase_frames / jnp.pi,
                               volume_frames], axis=-1)
    x = pallas_frontend(p, units, scalars)
    for l in range(N_LAYERS):
        x = pallas_pcmer_layer(p['layers'][l], x)
    hidden, e = pallas_head(p, x)
    return e, hidden


def comb_sub_fast_forward(params, units_frames, f0_frames, volume_frames, noise_key):
    """CombSubFast.forward (infer=True, no spk-mix / pitch-aug / initial_phase)."""
    B, T, _ = units_frames.shape
    bs = BLOCK_SIZE
    sr = float(SAMPLING_RATE)
    L = T * bs

    f0 = upsample(f0_frames, bs)                             # (B, L, 1)
    # TODO(synk): reference accumulates phase in float64 when infer=True;
    # float32 cumsum is used here (TPU has no native f64).
    x = jnp.cumsum(f0 / sr, axis=1)
    x = x - jnp.round(x)
    phase_frames = 2.0 * jnp.pi * x[:, ::bs, :]              # (B, T, 1)

    e, hidden = unit2ctrl_forward(params, units_frames, f0_frames,
                                  phase_frames, volume_frames)
    # append last frame of the (pre-exp) controls, flatten batch*frames.
    e_cat = jnp.concatenate([e, e[:, -1:, :]], axis=1)       # (B, T+1, 3*Kf)
    ctrl = e_cat.reshape(B * (T + 1), 3 * KF)

    # sinc argument; sinc itself is evaluated inside the spectral kernel.
    t_arg = sr * x[..., 0] / (f0[..., 0] + 1e-3)             # (B, L)
    noise = jax.random.uniform(noise_key, (B, L), jnp.float32) * 2.0 - 1.0

    def frame(sig, pad_value):
        pad = jnp.full((B, bs), pad_value, jnp.float32)
        padded = jnp.concatenate([pad, sig, pad], axis=1)    # (B, L + 2*bs)
        r = padded.reshape(B, T + 2, bs)
        return jnp.concatenate([r[:, :-1, :], r[:, 1:, :]], axis=-1)   # (B, T+1, 2*bs)

    t_frames = frame(t_arg, PAD_SENTINEL).reshape(B * (T + 1), N2)
    nz_frames = frame(noise, 0.0).reshape(B * (T + 1), N2)

    dftA, idftS = _dft_constants(bs)
    frames_out = pallas_spectral_synth(t_frames, nz_frames, ctrl, dftA, idftS)
    frames_out = frames_out.reshape(B, T + 1, N2)

    # Fold (overlap-add, stride bs) then crop block_size at each end.
    signal = (frames_out[:, :-1, bs:] + frames_out[:, 1:, :bs]).reshape(B, L)
    return signal, hidden, (signal, signal)


# ============================= parameter init ===============================

def init_params(key):
    def dense(k, fan_in, fan_out, scale=None):
        s = scale if scale is not None else 1.0 / np.sqrt(fan_in)
        return jax.random.normal(k, (fan_in, fan_out), jnp.float32) * s

    keys = jax.random.split(key, 64)
    ki = iter(keys)
    p = {
        'stack_w1': dense(next(ki), 3 * N_UNIT, DIM),
        'stack_b1': jnp.zeros((DIM,), jnp.float32),
        'gn_g': jnp.ones((DIM,), jnp.float32),
        'gn_b': jnp.zeros((DIM,), jnp.float32),
        'stack_w2': dense(next(ki), 3 * DIM, DIM),
        'stack_b2': jnp.zeros((DIM,), jnp.float32),
        'f0_w': jax.random.normal(next(ki), (DIM,), jnp.float32) * 0.1,
        'f0_b': jnp.zeros((DIM,), jnp.float32),
        'ph_w': jax.random.normal(next(ki), (DIM,), jnp.float32) * 0.1,
        'ph_b': jnp.zeros((DIM,), jnp.float32),
        'vol_w': jax.random.normal(next(ki), (DIM,), jnp.float32) * 0.1,
        'vol_b': jnp.zeros((DIM,), jnp.float32),
        'norm_g': jnp.ones((DIM,), jnp.float32),
        'norm_b': jnp.zeros((DIM,), jnp.float32),
        'dense_w': dense(next(ki), DIM, 3 * KF, scale=0.02),     # weight_norm Linear @ init
        'dense_b': jnp.zeros((3 * KF,), jnp.float32),
        'layers': [],
    }
    for _ in range(N_LAYERS):
        p['layers'].append({
            'ln_g': jnp.ones((DIM,), jnp.float32),
            'ln_b': jnp.zeros((DIM,), jnp.float32),
            'wqkv': dense(next(ki), DIM, 3 * DIM),
            'wo': dense(next(ki), DIM, DIM),
            'bo': jnp.zeros((DIM,), jnp.float32),
            'cln_g': jnp.ones((DIM,), jnp.float32),
            'cln_b': jnp.zeros((DIM,), jnp.float32),
            'pw1_w': dense(next(ki), DIM, 2 * CONF_INNER),
            'pw1_b': jnp.zeros((2 * CONF_INNER,), jnp.float32),
            'dw_w': jax.random.normal(next(ki), (DW_KERNEL, CONF_INNER),
                                      jnp.float32) / np.sqrt(DW_KERNEL),
            'dw_b': jnp.zeros((CONF_INNER,), jnp.float32),
            'pw2_w': dense(next(ki), CONF_INNER, DIM),
            'pw2_b': jnp.zeros((DIM,), jnp.float32),
        })
    return p


# ================================== main ====================================

if __name__ == "__main__":
    key = jax.random.PRNGKey(0)
    kp, ku, kf, kv, kn = jax.random.split(key, 5)
    B, T = 2, 8
    params = init_params(kp)
    units = jax.random.normal(ku, (B, T, N_UNIT), jnp.float32)
    f0 = 100.0 + 300.0 * jax.random.uniform(kf, (B, T, 1), jnp.float32)
    volume = jax.random.uniform(kv, (B, T, 1), jnp.float32)

    fwd = jax.jit(comb_sub_fast_forward)
    signal, hidden, (s_a, s_b) = fwd(params, units, f0, volume, kn)
    jax.block_until_ready((signal, hidden, s_a, s_b))

    assert signal.shape == (B, T * BLOCK_SIZE)
    assert hidden.shape == (B, T, DIM)
    assert bool(jnp.all(jnp.isfinite(signal))) and bool(jnp.all(jnp.isfinite(hidden)))
    print("KERNEL_OK")
</pallas_src>

<mosaic_0001>
module attributes {stable_mosaic.version = 11 : i64} {
  func.func @_head_kernel(%arg0: memref<16x64xf32, #tpu.memory_space<vmem>>, %arg1: memref<1x64xf32, #tpu.memory_space<vmem>>, %arg2: memref<1x64xf32, #tpu.memory_space<vmem>>, %arg3: memref<64x51xf32, #tpu.memory_space<vmem>>, %arg4: memref<1x51xf32, #tpu.memory_space<vmem>>, %arg5: memref<16x64xf32, #tpu.memory_space<vmem>>, %arg6: memref<16x51xf32, #tpu.memory_space<vmem>>) attributes {dimension_semantics = [], scalar_prefetch = 0 : i64, scratch_operands = 0 : i64, tpu.core_type = #tpu.core_type<tc>} {
    %c0 = arith.constant 0 : index
    %c0_0 = arith.constant 0 : index
    %0 = vector.load %arg0[%c0, %c0_0] : memref<16x64xf32, #tpu.memory_space<vmem>>, vector<16x64xf32>
    %c0_1 = arith.constant 0 : index
    %c0_2 = arith.constant 0 : index
    %1 = vector.load %arg1[%c0_1, %c0_2] : memref<1x64xf32, #tpu.memory_space<vmem>>, vector<1x64xf32>
    %c0_3 = arith.constant 0 : index
    %c0_4 = arith.constant 0 : index
    %2 = vector.load %arg2[%c0_3, %c0_4] : memref<1x64xf32, #tpu.memory_space<vmem>>, vector<1x64xf32>
    %cst = arith.constant dense<0.000000e+00> : vector<16xf32>
    %3 = vector.multi_reduction <add>, %0, %cst [1] : vector<16x64xf32> to vector<16xf32>
    %4 = vector.shape_cast %3 : vector<16xf32> to vector<16x1xf32>
    %cst_5 = arith.constant 6.400000e+01 : f32
    %5 = vector.broadcast %cst_5 : f32 to vector<16x1xf32>
    %6 = arith.divf %4, %5 : vector<16x1xf32>
    %7 = vector.broadcast %6 : vector<16x1xf32> to vector<16x64xf32>
    %8 = arith.subf %0, %7 : vector<16x64xf32>
    %9 = arith.mulf %8, %8 : vector<16x64xf32>
    %cst_6 = arith.constant dense<0.000000e+00> : vector<16xf32>
    %10 = vector.multi_reduction <add>, %9, %cst_6 [1] : vector<16x64xf32> to vector<16xf32>
    %11 = vector.shape_cast %10 : vector<16xf32> to vector<16x1xf32>
    %cst_7 = arith.constant 6.400000e+01 : f32
    %12 = vector.broadcast %cst_7 : f32 to vector<16x1xf32>
    %13 = arith.divf %11, %12 : vector<16x1xf32>
    %14 = vector.broadcast %6 : vector<16x1xf32> to vector<16x64xf32>
    %15 = arith.subf %0, %14 : vector<16x64xf32>
    %cst_8 = arith.constant 9.99999974E-6 : f32
    %16 = vector.broadcast %cst_8 : f32 to vector<16x1xf32>
    %17 = arith.addf %13, %16 : vector<16x1xf32>
    %18 = math.rsqrt %17 : vector<16x1xf32>
    %19 = vector.broadcast %18 : vector<16x1xf32> to vector<16x64xf32>
    %20 = arith.mulf %15, %19 : vector<16x64xf32>
    %21 = vector.broadcast %1 : vector<1x64xf32> to vector<16x64xf32>
    %22 = arith.mulf %20, %21 : vector<16x64xf32>
    %23 = vector.broadcast %2 : vector<1x64xf32> to vector<16x64xf32>
    %24 = arith.addf %22, %23 : vector<16x64xf32>
    %c0_9 = arith.constant 0 : index
    %c0_10 = arith.constant 0 : index
    %25 = vector.load %arg5[%c0_9, %c0_10] : memref<16x64xf32, #tpu.memory_space<vmem>>, vector<16x64xf32>
    tpu.vector_store %arg5[%c0_9, %c0_10], %24 {strides = array<i32>} : memref<16x64xf32, #tpu.memory_space<vmem>>, vector<16x64xf32>,
    %c0_11 = arith.constant 0 : index
    %c0_12 = arith.constant 0 : index
    %26 = vector.load %arg3[%c0_11, %c0_12] : memref<64x51xf32, #tpu.memory_space<vmem>>, vector<64x51xf32>
    %cst_13 = arith.constant dense<0.000000e+00> : vector<16x51xf32>
    %27 = tpu.matmul %24, %26, %cst_13 {dimension_numbers = #tpu.dot_dimension_numbers<[1], [0], [0], [1], [0, 0, 1, 1], [], []>} : vector<16x64xf32>, vector<64x51xf32>, vector<16x51xf32> -> vector<16x51xf32>
    %c0_14 = arith.constant 0 : index
    %c0_15 = arith.constant 0 : index
    %28 = vector.load %arg4[%c0_14, %c0_15] : memref<1x51xf32, #tpu.memory_space<vmem>>, vector<1x51xf32>
    %29 = vector.broadcast %28 : vector<1x51xf32> to vector<16x51xf32>
    %30 = arith.addf %27, %29 : vector<16x51xf32>
    %c0_16 = arith.constant 0 : index
    %c0_17 = arith.constant 0 : index
    %31 = vector.load %arg6[%c0_16, %c0_17] : memref<16x51xf32, #tpu.memory_space<vmem>>, vector<16x51xf32>
    tpu.vector_store %arg6[%c0_16, %c0_17], %30 {strides = array<i32>} : memref<16x51xf32, #tpu.memory_space<vmem>>, vector<16x51xf32>,
    return
  }
}

module attributes {stable_mosaic.version = 11 : i64} {
  func.func @_frontend_kernel(%arg0: i32, %arg1: memref<1x8x32xf32, #tpu.memory_space<vmem>>, %arg2: memref<96x64xf32, #tpu.memory_space<vmem>>, %arg3: memref<1x64xf32, #tpu.memory_space<vmem>>, %arg4: memref<1x64xf32, #tpu.memory_space<vmem>>, %arg5: memref<1x64xf32, #tpu.memory_space<vmem>>, %arg6: memref<192x64xf32, #tpu.memory_space<vmem>>, %arg7: memref<1x64xf32, #tpu.memory_space<vmem>>, %arg8: memref<1x8x3xf32, #tpu.memory_space<vmem>>, %arg9: memref<3x64xf32, #tpu.memory_space<vmem>>, %arg10: memref<1x64xf32, #tpu.memory_space<vmem>>, %arg11: memref<1x8x64xf32, #tpu.memory_space<vmem>>, %arg12: memref<10x32xf32, #tpu.memory_space<vmem>>, %arg13: memref<10x64xf32, #tpu.memory_space<vmem>>) attributes {dimension_semantics = [#tpu.dimension_semantics<parallel>], iteration_bounds = array<i64: 2>, scalar_prefetch = 0 : i64, scratch_operands = 2 : i64, tpu.core_type = #tpu.core_type<tc>, window_params = [{transform_indices = @transform_0, window_bounds = array<i64: 1, 8, 32>}, {pipeline_mode = #tpu.pipeline_mode<synchronous>, transform_indices = @transform_1, window_bounds = array<i64: 96, 64>}, {pipeline_mode = #tpu.pipeline_mode<synchronous>, transform_indices = @transform_2, window_bounds = array<i64: 1, 64>}, {pipeline_mode = #tpu.pipeline_mode<synchronous>, transform_indices = @transform_3, window_bounds = array<i64: 1, 64>}, {pipeline_mode = #tpu.pipeline_mode<synchronous>, transform_indices = @transform_4, window_bounds = array<i64: 1, 64>}, {pipeline_mode = #tpu.pipeline_mode<synchronous>, transform_indices = @transform_5, window_bounds = array<i64: 192, 64>}, {pipeline_mode = #tpu.pipeline_mode<synchronous>, transform_indices = @transform_6, window_bounds = array<i64: 1, 64>}, {transform_indices = @transform_7, window_bounds = array<i64: 1, 8, 3>}, {pipeline_mode = #tpu.pipeline_mode<synchronous>, transform_indices = @transform_8, window_bounds = array<i64: 3, 64>}, {pipeline_mode = #tpu.pipeline_mode<synchronous>, transform_indices = @transform_9, window_bounds = array<i64: 1, 64>}, {transform_indices = @transform_10, window_bounds = array<i64: 1, 8, 64>}]} {
    %c0 = arith.constant 0 : index
    %c0_0 = arith.constant 0 : index
    %c0_1 = arith.constant 0 : index
    %0 = vector.load %arg1[%c0, %c0_0, %c0_1] : memref<1x8x32xf32, #tpu.memory_space<vmem>>, vector<1x8x32xf32>
    %1 = vector.shape_cast %0 : vector<1x8x32xf32> to vector<8x32xf32>
    %cst = arith.constant 0.000000e+00 : f32
    %2 = vector.broadcast %cst : f32 to vector<10x32xf32>
    %c0_2 = arith.constant 0 : index
    %c0_3 = arith.constant 0 : index
    %3 = vector.load %arg12[%c0_2, %c0_3] : memref<10x32xf32, #tpu.memory_space<vmem>>, vector<10x32xf32>
    tpu.vector_store %arg12[%c0_2, %c0_3], %2 {strides = array<i32>} : memref<10x32xf32, #tpu.memory_space<vmem>>, vector<10x32xf32>,
    %c1 = arith.constant 1 : index
    %c0_4 = arith.constant 0 : index
    %4 = vector.load %arg12[%c1, %c0_4] : memref<10x32xf32, #tpu.memory_space<vmem>>, vector<8x32xf32>
    tpu.vector_store %arg12[%c1, %c0_4], %1 {strides = array<i32>} : memref<10x32xf32, #tpu.memory_space<vmem>>, vector<8x32xf32>,
    %c0_5 = arith.constant 0 : index
    %c0_6 = arith.constant 0 : index
    %5 = vector.load %arg12[%c0_5, %c0_6] : memref<10x32xf32, #tpu.memory_space<vmem>>, vector<8x32xf32>
    %c1_7 = arith.constant 1 : index
    %c0_8 = arith.constant 0 : index
    %6 = vector.load %arg12[%c1_7, %c0_8] : memref<10x32xf32, #tpu.memory_space<vmem>>, vector<8x32xf32>
    %c2 = arith.constant 2 : index
    %c0_9 = arith.constant 0 : index
    %7 = vector.load %arg12[%c2, %c0_9] : memref<10x32xf32, #tpu.memory_space<vmem>>, vector<8x32xf32>
    %8 = tpu.concatenate %5, %6, %7 in 1 : vector<8x32xf32>, vector<8x32xf32>, vector<8x32xf32> -> vector<8x96xf32>
    %c0_10 = arith.constant 0 : index
    %c0_11 = arith.constant 0 : index
    %9 = vector.load %arg2[%c0_10, %c0_11] : memref<96x64xf32, #tpu.memory_space<vmem>>, vector<96x64xf32>
    %cst_12 = arith.constant dense<0.000000e+00> : vector<8x64xf32>
    %10 = tpu.matmul %8, %9, %cst_12 {dimension_numbers = #tpu.dot_dimension_numbers<[1], [0], [0], [1], [0, 0, 1, 1], [], []>} : vector<8x96xf32>, vector<96x64xf32>, vector<8x64xf32> -> vector<8x64xf32>
    %c0_13 = arith.constant 0 : index
    %c0_14 = arith.constant 0 : index
    %11 = vector.load %arg3[%c0_13, %c0_14] : memref<1x64xf32, #tpu.memory_space<vmem>>, vector<1x64xf32>
    %12 = vector.broadcast %11 : vector<1x64xf32> to vector<8x64xf32>
    %13 = arith.addf %10, %12 : vector<8x64xf32>
    %14 = vector.extract_strided_slice %13 {offsets = [0, 0], sizes = [8, 16], strides = [1, 1]} : vector<8x64xf32> to vector<8x16xf32>
    %15 = vector.shape_cast %14 : vector<8x16xf32> to vector<1x8x16xf32>
    %cst_15 = arith.constant dense<0.000000e+00> : vector<1xf32>
    %16 = vector.multi_reduction <add>, %15, %cst_15 [1, 2] : vector<1x8x16xf32> to vector<1xf32>
    %17 = vector.shape_cast %16 : vector<1xf32> to vector<1x1x1xf32>
    %18 = vector.extract %17[0, 0, 0] : f32 from vector<1x1x1xf32>
    %19 = vector.broadcast %18 : f32 to vector<1x1xf32>
    %cst_16 = arith.constant 1.280000e+02 : f32
    %20 = vector.broadcast %cst_16 : f32 to vector<1x1xf32>
    %21 = arith.divf %19, %20 : vector<1x1xf32>
    %22 = vector.broadcast %21 : vector<1x1xf32> to vector<8x16xf32>
    %23 = arith.subf %14, %22 : vector<8x16xf32>
    %24 = vector.broadcast %21 : vector<1x1xf32> to vector<8x16xf32>
    %25 = arith.subf %14, %24 : vector<8x16xf32>
    %26 = arith.mulf %23, %25 : vector<8x16xf32>
    %27 = vector.shape_cast %26 : vector<8x16xf32> to vector<1x8x16xf32>
    %cst_17 = arith.constant dense<0.000000e+00> : vector<1xf32>
    %28 = vector.multi_reduction <add>, %27, %cst_17 [1, 2] : vector<1x8x16xf32> to vector<1xf32>
    %29 = vector.shape_cast %28 : vector<1xf32> to vector<1x1x1xf32>
    %30 = vector.extract %29[0, 0, 0] : f32 from vector<1x1x1xf32>
    %31 = vector.broadcast %30 : f32 to vector<1x1xf32>
    %cst_18 = arith.constant 1.280000e+02 : f32
    %32 = vector.broadcast %cst_18 : f32 to vector<1x1xf32>
    %33 = arith.divf %31, %32 : vector<1x1xf32>
    %34 = vector.broadcast %21 : vector<1x1xf32> to vector<8x16xf32>
    %35 = arith.subf %14, %34 : vector<8x16xf32>
    %cst_19 = arith.constant 9.99999974E-6 : f32
    %36 = vector.broadcast %cst_19 : f32 to vector<1x1xf32>
    %37 = arith.addf %33, %36 : vector<1x1xf32>
    %38 = math.rsqrt %37 : vector<1x1xf32>
    %39 = vector.broadcast %38 : vector<1x1xf32> to vector<8x16xf32>
    %40 = arith.mulf %35, %39 : vector<8x16xf32>
    %41 = vector.extract_strided_slice %13 {offsets = [0, 16], sizes = [8, 16], strides = [1, 1]} : vector<8x64xf32> to vector<8x16xf32>
    %42 = vector.shape_cast %41 : vector<8x16xf32> to vector<1x8x16xf32>
    %cst_20 = arith.constant dense<0.000000e+00> : vector<1xf32>
    %43 = vector.multi_reduction <add>, %42, %cst_20 [1, 2] : vector<1x8x16xf32> to vector<1xf32>
    %44 = vector.shape_cast %43 : vector<1xf32> to vector<1x1x1xf32>
    %45 = vector.extract %44[0, 0, 0] : f32 from vector<1x1x1xf32>
    %46 = vector.broadcast %45 : f32 to vector<1x1xf32>
    %cst_21 = arith.constant 1.280000e+02 : f32
    %47 = vector.broadcast %cst_21 : f32 to vector<1x1xf32>
    %48 = arith.divf %46, %47 : vector<1x1xf32>
    %49 = vector.broadcast %48 : vector<1x1xf32> to vector<8x16xf32>
    %50 = arith.subf %41, %49 : vector<8x16xf32>
    %51 = vector.broadcast %48 : vector<1x1xf32> to vector<8x16xf32>
    %52 = arith.subf %41, %51 : vector<8x16xf32>
    %53 = arith.mulf %50, %52 : vector<8x16xf32>
    %54 = vector.shape_cast %53 : vector<8x16xf32> to vector<1x8x16xf32>
    %cst_22 = arith.constant dense<0.000000e+00> : vector<1xf32>
    %55 = vector.multi_reduction <add>, %54, %cst_22 [1, 2] : vector<1x8x16xf32> to vector<1xf32>
    %56 = vector.shape_cast %55 : vector<1xf32> to vector<1x1x1xf32>
    %57 = vector.extract %56[0, 0, 0] : f32 from vector<1x1x1xf32>
    %58 = vector.broadcast %57 : f32 to vector<1x1xf32>
    %cst_23 = arith.constant 1.280000e+02 : f32
    %59 = vector.broadcast %cst_23 : f32 to vector<1x1xf32>
    %60 = arith.divf %58, %59 : vector<1x1xf32>
    %61 = vector.broadcast %48 : vector<1x1xf32> to vector<8x16xf32>
    %62 = arith.subf %41, %61 : vector<8x16xf32>
    %cst_24 = arith.constant 9.99999974E-6 : f32
    %63 = vector.broadcast %cst_24 : f32 to vector<1x1xf32>
    %64 = arith.addf %60, %63 : vector<1x1xf32>
    %65 = math.rsqrt %64 : vector<1x1xf32>
    %66 = vector.broadcast %65 : vector<1x1xf32> to vector<8x16xf32>
    %67 = arith.mulf %62, %66 : vector<8x16xf32>
    %68 = vector.extract_strided_slice %13 {offsets = [0, 32], sizes = [8, 16], strides = [1, 1]} : vector<8x64xf32> to vector<8x16xf32>
    %69 = vector.shape_cast %68 : vector<8x16xf32> to vector<1x8x16xf32>
    %cst_25 = arith.constant dense<0.000000e+00> : vector<1xf32>
    %70 = vector.multi_reduction <add>, %69, %cst_25 [1, 2] : vector<1x8x16xf32> to vector<1xf32>
    %71 = vector.shape_cast %70 : vector<1xf32> to vector<1x1x1xf32>
    %72 = vector.extract %71[0, 0, 0] : f32 from vector<1x1x1xf32>
    %73 = vector.broadcast %72 : f32 to vector<1x1xf32>
    %cst_26 = arith.constant 1.280000e+02 : f32
    %74 = vector.broadcast %cst_26 : f32 to vector<1x1xf32>
    %75 = arith.divf %73, %74 : vector<1x1xf32>
    %76 = vector.broadcast %75 : vector<1x1xf32> to vector<8x16xf32>
    %77 = arith.subf %68, %76 : vector<8x16xf32>
    %78 = vector.broadcast %75 : vector<1x1xf32> to vector<8x16xf32>
    %79 = arith.subf %68, %78 : vector<8x16xf32>
    %80 = arith.mulf %77, %79 : vector<8x16xf32>
    %81 = vector.shape_cast %80 : vector<8x16xf32> to vector<1x8x16xf32>
    %cst_27 = arith.constant dense<0.000000e+00> : vector<1xf32>
    %82 = vector.multi_reduction <add>, %81, %cst_27 [1, 2] : vector<1x8x16xf32> to vector<1xf32>
    %83 = vector.shape_cast %82 : vector<1xf32> to vector<1x1x1xf32>
    %84 = vector.extract %83[0, 0, 0] : f32 from vector<1x1x1xf32>
    %85 = vector.broadcast %84 : f32 to vector<1x1xf32>
    %cst_28 = arith.constant 1.280000e+02 : f32
    %86 = vector.broadcast %cst_28 : f32 to vector<1x1xf32>
    %87 = arith.divf %85, %86 : vector<1x1xf32>
    %88 = vector.broadcast %75 : vector<1x1xf32> to vector<8x16xf32>
    %89 = arith.subf %68, %88 : vector<8x16xf32>
    %cst_29 = arith.constant 9.99999974E-6 : f32
    %90 = vector.broadcast %cst_29 : f32 to vector<1x1xf32>
    %91 = arith.addf %87, %90 : vector<1x1xf32>
    %92 = math.rsqrt %91 : vector<1x1xf32>
    %93 = vector.broadcast %92 : vector<1x1xf32> to vector<8x16xf32>
    %94 = arith.mulf %89, %93 : vector<8x16xf32>
    %95 = vector.extract_strided_slice %13 {offsets = [0, 48], sizes = [8, 16], strides = [1, 1]} : vector<8x64xf32> to vector<8x16xf32>
    %96 = vector.shape_cast %95 : vector<8x16xf32> to vector<1x8x16xf32>
    %cst_30 = arith.constant dense<0.000000e+00> : vector<1xf32>
    %97 = vector.multi_reduction <add>, %96, %cst_30 [1, 2] : vector<1x8x16xf32> to vector<1xf32>
    %98 = vector.shape_cast %97 : vector<1xf32> to vector<1x1x1xf32>
    %99 = vector.extract %98[0, 0, 0] : f32 from vector<1x1x1xf32>
    %100 = vector.broadcast %99 : f32 to vector<1x1xf32>
    %cst_31 = arith.constant 1.280000e+02 : f32
    %101 = vector.broadcast %cst_31 : f32 to vector<1x1xf32>
    %102 = arith.divf %100, %101 : vector<1x1xf32>
    %103 = vector.broadcast %102 : vector<1x1xf32> to vector<8x16xf32>
    %104 = arith.subf %95, %103 : vector<8x16xf32>
    %105 = vector.broadcast %102 : vector<1x1xf32> to vector<8x16xf32>
    %106 = arith.subf %95, %105 : vector<8x16xf32>
    %107 = arith.mulf %104, %106 : vector<8x16xf32>
    %108 = vector.shape_cast %107 : vector<8x16xf32> to vector<1x8x16xf32>
    %cst_32 = arith.constant dense<0.000000e+00> : vector<1xf32>
    %109 = vector.multi_reduction <add>, %108, %cst_32 [1, 2] : vector<1x8x16xf32> to vector<1xf32>
    %110 = vector.shape_cast %109 : vector<1xf32> to vector<1x1x1xf32>
    %111 = vector.extract %110[0, 0, 0] : f32 from vector<1x1x1xf32>
    %112 = vector.broadcast %111 : f32 to vector<1x1xf32>
    %cst_33 = arith.constant 1.280000e+02 : f32
    %113 = vector.broadcast %cst_33 : f32 to vector<1x1xf32>
    %114 = arith.divf %112, %113 : vector<1x1xf32>
    %115 = vector.broadcast %102 : vector<1x1xf32> to vector<8x16xf32>
    %116 = arith.subf %95, %115 : vector<8x16xf32>
    %cst_34 = arith.constant 9.99999974E-6 : f32
    %117 = vector.broadcast %cst_34 : f32 to vector<1x1xf32>
    %118 = arith.addf %114, %117 : vector<1x1xf32>
    %119 = math.rsqrt %118 : vector<1x1xf32>
    %120 = vector.broadcast %119 : vector<1x1xf32> to vector<8x16xf32>
    %121 = arith.mulf %116, %120 : vector<8x16xf32>
    %122 = tpu.concatenate %40, %67, %94, %121 in 1 : vector<8x16xf32>, vector<8x16xf32>, vector<8x16xf32>, vector<8x16xf32> -> vector<8x64xf32>
    %c0_35 = arith.constant 0 : index
    %c0_36 = arith.constant 0 : index
    %123 = vector.load %arg4[%c0_35, %c0_36] : memref<1x64xf32, #tpu.memory_space<vmem>>, vector<1x64xf32>
    %124 = vector.broadcast %123 : vector<1x64xf32> to vector<8x64xf32>
    %125 = arith.mulf %122, %124 : vector<8x64xf32>
    %c0_37 = arith.constant 0 : index
    %c0_38 = arith.constant 0 : index
    %126 = vector.load %arg5[%c0_37, %c0_38] : memref<1x64xf32, #tpu.memory_space<vmem>>, vector<1x64xf32>
    %127 = vector.broadcast %126 : vector<1x64xf32> to vector<8x64xf32>
    %128 = arith.addf %125, %127 : vector<8x64xf32>
    %cst_39 = arith.constant 0.000000e+00 : f32
    %129 = vector.broadcast %cst_39 : f32 to vector<8x64xf32>
    %130 = arith.cmpf oge, %128, %129 : vector<8x64xf32>
    %cst_40 = arith.constant 0.00999999977 : f32
    %131 = vector.broadcast %cst_40 : f32 to vector<8x64xf32>
    %132 = arith.mulf %131, %128 : vector<8x64xf32>
    %133 = arith.select %130, %128, %132 : vector<8x64xi1>, vector<8x64xf32>
    %cst_41 = arith.constant 0.000000e+00 : f32
    %134 = vector.broadcast %cst_41 : f32 to vector<10x64xf32>
    %c0_42 = arith.constant 0 : index
    %c0_43 = arith.constant 0 : index
    %135 = vector.load %arg13[%c0_42, %c0_43] : memref<10x64xf32, #tpu.memory_space<vmem>>, vector<10x64xf32>
    tpu.vector_store %arg13[%c0_42, %c0_43], %134 {strides = array<i32>} : memref<10x64xf32, #tpu.memory_space<vmem>>, vector<10x64xf32>,
    %c1_44 = arith.constant 1 : index
    %c0_45 = arith.constant 0 : index
    %136 = vector.load %arg13[%c1_44, %c0_45] : memref<10x64xf32, #tpu.memory_space<vmem>>, vector<8x64xf32>
    tpu.vector_store %arg13[%c1_44, %c0_45], %133 {strides = array<i32>} : memref<10x64xf32, #tpu.memory_space<vmem>>, vector<8x64xf32>,
    %c0_46 = arith.constant 0 : index
    %c0_47 = arith.constant 0 : index
    %137 = vector.load %arg13[%c0_46, %c0_47] : memref<10x64xf32, #tpu.memory_space<vmem>>, vector<8x64xf32>
    %c1_48 = arith.constant 1 : index
    %c0_49 = arith.constant 0 : index
    %138 = vector.load %arg13[%c1_48, %c0_49] : memref<10x64xf32, #tpu.memory_space<vmem>>, vector<8x64xf32>
    %c2_50 = arith.constant 2 : index
    %c0_51 = arith.constant 0 : index
    %139 = vector.load %arg13[%c2_50, %c0_51] : memref<10x64xf32, #tpu.memory_space<vmem>>, vector<8x64xf32>
    %140 = tpu.concatenate %137, %138, %139 in 1 : vector<8x64xf32>, vector<8x64xf32>, vector<8x64xf32> -> vector<8x192xf32>
    %c0_52 = arith.constant 0 : index
    %c0_53 = arith.constant 0 : index
    %141 = vector.load %arg6[%c0_52, %c0_53] : memref<192x64xf32, #tpu.memory_space<vmem>>, vector<192x64xf32>
    %cst_54 = arith.constant dense<0.000000e+00> : vector<8x64xf32>
    %142 = tpu.matmul %140, %141, %cst_54 {dimension_numbers = #tpu.dot_dimension_numbers<[1], [0], [0], [1], [0, 0, 1, 1], [], []>} : vector<8x192xf32>, vector<192x64xf32>, vector<8x64xf32> -> vector<8x64xf32>
    %c0_55 = arith.constant 0 : index
    %c0_56 = arith.constant 0 : index
    %143 = vector.load %arg7[%c0_55, %c0_56] : memref<1x64xf32, #tpu.memory_space<vmem>>, vector<1x64xf32>
    %144 = vector.broadcast %143 : vector<1x64xf32> to vector<8x64xf32>
    %145 = arith.addf %142, %144 : vector<8x64xf32>
    %c0_57 = arith.constant 0 : index
    %c0_58 = arith.constant 0 : index
    %c0_59 = arith.constant 0 : index
    %146 = vector.load %arg8[%c0_57, %c0_58, %c0_59] : memref<1x8x3xf32, #tpu.memory_space<vmem>>, vector<1x8x3xf32>
    %147 = vector.shape_cast %146 : vector<1x8x3xf32> to vector<8x3xf32>
    %c0_60 = arith.constant 0 : index
    %c0_61 = arith.constant 0 : index
    %148 = vector.load %arg9[%c0_60, %c0_61] : memref<3x64xf32, #tpu.memory_space<vmem>>, vector<3x64xf32>
    %cst_62 = arith.constant dense<0.000000e+00> : vector<8x64xf32>
    %149 = tpu.matmul %147, %148, %cst_62 {dimension_numbers = #tpu.dot_dimension_numbers<[1], [0], [0], [1], [0, 0, 1, 1], [], []>} : vector<8x3xf32>, vector<3x64xf32>, vector<8x64xf32> -> vector<8x64xf32>
    %c0_63 = arith.constant 0 : index
    %c0_64 = arith.constant 0 : index
    %150 = vector.load %arg10[%c0_63, %c0_64] : memref<1x64xf32, #tpu.memory_space<vmem>>, vector<1x64xf32>
    %151 = vector.broadcast %150 : vector<1x64xf32> to vector<8x64xf32>
    %152 = arith.addf %149, %151 : vector<8x64xf32>
    %153 = arith.addf %145, %152 : vector<8x64xf32>
    %c0_65 = arith.constant 0 : index
    %c0_66 = arith.constant 0 : index
    %c0_67 = arith.constant 0 : index
    %154 = vector.load %arg11[%c0_65, %c0_66, %c0_67] : memref<1x8x64xf32, #tpu.memory_space<vmem>>, vector<1x8x64xf32>
    %155 = vector.shape_cast %154 : vector<1x8x64xf32> to vector<8x64xf32>
    %156 = vector.shape_cast %153 : vector<8x64xf32> to vector<1x8x64xf32>
    tpu.vector_store %arg11[%c0_65, %c0_66, %c0_67], %156 {strides = array<i32>} : memref<1x8x64xf32, #tpu.memory_space<vmem>>, vector<1x8x64xf32>,
    return
  }
  func.func @transform_0(%arg0: i32) -> (i32, i32, i32) {
    %c0_i32 = arith.constant 0 : i32
    %c0_i32_0 = arith.constant 0 : i32
    %c0_i32_1 = arith.constant 0 : i32
    return %arg0, %c0_i32, %c0_i32_0 : i32, i32, i32
  }
  func.func @transform_1(%arg0: i32) -> (i32, i32) {
    %c0_i32 = arith.constant 0 : i32
    %c0_i32_0 = arith.constant 0 : i32
    %c0_i32_1 = arith.constant 0 : i32
    return %c0_i32, %c0_i32_0 : i32, i32
  }
  func.func @transform_2(%arg0: i32) -> (i32, i32) {
    %c0_i32 = arith.constant 0 : i32
    %c0_i32_0 = arith.constant 0 : i32
    %c0_i32_1 = arith.constant 0 : i32
    return %c0_i32, %c0_i32_0 : i32, i32
  }
  func.func @transform_3(%arg0: i32) -> (i32, i32) {
    %c0_i32 = arith.constant 0 : i32
    %c0_i32_0 = arith.constant 0 : i32
    %c0_i32_1 = arith.constant 0 : i32
    return %c0_i32, %c0_i32_0 : i32, i32
  }
  func.func @transform_4(%arg0: i32) -> (i32, i32) {
    %c0_i32 = arith.constant 0 : i32
    %c0_i32_0 = arith.constant 0 : i32
    %c0_i32_1 = arith.constant 0 : i32
    return %c0_i32, %c0_i32_0 : i32, i32
  }
  func.func @transform_5(%arg0: i32) -> (i32, i32) {
    %c0_i32 = arith.constant 0 : i32
    %c0_i32_0 = arith.constant 0 : i32
    %c0_i32_1 = arith.constant 0 : i32
    return %c0_i32, %c0_i32_0 : i32, i32
  }
  func.func @transform_6(%arg0: i32) -> (i32, i32) {
    %c0_i32 = arith.constant 0 : i32
    %c0_i32_0 = arith.constant 0 : i32
    %c0_i32_1 = arith.constant 0 : i32
    return %c0_i32, %c0_i32_0 : i32, i32
  }
  func.func @transform_7(%arg0: i32) -> (i32, i32, i32) {
    %c0_i32 = arith.constant 0 : i32
    %c0_i32_0 = arith.constant 0 : i32
    %c0_i32_1 = arith.constant 0 : i32
    return %arg0, %c0_i32, %c0_i32_0 : i32, i32, i32
  }
  func.func @transform_8(%arg0: i32) -> (i32, i32) {
    %c0_i32 = arith.constant 0 : i32
    %c0_i32_0 = arith.constant 0 : i32
    %c0_i32_1 = arith.constant 0 : i32
    return %c0_i32, %c0_i32_0 : i32, i32
  }
  func.func @transform_9(%arg0: i32) -> (i32, i32) {
    %c0_i32 = arith.constant 0 : i32
    %c0_i32_0 = arith.constant 0 : i32
    %c0_i32_1 = arith.constant 0 : i32
    return %c0_i32, %c0_i32_0 : i32, i32
  }
  func.func @transform_10(%arg0: i32) -> (i32, i32, i32) {
    %c0_i32 = arith.constant 0 : i32
    %c0_i32_0 = arith.constant 0 : i32
    %c0_i32_1 = arith.constant 0 : i32
    return %arg0, %c0_i32, %c0_i32_0 : i32, i32, i32
  }
}

module attributes {stable_mosaic.version = 11 : i64} {
  func.func @_pcmer_layer_kernel(%arg0: i32, %arg1: memref<1x8x64xf32, #tpu.memory_space<vmem>>, %arg2: memref<1x64xf32, #tpu.memory_space<vmem>>, %arg3: memref<1x64xf32, #tpu.memory_space<vmem>>, %arg4: memref<64x192xf32, #tpu.memory_space<vmem>>, %arg5: memref<64x64xf32, #tpu.memory_space<vmem>>, %arg6: memref<1x64xf32, #tpu.memory_space<vmem>>, %arg7: memref<1x64xf32, #tpu.memory_space<vmem>>, %arg8: memref<1x64xf32, #tpu.memory_space<vmem>>, %arg9: memref<64x256xf32, #tpu.memory_space<vmem>>, %arg10: memref<1x256xf32, #tpu.memory_space<vmem>>, %arg11: memref<31x128xf32, #tpu.memory_space<vmem>>, %arg12: memref<1x128xf32, #tpu.memory_space<vmem>>, %arg13: memref<128x64xf32, #tpu.memory_space<vmem>>, %arg14: memref<1x64xf32, #tpu.memory_space<vmem>>, %arg15: memref<1x8x64xf32, #tpu.memory_space<vmem>>, %arg16: memref<38x128xf32, #tpu.memory_space<vmem>>) attributes {dimension_semantics = [#tpu.dimension_semantics<parallel>], iteration_bounds = array<i64: 2>, scalar_prefetch = 0 : i64, scratch_operands = 1 : i64, tpu.core_type = #tpu.core_type<tc>, window_params = [{transform_indices = @transform_0, window_bounds = array<i64: 1, 8, 64>}, {pipeline_mode = #tpu.pipeline_mode<synchronous>, transform_indices = @transform_1, window_bounds = array<i64: 1, 64>}, {pipeline_mode = #tpu.pipeline_mode<synchronous>, transform_indices = @transform_2, window_bounds = array<i64: 1, 64>}, {pipeline_mode = #tpu.pipeline_mode<synchronous>, transform_indices = @transform_3, window_bounds = array<i64: 64, 192>}, {pipeline_mode = #tpu.pipeline_mode<synchronous>, transform_indices = @transform_4, window_bounds = array<i64: 64, 64>}, {pipeline_mode = #tpu.pipeline_mode<synchronous>, transform_indices = @transform_5, window_bounds = array<i64: 1, 64>}, {pipeline_mode = #tpu.pipeline_mode<synchronous>, transform_indices = @transform_6, window_bounds = array<i64: 1, 64>}, {pipeline_mode = #tpu.pipeline_mode<synchronous>, transform_indices = @transform_7, window_bounds = array<i64: 1, 64>}, {pipeline_mode = #tpu.pipeline_mode<synchronous>, transform_indices = @transform_8, window_bounds = array<i64: 64, 256>}, {pipeline_mode = #tpu.pipeline_mode<synchronous>, transform_indices = @transform_9, window_bounds = array<i64: 1, 256>}, {pipeline_mode = #tpu.pipeline_mode<synchronous>, transform_indices = @transform_10, window_bounds = array<i64: 31, 128>}, {pipeline_mode = #tpu.pipeline_mode<synchronous>, transform_indices = @transform_11, window_bounds = array<i64: 1, 128>}, {pipeline_mode = #tpu.pipeline_mode<synchronous>, transform_indices = @transform_12, window_bounds = array<i64: 128, 64>}, {pipeline_mode = #tpu.pipeline_mode<synchronous>, transform_indices = @transform_13, window_bounds = array<i64: 1, 64>}, {transform_indices = @transform_14, window_bounds = array<i64: 1, 8, 64>}]} {
    %c0 = arith.constant 0 : index
    %c0_0 = arith.constant 0 : index
    %c0_1 = arith.constant 0 : index
    %0 = vector.load %arg1[%c0, %c0_0, %c0_1] : memref<1x8x64xf32, #tpu.memory_space<vmem>>, vector<1x8x64xf32>
    %1 = vector.shape_cast %0 : vector<1x8x64xf32> to vector<8x64xf32>
    %c0_2 = arith.constant 0 : index
    %c0_3 = arith.constant 0 : index
    %2 = vector.load %arg2[%c0_2, %c0_3] : memref<1x64xf32, #tpu.memory_space<vmem>>, vector<1x64xf32>
    %c0_4 = arith.constant 0 : index
    %c0_5 = arith.constant 0 : index
    %3 = vector.load %arg3[%c0_4, %c0_5] : memref<1x64xf32, #tpu.memory_space<vmem>>, vector<1x64xf32>
    %cst = arith.constant dense<0.000000e+00> : vector<8xf32>
    %4 = vector.multi_reduction <add>, %1, %cst [1] : vector<8x64xf32> to vector<8xf32>
    %5 = vector.shape_cast %4 : vector<8xf32> to vector<8x1xf32>
    %cst_6 = arith.constant 6.400000e+01 : f32
    %6 = vector.broadcast %cst_6 : f32 to vector<8x1xf32>
    %7 = arith.divf %5, %6 : vector<8x1xf32>
    %8 = vector.broadcast %7 : vector<8x1xf32> to vector<8x64xf32>
    %9 = arith.subf %1, %8 : vector<8x64xf32>
    %10 = arith.mulf %9, %9 : vector<8x64xf32>
    %cst_7 = arith.constant dense<0.000000e+00> : vector<8xf32>
    %11 = vector.multi_reduction <add>, %10, %cst_7 [1] : vector<8x64xf32> to vector<8xf32>
    %12 = vector.shape_cast %11 : vector<8xf32> to vector<8x1xf32>
    %cst_8 = arith.constant 6.400000e+01 : f32
    %13 = vector.broadcast %cst_8 : f32 to vector<8x1xf32>
    %14 = arith.divf %12, %13 : vector<8x1xf32>
    %15 = vector.broadcast %7 : vector<8x1xf32> to vector<8x64xf32>
    %16 = arith.subf %1, %15 : vector<8x64xf32>
    %cst_9 = arith.constant 9.99999974E-6 : f32
    %17 = vector.broadcast %cst_9 : f32 to vector<8x1xf32>
    %18 = arith.addf %14, %17 : vector<8x1xf32>
    %19 = math.rsqrt %18 : vector<8x1xf32>
    %20 = vector.broadcast %19 : vector<8x1xf32> to vector<8x64xf32>
    %21 = arith.mulf %16, %20 : vector<8x64xf32>
    %22 = vector.broadcast %2 : vector<1x64xf32> to vector<8x64xf32>
    %23 = arith.mulf %21, %22 : vector<8x64xf32>
    %24 = vector.broadcast %3 : vector<1x64xf32> to vector<8x64xf32>
    %25 = arith.addf %23, %24 : vector<8x64xf32>
    %c0_10 = arith.constant 0 : index
    %c0_11 = arith.constant 0 : index
    %26 = vector.load %arg4[%c0_10, %c0_11] : memref<64x192xf32, #tpu.memory_space<vmem>>, vector<64x192xf32>
    %cst_12 = arith.constant dense<0.000000e+00> : vector<8x192xf32>
    %27 = tpu.matmul %25, %26, %cst_12 {dimension_numbers = #tpu.dot_dimension_numbers<[1], [0], [0], [1], [0, 0, 1, 1], [], []>} : vector<8x64xf32>, vector<64x192xf32>, vector<8x192xf32> -> vector<8x192xf32>
    %28 = vector.extract_strided_slice %27 {offsets = [0, 0], sizes = [8, 16], strides = [1, 1]} : vector<8x192xf32> to vector<8x16xf32>
    %29 = vector.extract_strided_slice %27 {offsets = [0, 64], sizes = [8, 16], strides = [1, 1]} : vector<8x192xf32> to vector<8x16xf32>
    %30 = vector.extract_strided_slice %27 {offsets = [0, 128], sizes = [8, 16], strides = [1, 1]} : vector<8x192xf32> to vector<8x16xf32>
    %cst_13 = arith.constant dense<0.000000e+00> : vector<8x8xf32>
    %31 = tpu.matmul %28, %29, %cst_13 {dimension_numbers = #tpu.dot_dimension_numbers<[1], [1], [0], [0], [0, 0, 1, 0], [], []>} : vector<8x16xf32>, vector<8x16xf32>, vector<8x8xf32> -> vector<8x8xf32>
    %cst_14 = arith.constant 2.500000e-01 : f32
    %32 = vector.broadcast %cst_14 : f32 to vector<8x8xf32>
    %33 = arith.mulf %31, %32 : vector<8x8xf32>
    %cst_15 = arith.constant dense<0xFF800000> : vector<8xf32>
    %34 = vector.multi_reduction <maximumf>, %33, %cst_15 [1] : vector<8x8xf32> to vector<8xf32>
    %35 = vector.shape_cast %34 : vector<8xf32> to vector<8x1xf32>
    %36 = vector.broadcast %35 : vector<8x1xf32> to vector<8x8xf32>
    %37 = arith.subf %33, %36 : vector<8x8xf32>
    %38 = math.exp %37 : vector<8x8xf32>
    %cst_16 = arith.constant dense<0.000000e+00> : vector<8xf32>
    %39 = vector.multi_reduction <add>, %38, %cst_16 [1] : vector<8x8xf32> to vector<8xf32>
    %40 = vector.shape_cast %39 : vector<8xf32> to vector<8x1xf32>
    %41 = tpu.reciprocal %40 {approx = true} : vector<8x1xf32> -> vector<8x1xf32>
    %42 = vector.broadcast %41 : vector<8x1xf32> to vector<8x8xf32>
    %43 = arith.mulf %38, %42 : vector<8x8xf32>
    %cst_17 = arith.constant dense<0.000000e+00> : vector<8x16xf32>
    %44 = tpu.matmul %43, %30, %cst_17 {dimension_numbers = #tpu.dot_dimension_numbers<[1], [0], [0], [1], [0, 0, 1, 1], [], []>} : vector<8x8xf32>, vector<8x16xf32>, vector<8x16xf32> -> vector<8x16xf32>
    %45 = vector.extract_strided_slice %27 {offsets = [0, 16], sizes = [8, 16], strides = [1, 1]} : vector<8x192xf32> to vector<8x16xf32>
    %46 = vector.extract_strided_slice %27 {offsets = [0, 80], sizes = [8, 16], strides = [1, 1]} : vector<8x192xf32> to vector<8x16xf32>
    %47 = vector.extract_strided_slice %27 {offsets = [0, 144], sizes = [8, 16], strides = [1, 1]} : vector<8x192xf32> to vector<8x16xf32>
    %cst_18 = arith.constant dense<0.000000e+00> : vector<8x8xf32>
    %48 = tpu.matmul %45, %46, %cst_18 {dimension_numbers = #tpu.dot_dimension_numbers<[1], [1], [0], [0], [0, 0, 1, 0], [], []>} : vector<8x16xf32>, vector<8x16xf32>, vector<8x8xf32> -> vector<8x8xf32>
    %cst_19 = arith.constant 2.500000e-01 : f32
    %49 = vector.broadcast %cst_19 : f32 to vector<8x8xf32>
    %50 = arith.mulf %48, %49 : vector<8x8xf32>
    %cst_20 = arith.constant dense<0xFF800000> : vector<8xf32>
    %51 = vector.multi_reduction <maximumf>, %50, %cst_20 [1] : vector<8x8xf32> to vector<8xf32>
    %52 = vector.shape_cast %51 : vector<8xf32> to vector<8x1xf32>
    %53 = vector.broadcast %52 : vector<8x1xf32> to vector<8x8xf32>
    %54 = arith.subf %50, %53 : vector<8x8xf32>
    %55 = math.exp %54 : vector<8x8xf32>
    %cst_21 = arith.constant dense<0.000000e+00> : vector<8xf32>
    %56 = vector.multi_reduction <add>, %55, %cst_21 [1] : vector<8x8xf32> to vector<8xf32>
    %57 = vector.shape_cast %56 : vector<8xf32> to vector<8x1xf32>
    %58 = tpu.reciprocal %57 {approx = true} : vector<8x1xf32> -> vector<8x1xf32>
    %59 = vector.broadcast %58 : vector<8x1xf32> to vector<8x8xf32>
    %60 = arith.mulf %55, %59 : vector<8x8xf32>
    %cst_22 = arith.constant dense<0.000000e+00> : vector<8x16xf32>
    %61 = tpu.matmul %60, %47, %cst_22 {dimension_numbers = #tpu.dot_dimension_numbers<[1], [0], [0], [1], [0, 0, 1, 1], [], []>} : vector<8x8xf32>, vector<8x16xf32>, vector<8x16xf32> -> vector<8x16xf32>
    %62 = vector.extract_strided_slice %27 {offsets = [0, 32], sizes = [8, 16], strides = [1, 1]} : vector<8x192xf32> to vector<8x16xf32>
    %63 = vector.extract_strided_slice %27 {offsets = [0, 96], sizes = [8, 16], strides = [1, 1]} : vector<8x192xf32> to vector<8x16xf32>
    %64 = vector.extract_strided_slice %27 {offsets = [0, 160], sizes = [8, 16], strides = [1, 1]} : vector<8x192xf32> to vector<8x16xf32>
    %cst_23 = arith.constant dense<0.000000e+00> : vector<8x8xf32>
    %65 = tpu.matmul %62, %63, %cst_23 {dimension_numbers = #tpu.dot_dimension_numbers<[1], [1], [0], [0], [0, 0, 1, 0], [], []>} : vector<8x16xf32>, vector<8x16xf32>, vector<8x8xf32> -> vector<8x8xf32>
    %cst_24 = arith.constant 2.500000e-01 : f32
    %66 = vector.broadcast %cst_24 : f32 to vector<8x8xf32>
    %67 = arith.mulf %65, %66 : vector<8x8xf32>
    %cst_25 = arith.constant dense<0xFF800000> : vector<8xf32>
    %68 = vector.multi_reduction <maximumf>, %67, %cst_25 [1] : vector<8x8xf32> to vector<8xf32>
    %69 = vector.shape_cast %68 : vector<8xf32> to vector<8x1xf32>
    %70 = vector.broadcast %69 : vector<8x1xf32> to vector<8x8xf32>
    %71 = arith.subf %67, %70 : vector<8x8xf32>
    %72 = math.exp %71 : vector<8x8xf32>
    %cst_26 = arith.constant dense<0.000000e+00> : vector<8xf32>
    %73 = vector.multi_reduction <add>, %72, %cst_26 [1] : vector<8x8xf32> to vector<8xf32>
    %74 = vector.shape_cast %73 : vector<8xf32> to vector<8x1xf32>
    %75 = tpu.reciprocal %74 {approx = true} : vector<8x1xf32> -> vector<8x1xf32>
    %76 = vector.broadcast %75 : vector<8x1xf32> to vector<8x8xf32>
    %77 = arith.mulf %72, %76 : vector<8x8xf32>
    %cst_27 = arith.constant dense<0.000000e+00> : vector<8x16xf32>
    %78 = tpu.matmul %77, %64, %cst_27 {dimension_numbers = #tpu.dot_dimension_numbers<[1], [0], [0], [1], [0, 0, 1, 1], [], []>} : vector<8x8xf32>, vector<8x16xf32>, vector<8x16xf32> -> vector<8x16xf32>
    %79 = vector.extract_strided_slice %27 {offsets = [0, 48], sizes = [8, 16], strides = [1, 1]} : vector<8x192xf32> to vector<8x16xf32>
    %80 = vector.extract_strided_slice %27 {offsets = [0, 112], sizes = [8, 16], strides = [1, 1]} : vector<8x192xf32> to vector<8x16xf32>
    %81 = vector.extract_strided_slice %27 {offsets = [0, 176], sizes = [8, 16], strides = [1, 1]} : vector<8x192xf32> to vector<8x16xf32>
    %cst_28 = arith.constant dense<0.000000e+00> : vector<8x8xf32>
    %82 = tpu.matmul %79, %80, %cst_28 {dimension_numbers = #tpu.dot_dimension_numbers<[1], [1], [0], [0], [0, 0, 1, 0], [], []>} : vector<8x16xf32>, vector<8x16xf32>, vector<8x8xf32> -> vector<8x8xf32>
    %cst_29 = arith.constant 2.500000e-01 : f32
    %83 = vector.broadcast %cst_29 : f32 to vector<8x8xf32>
    %84 = arith.mulf %82, %83 : vector<8x8xf32>
    %cst_30 = arith.constant dense<0xFF800000> : vector<8xf32>
    %85 = vector.multi_reduction <maximumf>, %84, %cst_30 [1] : vector<8x8xf32> to vector<8xf32>
    %86 = vector.shape_cast %85 : vector<8xf32> to vector<8x1xf32>
    %87 = vector.broadcast %86 : vector<8x1xf32> to vector<8x8xf32>
    %88 = arith.subf %84, %87 : vector<8x8xf32>
    %89 = math.exp %88 : vector<8x8xf32>
    %cst_31 = arith.constant dense<0.000000e+00> : vector<8xf32>
    %90 = vector.multi_reduction <add>, %89, %cst_31 [1] : vector<8x8xf32> to vector<8xf32>
    %91 = vector.shape_cast %90 : vector<8xf32> to vector<8x1xf32>
    %92 = tpu.reciprocal %91 {approx = true} : vector<8x1xf32> -> vector<8x1xf32>
    %93 = vector.broadcast %92 : vector<8x1xf32> to vector<8x8xf32>
    %94 = arith.mulf %89, %93 : vector<8x8xf32>
    %cst_32 = arith.constant dense<0.000000e+00> : vector<8x16xf32>
    %95 = tpu.matmul %94, %81, %cst_32 {dimension_numbers = #tpu.dot_dimension_numbers<[1], [0], [0], [1], [0, 0, 1, 1], [], []>} : vector<8x8xf32>, vector<8x16xf32>, vector<8x16xf32> -> vector<8x16xf32>
    %96 = tpu.concatenate %44, %61, %78, %95 in 1 : vector<8x16xf32>, vector<8x16xf32>, vector<8x16xf32>, vector<8x16xf32> -> vector<8x64xf32>
    %c0_33 = arith.constant 0 : index
    %c0_34 = arith.constant 0 : index
    %97 = vector.load %arg5[%c0_33, %c0_34] : memref<64x64xf32, #tpu.memory_space<vmem>>, vector<64x64xf32>
    %cst_35 = arith.constant dense<0.000000e+00> : vector<8x64xf32>
    %98 = tpu.matmul %96, %97, %cst_35 {dimension_numbers = #tpu.dot_dimension_numbers<[1], [0], [0], [1], [0, 0, 1, 1], [], []>} : vector<8x64xf32>, vector<64x64xf32>, vector<8x64xf32> -> vector<8x64xf32>
    %99 = arith.addf %1, %98 : vector<8x64xf32>
    %c0_36 = arith.constant 0 : index
    %c0_37 = arith.constant 0 : index
    %100 = vector.load %arg6[%c0_36, %c0_37] : memref<1x64xf32, #tpu.memory_space<vmem>>, vector<1x64xf32>
    %101 = vector.broadcast %100 : vector<1x64xf32> to vector<8x64xf32>
    %102 = arith.addf %99, %101 : vector<8x64xf32>
    %c0_38 = arith.constant 0 : index
    %c0_39 = arith.constant 0 : index
    %103 = vector.load %arg7[%c0_38, %c0_39] : memref<1x64xf32, #tpu.memory_space<vmem>>, vector<1x64xf32>
    %c0_40 = arith.constant 0 : index
    %c0_41 = arith.constant 0 : index
    %104 = vector.load %arg8[%c0_40, %c0_41] : memref<1x64xf32, #tpu.memory_space<vmem>>, vector<1x64xf32>
    %cst_42 = arith.constant dense<0.000000e+00> : vector<8xf32>
    %105 = vector.multi_reduction <add>, %102, %cst_42 [1] : vector<8x64xf32> to vector<8xf32>
    %106 = vector.shape_cast %105 : vector<8xf32> to vector<8x1xf32>
    %cst_43 = arith.constant 6.400000e+01 : f32
    %107 = vector.broadcast %cst_43 : f32 to vector<8x1xf32>
    %108 = arith.divf %106, %107 : vector<8x1xf32>
    %109 = vector.broadcast %108 : vector<8x1xf32> to vector<8x64xf32>
    %110 = arith.subf %102, %109 : vector<8x64xf32>
    %111 = arith.mulf %110, %110 : vector<8x64xf32>
    %cst_44 = arith.constant dense<0.000000e+00> : vector<8xf32>
    %112 = vector.multi_reduction <add>, %111, %cst_44 [1] : vector<8x64xf32> to vector<8xf32>
    %113 = vector.shape_cast %112 : vector<8xf32> to vector<8x1xf32>
    %cst_45 = arith.constant 6.400000e+01 : f32
    %114 = vector.broadcast %cst_45 : f32 to vector<8x1xf32>
    %115 = arith.divf %113, %114 : vector<8x1xf32>
    %116 = vector.broadcast %108 : vector<8x1xf32> to vector<8x64xf32>
    %117 = arith.subf %102, %116 : vector<8x64xf32>
    %cst_46 = arith.constant 9.99999974E-6 : f32
    %118 = vector.broadcast %cst_46 : f32 to vector<8x1xf32>
    %119 = arith.addf %115, %118 : vector<8x1xf32>
    %120 = math.rsqrt %119 : vector<8x1xf32>
    %121 = vector.broadcast %120 : vector<8x1xf32> to vector<8x64xf32>
    %122 = arith.mulf %117, %121 : vector<8x64xf32>
    %123 = vector.broadcast %103 : vector<1x64xf32> to vector<8x64xf32>
    %124 = arith.mulf %122, %123 : vector<8x64xf32>
    %125 = vector.broadcast %104 : vector<1x64xf32> to vector<8x64xf32>
    %126 = arith.addf %124, %125 : vector<8x64xf32>
    %c0_47 = arith.constant 0 : index
    %c0_48 = arith.constant 0 : index
    %127 = vector.load %arg9[%c0_47, %c0_48] : memref<64x256xf32, #tpu.memory_space<vmem>>, vector<64x256xf32>
    %cst_49 = arith.constant dense<0.000000e+00> : vector<8x256xf32>
    %128 = tpu.matmul %126, %127, %cst_49 {dimension_numbers = #tpu.dot_dimension_numbers<[1], [0], [0], [1], [0, 0, 1, 1], [], []>} : vector<8x64xf32>, vector<64x256xf32>, vector<8x256xf32> -> vector<8x256xf32>
    %c0_50 = arith.constant 0 : index
    %c0_51 = arith.constant 0 : index
    %129 = vector.load %arg10[%c0_50, %c0_51] : memref<1x256xf32, #tpu.memory_space<vmem>>, vector<1x256xf32>
    %130 = vector.broadcast %129 : vector<1x256xf32> to vector<8x256xf32>
    %131 = arith.addf %128, %130 : vector<8x256xf32>
    %132 = vector.extract_strided_slice %131 {offsets = [0, 0], sizes = [8, 128], strides = [1, 1]} : vector<8x256xf32> to vector<8x128xf32>
    %133 = vector.extract_strided_slice %131 {offsets = [0, 128], sizes = [8, 128], strides = [1, 1]} : vector<8x256xf32> to vector<8x128xf32>
    %134 = arith.negf %133 : vector<8x128xf32>
    %135 = math.exp %134 : vector<8x128xf32>
    %cst_52 = arith.constant 1.000000e+00 : f32
    %136 = vector.broadcast %cst_52 : f32 to vector<8x128xf32>
    %137 = arith.addf %136, %135 : vector<8x128xf32>
    %138 = arith.divf %136, %137 : vector<8x128xf32>
    %139 = arith.mulf %132, %138 : vector<8x128xf32>
    %cst_53 = arith.constant 0.000000e+00 : f32
    %140 = vector.broadcast %cst_53 : f32 to vector<38x128xf32>
    %c0_54 = arith.constant 0 : index
    %c0_55 = arith.constant 0 : index
    %141 = vector.load %arg16[%c0_54, %c0_55] : memref<38x128xf32, #tpu.memory_space<vmem>>, vector<38x128xf32>
    tpu.vector_store %arg16[%c0_54, %c0_55], %140 {strides = array<i32>} : memref<38x128xf32, #tpu.memory_space<vmem>>, vector<38x128xf32>,
    %c15 = arith.constant 15 : index
    %c0_56 = arith.constant 0 : index
    %142 = vector.load %arg16[%c15, %c0_56] : memref<38x128xf32, #tpu.memory_space<vmem>>, vector<8x128xf32>
    tpu.vector_store %arg16[%c15, %c0_56], %139 {strides = array<i32>} : memref<38x128xf32, #tpu.memory_space<vmem>>, vector<8x128xf32>,
    %cst_57 = arith.constant 0.000000e+00 : f32
    %143 = vector.broadcast %cst_57 : f32 to vector<8x128xf32>
    %c0_58 = arith.constant 0 : index
    %c0_59 = arith.constant 0 : index
    %144 = vector.load %arg16[%c0_58, %c0_59] : memref<38x128xf32, #tpu.memory_space<vmem>>, vector<8x128xf32>
    %c0_60 = arith.constant 0 : index
    %c0_61 = arith.constant 0 : index
    %145 = vector.load %arg11[%c0_60, %c0_61] : memref<31x128xf32, #tpu.memory_space<vmem>>, vector<1x128xf32>
    %146 = vector.broadcast %145 : vector<1x128xf32> to vector<8x128xf32>
    %147 = arith.mulf %144, %146 : vector<8x128xf32>
    %148 = arith.addf %143, %147 : vector<8x128xf32>
    %c1 = arith.constant 1 : index
    %c0_62 = arith.constant 0 : index
    %149 = vector.load %arg16[%c1, %c0_62] : memref<38x128xf32, #tpu.memory_space<vmem>>, vector<8x128xf32>
    %c1_63 = arith.constant 1 : index
    %c0_64 = arith.constant 0 : index
    %150 = vector.load %arg11[%c1_63, %c0_64] : memref<31x128xf32, #tpu.memory_space<vmem>>, vector<1x128xf32>
    %151 = vector.broadcast %150 : vector<1x128xf32> to vector<8x128xf32>
    %152 = arith.mulf %149, %151 : vector<8x128xf32>
    %153 = arith.addf %148, %152 : vector<8x128xf32>
    %c2 = arith.constant 2 : index
    %c0_65 = arith.constant 0 : index
    %154 = vector.load %arg16[%c2, %c0_65] : memref<38x128xf32, #tpu.memory_space<vmem>>, vector<8x128xf32>
    %c2_66 = arith.constant 2 : index
    %c0_67 = arith.constant 0 : index
    %155 = vector.load %arg11[%c2_66, %c0_67] : memref<31x128xf32, #tpu.memory_space<vmem>>, vector<1x128xf32>
    %156 = vector.broadcast %155 : vector<1x128xf32> to vector<8x128xf32>
    %157 = arith.mulf %154, %156 : vector<8x128xf32>
    %158 = arith.addf %153, %157 : vector<8x128xf32>
    %c3 = arith.constant 3 : index
    %c0_68 = arith.constant 0 : index
    %159 = vector.load %arg16[%c3, %c0_68] : memref<38x128xf32, #tpu.memory_space<vmem>>, vector<8x128xf32>
    %c3_69 = arith.constant 3 : index
    %c0_70 = arith.constant 0 : index
    %160 = vector.load %arg11[%c3_69, %c0_70] : memref<31x128xf32, #tpu.memory_space<vmem>>, vector<1x128xf32>
    %161 = vector.broadcast %160 : vector<1x128xf32> to vector<8x128xf32>
    %162 = arith.mulf %159, %161 : vector<8x128xf32>
    %163 = arith.addf %158, %162 : vector<8x128xf32>
    %c4 = arith.constant 4 : index
    %c0_71 = arith.constant 0 : index
    %164 = vector.load %arg16[%c4, %c0_71] : memref<38x128xf32, #tpu.memory_space<vmem>>, vector<8x128xf32>
    %c4_72 = arith.constant 4 : index
    %c0_73 = arith.constant 0 : index
    %165 = vector.load %arg11[%c4_72, %c0_73] : memref<31x128xf32, #tpu.memory_space<vmem>>, vector<1x128xf32>
    %166 = vector.broadcast %165 : vector<1x128xf32> to vector<8x128xf32>
    %167 = arith.mulf %164, %166 : vector<8x128xf32>
    %168 = arith.addf %163, %167 : vector<8x128xf32>
    %c5 = arith.constant 5 : index
    %c0_74 = arith.constant 0 : index
    %169 = vector.load %arg16[%c5, %c0_74] : memref<38x128xf32, #tpu.memory_space<vmem>>, vector<8x128xf32>
    %c5_75 = arith.constant 5 : index
    %c0_76 = arith.constant 0 : index
    %170 = vector.load %arg11[%c5_75, %c0_76] : memref<31x128xf32, #tpu.memory_space<vmem>>, vector<1x128xf32>
    %171 = vector.broadcast %170 : vector<1x128xf32> to vector<8x128xf32>
    %172 = arith.mulf %169, %171 : vector<8x128xf32>
    %173 = arith.addf %168, %172 : vector<8x128xf32>
    %c6 = arith.constant 6 : index
    %c0_77 = arith.constant 0 : index
    %174 = vector.load %arg16[%c6, %c0_77] : memref<38x128xf32, #tpu.memory_space<vmem>>, vector<8x128xf32>
    %c6_78 = arith.constant 6 : index
    %c0_79 = arith.constant 0 : index
    %175 = vector.load %arg11[%c6_78, %c0_79] : memref<31x128xf32, #tpu.memory_space<vmem>>, vector<1x128xf32>
    %176 = vector.broadcast %175 : vector<1x128xf32> to vector<8x128xf32>
    %177 = arith.mulf %174, %176 : vector<8x128xf32>
    %178 = arith.addf %173, %177 : vector<8x128xf32>
    %c7 = arith.constant 7 : index
    %c0_80 = arith.constant 0 : index
    %179 = vector.load %arg16[%c7, %c0_80] : memref<38x128xf32, #tpu.memory_space<vmem>>, vector<8x128xf32>
    %c7_81 = arith.constant 7 : index
    %c0_82 = arith.constant 0 : index
    %180 = vector.load %arg11[%c7_81, %c0_82] : memref<31x128xf32, #tpu.memory_space<vmem>>, vector<1x128xf32>
    %181 = vector.broadcast %180 : vector<1x128xf32> to vector<8x128xf32>
    %182 = arith.mulf %179, %181 : vector<8x128xf32>
    %183 = arith.addf %178, %182 : vector<8x128xf32>
    %c8 = arith.constant 8 : index
    %c0_83 = arith.constant 0 : index
    %184 = vector.load %arg16[%c8, %c0_83] : memref<38x128xf32, #tpu.memory_space<vmem>>, vector<8x128xf32>
    %c8_84 = arith.constant 8 : index
    %c0_85 = arith.constant 0 : index
    %185 = vector.load %arg11[%c8_84, %c0_85] : memref<31x128xf32, #tpu.memory_space<vmem>>, vector<1x128xf32>
    %186 = vector.broadcast %185 : vector<1x128xf32> to vector<8x128xf32>
    %187 = arith.mulf %184, %186 : vector<8x128xf32>
    %188 = arith.addf %183, %187 : vector<8x128xf32>
    %c9 = arith.constant 9 : index
    %c0_86 = arith.constant 0 : index
    %189 = vector.load %arg16[%c9, %c0_86] : memref<38x128xf32, #tpu.memory_space<vmem>>, vector<8x128xf32>
    %c9_87 = arith.constant 9 : index
    %c0_88 = arith.constant 0 : index
    %190 = vector.load %arg11[%c9_87, %c0_88] : memref<31x128xf32, #tpu.memory_space<vmem>>, vector<1x128xf32>
    %191 = vector.broadcast %190 : vector<1x128xf32> to vector<8x128xf32>
    %192 = arith.mulf %189, %191 : vector<8x128xf32>
    %193 = arith.addf %188, %192 : vector<8x128xf32>
    %c10 = arith.constant 10 : index
    %c0_89 = arith.constant 0 : index
    %194 = vector.load %arg16[%c10, %c0_89] : memref<38x128xf32, #tpu.memory_space<vmem>>, vector<8x128xf32>
    %c10_90 = arith.constant 10 : index
    %c0_91 = arith.constant 0 : index
    %195 = vector.load %arg11[%c10_90, %c0_91] : memref<31x128xf32, #tpu.memory_space<vmem>>, vector<1x128xf32>
    %196 = vector.broadcast %195 : vector<1x128xf32> to vector<8x128xf32>
    %197 = arith.mulf %194, %196 : vector<8x128xf32>
    %198 = arith.addf %193, %197 : vector<8x128xf32>
    %c11 = arith.constant 11 : index
    %c0_92 = arith.constant 0 : index
    %199 = vector.load %arg16[%c11, %c0_92] : memref<38x128xf32, #tpu.memory_space<vmem>>, vector<8x128xf32>
    %c11_93 = arith.constant 11 : index
    %c0_94 = arith.constant 0 : index
    %200 = vector.load %arg11[%c11_93, %c0_94] : memref<31x128xf32, #tpu.memory_space<vmem>>, vector<1x128xf32>
    %201 = vector.broadcast %200 : vector<1x128xf32> to vector<8x128xf32>
    %202 = arith.mulf %199, %201 : vector<8x128xf32>
    %203 = arith.addf %198, %202 : vector<8x128xf32>
    %c12 = arith.constant 12 : index
    %c0_95 = arith.constant 0 : index
    %204 = vector.load %arg16[%c12, %c0_95] : memref<38x128xf32, #tpu.memory_space<vmem>>, vector<8x128xf32>
    %c12_96 = arith.constant 12 : index
    %c0_97 = arith.constant 0 : index
    %205 = vector.load %arg11[%c12_96, %c0_97] : memref<31x128xf32, #tpu.memory_space<vmem>>, vector<1x128xf32>
    %206 = vector.broadcast %205 : vector<1x128xf32> to vector<8x128xf32>
    %207 = arith.mulf %204, %206 : vector<8x128xf32>
    %208 = arith.addf %203, %207 : vector<8x128xf32>
    %c13 = arith.constant 13 : index
    %c0_98 = arith.constant 0 : index
    %209 = vector.load %arg16[%c13, %c0_98] : memref<38x128xf32, #tpu.memory_space<vmem>>, vector<8x128xf32>
    %c13_99 = arith.constant 13 : index
    %c0_100 = arith.constant 0 : index
    %210 = vector.load %arg11[%c13_99, %c0_100] : memref<31x128xf32, #tpu.memory_space<vmem>>, vector<1x128xf32>
    %211 = vector.broadcast %210 : vector<1x128xf32> to vector<8x128xf32>
    %212 = arith.mulf %209, %211 : vector<8x128xf32>
    %213 = arith.addf %208, %212 : vector<8x128xf32>
    %c14 = arith.constant 14 : index
    %c0_101 = arith.constant 0 : index
    %214 = vector.load %arg16[%c14, %c0_101] : memref<38x128xf32, #tpu.memory_space<vmem>>, vector<8x128xf32>
    %c14_102 = arith.constant 14 : index
    %c0_103 = arith.constant 0 : index
    %215 = vector.load %arg11[%c14_102, %c0_103] : memref<31x128xf32, #tpu.memory_space<vmem>>, vector<1x128xf32>
    %216 = vector.broadcast %215 : vector<1x128xf32> to vector<8x128xf32>
    %217 = arith.mulf %214, %216 : vector<8x128xf32>
    %218 = arith.addf %213, %217 : vector<8x128xf32>
    %c15_104 = arith.constant 15 : index
    %c0_105 = arith.constant 0 : index
    %219 = vector.load %arg16[%c15_104, %c0_105] : memref<38x128xf32, #tpu.memory_space<vmem>>, vector<8x128xf32>
    %c15_106 = arith.constant 15 : index
    %c0_107 = arith.constant 0 : index
    %220 = vector.load %arg11[%c15_106, %c0_107] : memref<31x128xf32, #tpu.memory_space<vmem>>, vector<1x128xf32>
    %221 = vector.broadcast %220 : vector<1x128xf32> to vector<8x128xf32>
    %222 = arith.mulf %219, %221 : vector<8x128xf32>
    %223 = arith.addf %218, %222 : vector<8x128xf32>
    %c16 = arith.constant 16 : index
    %c0_108 = arith.constant 0 : index
    %224 = vector.load %arg16[%c16, %c0_108] : memref<38x128xf32, #tpu.memory_space<vmem>>, vector<8x128xf32>
    %c16_109 = arith.constant 16 : index
    %c0_110 = arith.constant 0 : index
    %225 = vector.load %arg11[%c16_109, %c0_110] : memref<31x128xf32, #tpu.memory_space<vmem>>, vector<1x128xf32>
    %226 = vector.broadcast %225 : vector<1x128xf32> to vector<8x128xf32>
    %227 = arith.mulf %224, %226 : vector<8x128xf32>
    %228 = arith.addf %223, %227 : vector<8x128xf32>
    %c17 = arith.constant 17 : index
    %c0_111 = arith.constant 0 : index
    %229 = vector.load %arg16[%c17, %c0_111] : memref<38x128xf32, #tpu.memory_space<vmem>>, vector<8x128xf32>
    %c17_112 = arith.constant 17 : index
    %c0_113 = arith.constant 0 : index
    %230 = vector.load %arg11[%c17_112, %c0_113] : memref<31x128xf32, #tpu.memory_space<vmem>>, vector<1x128xf32>
    %231 = vector.broadcast %230 : vector<1x128xf32> to vector<8x128xf32>
    %232 = arith.mulf %229, %231 : vector<8x128xf32>
    %233 = arith.addf %228, %232 : vector<8x128xf32>
    %c18 = arith.constant 18 : index
    %c0_114 = arith.constant 0 : index
    %234 = vector.load %arg16[%c18, %c0_114] : memref<38x128xf32, #tpu.memory_space<vmem>>, vector<8x128xf32>
    %c18_115 = arith.constant 18 : index
    %c0_116 = arith.constant 0 : index
    %235 = vector.load %arg11[%c18_115, %c0_116] : memref<31x128xf32, #tpu.memory_space<vmem>>, vector<1x128xf32>
    %236 = vector.broadcast %235 : vector<1x128xf32> to vector<8x128xf32>
    %237 = arith.mulf %234, %236 : vector<8x128xf32>
    %238 = arith.addf %233, %237 : vector<8x128xf32>
    %c19 = arith.constant 19 : index
    %c0_117 = arith.constant 0 : index
    %239 = vector.load %arg16[%c19, %c0_117] : memref<38x128xf32, #tpu.memory_space<vmem>>, vector<8x128xf32>
    %c19_118 = arith.constant 19 : index
    %c0_119 = arith.constant 0 : index
    %240 = vector.load %arg11[%c19_118, %c0_119] : memref<31x128xf32, #tpu.memory_space<vmem>>, vector<1x128xf32>
    %241 = vector.broadcast %240 : vector<1x128xf32> to vector<8x128xf32>
    %242 = arith.mulf %239, %241 : vector<8x128xf32>
    %243 = arith.addf %238, %242 : vector<8x128xf32>
    %c20 = arith.constant 20 : index
    %c0_120 = arith.constant 0 : index
    %244 = vector.load %arg16[%c20, %c0_120] : memref<38x128xf32, #tpu.memory_space<vmem>>, vector<8x128xf32>
    %c20_121 = arith.constant 20 : index
    %c0_122 = arith.constant 0 : index
    %245 = vector.load %arg11[%c20_121, %c0_122] : memref<31x128xf32, #tpu.memory_space<vmem>>, vector<1x128xf32>
    %246 = vector.broadcast %245 : vector<1x128xf32> to vector<8x128xf32>
    %247 = arith.mulf %244, %246 : vector<8x128xf32>
    %248 = arith.addf %243, %247 : vector<8x128xf32>
    %c21 = arith.constant 21 : index
    %c0_123 = arith.constant 0 : index
    %249 = vector.load %arg16[%c21, %c0_123] : memref<38x128xf32, #tpu.memory_space<vmem>>, vector<8x128xf32>
    %c21_124 = arith.constant 21 : index
    %c0_125 = arith.constant 0 : index
    %250 = vector.load %arg11[%c21_124, %c0_125] : memref<31x128xf32, #tpu.memory_space<vmem>>, vector<1x128xf32>
    %251 = vector.broadcast %250 : vector<1x128xf32> to vector<8x128xf32>
    %252 = arith.mulf %249, %251 : vector<8x128xf32>
    %253 = arith.addf %248, %252 : vector<8x128xf32>
    %c22 = arith.constant 22 : index
    %c0_126 = arith.constant 0 : index
    %254 = vector.load %arg16[%c22, %c0_126] : memref<38x128xf32, #tpu.memory_space<vmem>>, vector<8x128xf32>
    %c22_127 = arith.constant 22 : index
    %c0_128 = arith.constant 0 : index
    %255 = vector.load %arg11[%c22_127, %c0_128] : memref<31x128xf32, #tpu.memory_space<vmem>>, vector<1x128xf32>
    %256 = vector.broadcast %255 : vector<1x128xf32> to vector<8x128xf32>
    %257 = arith.mulf %254, %256 : vector<8x128xf32>
    %258 = arith.addf %253, %257 : vector<8x128xf32>
    %c23 = arith.constant 23 : index
    %c0_129 = arith.constant 0 : index
    %259 = vector.load %arg16[%c23, %c0_129] : memref<38x128xf32, #tpu.memory_space<vmem>>, vector<8x128xf32>
    %c23_130 = arith.constant 23 : index
    %c0_131 = arith.constant 0 : index
    %260 = vector.load %arg11[%c23_130, %c0_131] : memref<31x128xf32, #tpu.memory_space<vmem>>, vector<1x128xf32>
    %261 = vector.broadcast %260 : vector<1x128xf32> to vector<8x128xf32>
    %262 = arith.mulf %259, %261 : vector<8x128xf32>
    %263 = arith.addf %258, %262 : vector<8x128xf32>
    %c24 = arith.constant 24 : index
    %c0_132 = arith.constant 0 : index
    %264 = vector.load %arg16[%c24, %c0_132] : memref<38x128xf32, #tpu.memory_space<vmem>>, vector<8x128xf32>
    %c24_133 = arith.constant 24 : index
    %c0_134 = arith.constant 0 : index
    %265 = vector.load %arg11[%c24_133, %c0_134] : memref<31x128xf32, #tpu.memory_space<vmem>>, vector<1x128xf32>
    %266 = vector.broadcast %265 : vector<1x128xf32> to vector<8x128xf32>
    %267 = arith.mulf %264, %266 : vector<8x128xf32>
    %268 = arith.addf %263, %267 : vector<8x128xf32>
    %c25 = arith.constant 25 : index
    %c0_135 = arith.constant 0 : index
    %269 = vector.load %arg16[%c25, %c0_135] : memref<38x128xf32, #tpu.memory_space<vmem>>, vector<8x128xf32>
    %c25_136 = arith.constant 25 : index
    %c0_137 = arith.constant 0 : index
    %270 = vector.load %arg11[%c25_136, %c0_137] : memref<31x128xf32, #tpu.memory_space<vmem>>, vector<1x128xf32>
    %271 = vector.broadcast %270 : vector<1x128xf32> to vector<8x128xf32>
    %272 = arith.mulf %269, %271 : vector<8x128xf32>
    %273 = arith.addf %268, %272 : vector<8x128xf32>
    %c26 = arith.constant 26 : index
    %c0_138 = arith.constant 0 : index
    %274 = vector.load %arg16[%c26, %c0_138] : memref<38x128xf32, #tpu.memory_space<vmem>>, vector<8x128xf32>
    %c26_139 = arith.constant 26 : index
    %c0_140 = arith.constant 0 : index
    %275 = vector.load %arg11[%c26_139, %c0_140] : memref<31x128xf32, #tpu.memory_space<vmem>>, vector<1x128xf32>
    %276 = vector.broadcast %275 : vector<1x128xf32> to vector<8x128xf32>
    %277 = arith.mulf %274, %276 : vector<8x128xf32>
    %278 = arith.addf %273, %277 : vector<8x128xf32>
    %c27 = arith.constant 27 : index
    %c0_141 = arith.constant 0 : index
    %279 = vector.load %arg16[%c27, %c0_141] : memref<38x128xf32, #tpu.memory_space<vmem>>, vector<8x128xf32>
    %c27_142 = arith.constant 27 : index
    %c0_143 = arith.constant 0 : index
    %280 = vector.load %arg11[%c27_142, %c0_143] : memref<31x128xf32, #tpu.memory_space<vmem>>, vector<1x128xf32>
    %281 = vector.broadcast %280 : vector<1x128xf32> to vector<8x128xf32>
    %282 = arith.mulf %279, %281 : vector<8x128xf32>
    %283 = arith.addf %278, %282 : vector<8x128xf32>
    %c28 = arith.constant 28 : index
    %c0_144 = arith.constant 0 : index
    %284 = vector.load %arg16[%c28, %c0_144] : memref<38x128xf32, #tpu.memory_space<vmem>>, vector<8x128xf32>
    %c28_145 = arith.constant 28 : index
    %c0_146 = arith.constant 0 : index
    %285 = vector.load %arg11[%c28_145, %c0_146] : memref<31x128xf32, #tpu.memory_space<vmem>>, vector<1x128xf32>
    %286 = vector.broadcast %285 : vector<1x128xf32> to vector<8x128xf32>
    %287 = arith.mulf %284, %286 : vector<8x128xf32>
    %288 = arith.addf %283, %287 : vector<8x128xf32>
    %c29 = arith.constant 29 : index
    %c0_147 = arith.constant 0 : index
    %289 = vector.load %arg16[%c29, %c0_147] : memref<38x128xf32, #tpu.memory_space<vmem>>, vector<8x128xf32>
    %c29_148 = arith.constant 29 : index
    %c0_149 = arith.constant 0 : index
    %290 = vector.load %arg11[%c29_148, %c0_149] : memref<31x128xf32, #tpu.memory_space<vmem>>, vector<1x128xf32>
    %291 = vector.broadcast %290 : vector<1x128xf32> to vector<8x128xf32>
    %292 = arith.mulf %289, %291 : vector<8x128xf32>
    %293 = arith.addf %288, %292 : vector<8x128xf32>
    %c30 = arith.constant 30 : index
    %c0_150 = arith.constant 0 : index
    %294 = vector.load %arg16[%c30, %c0_150] : memref<38x128xf32, #tpu.memory_space<vmem>>, vector<8x128xf32>
    %c30_151 = arith.constant 30 : index
    %c0_152 = arith.constant 0 : index
    %295 = vector.load %arg11[%c30_151, %c0_152] : memref<31x128xf32, #tpu.memory_space<vmem>>, vector<1x128xf32>
    %296 = vector.broadcast %295 : vector<1x128xf32> to vector<8x128xf32>
    %297 = arith.mulf %294, %296 : vector<8x128xf32>
    %298 = arith.addf %293, %297 : vector<8x128xf32>
    %c0_153 = arith.constant 0 : index
    %c0_154 = arith.constant 0 : index
    %299 = vector.load %arg12[%c0_153, %c0_154] : memref<1x128xf32, #tpu.memory_space<vmem>>, vector<1x128xf32>
    %300 = vector.broadcast %299 : vector<1x128xf32> to vector<8x128xf32>
    %301 = arith.addf %298, %300 : vector<8x128xf32>
    %302 = arith.negf %301 : vector<8x128xf32>
    %303 = math.exp %302 : vector<8x128xf32>
    %cst_155 = arith.constant 1.000000e+00 : f32
    %304 = vector.broadcast %cst_155 : f32 to vector<8x128xf32>
    %305 = arith.addf %304, %303 : vector<8x128xf32>
    %306 = arith.divf %304, %305 : vector<8x128xf32>
    %307 = arith.mulf %301, %306 : vector<8x128xf32>
    %c0_156 = arith.constant 0 : index
    %c0_157 = arith.constant 0 : index
    %308 = vector.load %arg13[%c0_156, %c0_157] : memref<128x64xf32, #tpu.memory_space<vmem>>, vector<128x64xf32>
    %cst_158 = arith.constant dense<0.000000e+00> : vector<8x64xf32>
    %309 = tpu.matmul %307, %308, %cst_158 {dimension_numbers = #tpu.dot_dimension_numbers<[1], [0], [0], [1], [0, 0, 1, 1], [], []>} : vector<8x128xf32>, vector<128x64xf32>, vector<8x64xf32> -> vector<8x64xf32>
    %c0_159 = arith.constant 0 : index
    %c0_160 = arith.constant 0 : index
    %310 = vector.load %arg14[%c0_159, %c0_160] : memref<1x64xf32, #tpu.memory_space<vmem>>, vector<1x64xf32>
    %311 = vector.broadcast %310 : vector<1x64xf32> to vector<8x64xf32>
    %312 = arith.addf %309, %311 : vector<8x64xf32>
    %313 = arith.addf %102, %312 : vector<8x64xf32>
    %c0_161 = arith.constant 0 : index
    %c0_162 = arith.constant 0 : index
    %c0_163 = arith.constant 0 : index
    %314 = vector.load %arg15[%c0_161, %c0_162, %c0_163] : memref<1x8x64xf32, #tpu.memory_space<vmem>>, vector<1x8x64xf32>
    %315 = vector.shape_cast %314 : vector<1x8x64xf32> to vector<8x64xf32>
    %316 = vector.shape_cast %313 : vector<8x64xf32> to vector<1x8x64xf32>
    tpu.vector_store %arg15[%c0_161, %c0_162, %c0_163], %316 {strides = array<i32>} : memref<1x8x64xf32, #tpu.memory_space<vmem>>, vector<1x8x64xf32>,
    return
  }
  func.func @transform_0(%arg0: i32) -> (i32, i32, i32) {
    %c0_i32 = arith.constant 0 : i32
    %c0_i32_0 = arith.constant 0 : i32
    %c0_i32_1 = arith.constant 0 : i32
    return %arg0, %c0_i32, %c0_i32_0 : i32, i32, i32
  }
  func.func @transform_1(%arg0: i32) -> (i32, i32) {
    %c0_i32 = arith.constant 0 : i32
    %c0_i32_0 = arith.constant 0 : i32
    %c0_i32_1 = arith.constant 0 : i32
    return %c0_i32, %c0_i32_0 : i32, i32
  }
  func.func @transform_2(%arg0: i32) -> (i32, i32) {
    %c0_i32 = arith.constant 0 : i32
    %c0_i32_0 = arith.constant 0 : i32
    %c0_i32_1 = arith.constant 0 : i32
    return %c0_i32, %c0_i32_0 : i32, i32
  }
  func.func @transform_3(%arg0: i32) -> (i32, i32) {
    %c0_i32 = arith.constant 0 : i32
    %c0_i32_0 = arith.constant 0 : i32
    %c0_i32_1 = arith.constant 0 : i32
    return %c0_i32, %c0_i32_0 : i32, i32
  }
  func.func @transform_4(%arg0: i32) -> (i32, i32) {
    %c0_i32 = arith.constant 0 : i32
    %c0_i32_0 = arith.constant 0 : i32
    %c0_i32_1 = arith.constant 0 : i32
    return %c0_i32, %c0_i32_0 : i32, i32
  }
  func.func @transform_5(%arg0: i32) -> (i32, i32) {
    %c0_i32 = arith.constant 0 : i32
    %c0_i32_0 = arith.constant 0 : i32
    %c0_i32_1 = arith.constant 0 : i32
    return %c0_i32, %c0_i32_0 : i32, i32
  }
  func.func @transform_6(%arg0: i32) -> (i32, i32) {
    %c0_i32 = arith.constant 0 : i32
    %c0_i32_0 = arith.constant 0 : i32
    %c0_i32_1 = arith.constant 0 : i32
    return %c0_i32, %c0_i32_0 : i32, i32
  }
  func.func @transform_7(%arg0: i32) -> (i32, i32) {
    %c0_i32 = arith.constant 0 : i32
    %c0_i32_0 = arith.constant 0 : i32
    %c0_i32_1 = arith.constant 0 : i32
    return %c0_i32, %c0_i32_0 : i32, i32
  }
  func.func @transform_8(%arg0: i32) -> (i32, i32) {
    %c0_i32 = arith.constant 0 : i32
    %c0_i32_0 = arith.constant 0 : i32
    %c0_i32_1 = arith.constant 0 : i32
    return %c0_i32, %c0_i32_0 : i32, i32
  }
  func.func @transform_9(%arg0: i32) -> (i32, i32) {
    %c0_i32 = arith.constant 0 : i32
    %c0_i32_0 = arith.constant 0 : i32
    %c0_i32_1 = arith.constant 0 : i32
    return %c0_i32, %c0_i32_0 : i32, i32
  }
  func.func @transform_10(%arg0: i32) -> (i32, i32) {
    %c0_i32 = arith.constant 0 : i32
    %c0_i32_0 = arith.constant 0 : i32
    %c0_i32_1 = arith.constant 0 : i32
    return %c0_i32, %c0_i32_0 : i32, i32
  }
  func.func @transform_11(%arg0: i32) -> (i32, i32) {
    %c0_i32 = arith.constant 0 : i32
    %c0_i32_0 = arith.constant 0 : i32
    %c0_i32_1 = arith.constant 0 : i32
    return %c0_i32, %c0_i32_0 : i32, i32
  }
  func.func @transform_12(%arg0: i32) -> (i32, i32) {
    %c0_i32 = arith.constant 0 : i32
    %c0_i32_0 = arith.constant 0 : i32
    %c0_i32_1 = arith.constant 0 : i32
    return %c0_i32, %c0_i32_0 : i32, i32
  }
  func.func @transform_13(%arg0: i32) -> (i32, i32) {
    %c0_i32 = arith.constant 0 : i32
    %c0_i32_0 = arith.constant 0 : i32
    %c0_i32_1 = arith.constant 0 : i32
    return %c0_i32, %c0_i32_0 : i32, i32
  }
  func.func @transform_14(%arg0: i32) -> (i32, i32, i32) {
    %c0_i32 = arith.constant 0 : i32
    %c0_i32_0 = arith.constant 0 : i32
    %c0_i32_1 = arith.constant 0 : i32
    return %arg0, %c0_i32, %c0_i32_0 : i32, i32, i32
  }
}

module attributes {stable_mosaic.version = 11 : i64} {
  func.func @_dsp_kernel(%arg0: memref<18x32xf32, #tpu.memory_space<vmem>>, %arg1: memref<18x32xf32, #tpu.memory_space<vmem>>, %arg2: memref<18x51xf32, #tpu.memory_space<vmem>>, %arg3: memref<32x34xf32, #tpu.memory_space<vmem>>, %arg4: memref<34x32xf32, #tpu.memory_space<vmem>>, %arg5: memref<18x32xf32, #tpu.memory_space<vmem>>) attributes {dimension_semantics = [], scalar_prefetch = 0 : i64, scratch_operands = 0 : i64, tpu.core_type = #tpu.core_type<tc>} {
    %c0 = arith.constant 0 : index
    %c0_0 = arith.constant 0 : index
    %0 = vector.load %arg0[%c0, %c0_0] : memref<18x32xf32, #tpu.memory_space<vmem>>, vector<18x32xf32>
    %1 = math.absf %0 : vector<18x32xf32>
    %cst = arith.constant 1.000000e+20 : f32
    %2 = vector.broadcast %cst : f32 to vector<18x32xf32>
    %3 = arith.cmpf oge, %1, %2 : vector<18x32xf32>
    %cst_1 = arith.constant 1.000000e+00 : f32
    %4 = vector.broadcast %cst_1 : f32 to vector<18x32xf32>
    %5 = arith.select %3, %4, %0 : vector<18x32xi1>, vector<18x32xf32>
    %cst_2 = arith.constant 3.14159274 : f32
    %6 = vector.broadcast %cst_2 : f32 to vector<18x32xf32>
    %7 = arith.mulf %6, %5 : vector<18x32xf32>
    %cst_3 = arith.constant 0.000000e+00 : f32
    %8 = vector.broadcast %cst_3 : f32 to vector<18x32xf32>
    %9 = arith.cmpf oeq, %5, %8 : vector<18x32xf32>
    %cst_4 = arith.constant 1.000000e+00 : f32
    %10 = vector.broadcast %cst_4 : f32 to vector<18x32xf32>
    %11 = arith.select %9, %10, %7 : vector<18x32xi1>, vector<18x32xf32>
    %cst_5 = arith.constant 0.000000e+00 : f32
    %12 = vector.broadcast %cst_5 : f32 to vector<18x32xf32>
    %13 = arith.cmpf oeq, %5, %12 : vector<18x32xf32>
    %14 = math.sin %7 : vector<18x32xf32>
    %15 = arith.divf %14, %11 : vector<18x32xf32>
    %cst_6 = arith.constant 1.000000e+00 : f32
    %16 = vector.broadcast %cst_6 : f32 to vector<18x32xf32>
    %17 = arith.select %13, %16, %15 : vector<18x32xi1>, vector<18x32xf32>
    %cst_7 = arith.constant 0.000000e+00 : f32
    %18 = vector.broadcast %cst_7 : f32 to vector<18x32xf32>
    %19 = arith.select %3, %18, %17 : vector<18x32xi1>, vector<18x32xf32>
    %c0_8 = arith.constant 0 : index
    %c0_9 = arith.constant 0 : index
    %20 = vector.load %arg1[%c0_8, %c0_9] : memref<18x32xf32, #tpu.memory_space<vmem>>, vector<18x32xf32>
    %21 = tpu.concatenate %19, %20 in 0 : vector<18x32xf32>, vector<18x32xf32> -> vector<36x32xf32>
    %c0_10 = arith.constant 0 : index
    %c0_11 = arith.constant 0 : index
    %22 = vector.load %arg3[%c0_10, %c0_11] : memref<32x34xf32, #tpu.memory_space<vmem>>, vector<32x34xf32>
    %cst_12 = arith.constant dense<0.000000e+00> : vector<36x34xf32>
    %23 = tpu.matmul %21, %22, %cst_12 {dimension_numbers = #tpu.dot_dimension_numbers<[1], [0], [0], [1], [0, 0, 1, 1], [], []>} : vector<36x32xf32>, vector<32x34xf32>, vector<36x34xf32> -> vector<36x34xf32>
    %24 = vector.extract_strided_slice %23 {offsets = [0, 0], sizes = [18, 17], strides = [1, 1]} : vector<36x34xf32> to vector<18x17xf32>
    %25 = vector.extract_strided_slice %23 {offsets = [0, 17], sizes = [18, 17], strides = [1, 1]} : vector<36x34xf32> to vector<18x17xf32>
    %26 = vector.extract_strided_slice %23 {offsets = [18, 0], sizes = [18, 17], strides = [1, 1]} : vector<36x34xf32> to vector<18x17xf32>
    %27 = vector.extract_strided_slice %23 {offsets = [18, 17], sizes = [18, 17], strides = [1, 1]} : vector<36x34xf32> to vector<18x17xf32>
    %c0_13 = arith.constant 0 : index
    %c0_14 = arith.constant 0 : index
    %28 = vector.load %arg2[%c0_13, %c0_14] : memref<18x51xf32, #tpu.memory_space<vmem>>, vector<18x51xf32>
    %29 = vector.extract_strided_slice %28 {offsets = [0, 0], sizes = [18, 17], strides = [1, 1]} : vector<18x51xf32> to vector<18x17xf32>
    %30 = math.exp %29 : vector<18x17xf32>
    %31 = vector.extract_strided_slice %28 {offsets = [0, 17], sizes = [18, 17], strides = [1, 1]} : vector<18x51xf32> to vector<18x17xf32>
    %cst_15 = arith.constant 3.14159274 : f32
    %32 = vector.broadcast %cst_15 : f32 to vector<18x17xf32>
    %33 = arith.mulf %32, %31 : vector<18x17xf32>
    %34 = math.cos %33 : vector<18x17xf32>
    %35 = arith.mulf %30, %34 : vector<18x17xf32>
    %36 = math.sin %33 : vector<18x17xf32>
    %37 = arith.mulf %30, %36 : vector<18x17xf32>
    %38 = vector.extract_strided_slice %28 {offsets = [0, 34], sizes = [18, 17], strides = [1, 1]} : vector<18x51xf32> to vector<18x17xf32>
    %cst_16 = arith.constant 4.85203028 : f32
    %39 = vector.broadcast %cst_16 : f32 to vector<18x17xf32>
    %40 = arith.subf %38, %39 : vector<18x17xf32>
    %41 = math.exp %40 : vector<18x17xf32>
    %42 = arith.mulf %24, %35 : vector<18x17xf32>
    %43 = arith.mulf %25, %37 : vector<18x17xf32>
    %44 = arith.subf %42, %43 : vector<18x17xf32>
    %45 = arith.mulf %26, %41 : vector<18x17xf32>
    %46 = arith.addf %44, %45 : vector<18x17xf32>
    %47 = arith.mulf %24, %37 : vector<18x17xf32>
    %48 = arith.mulf %25, %35 : vector<18x17xf32>
    %49 = arith.addf %47, %48 : vector<18x17xf32>
    %50 = arith.mulf %27, %41 : vector<18x17xf32>
    %51 = arith.addf %49, %50 : vector<18x17xf32>
    %52 = tpu.concatenate %46, %51 in 1 : vector<18x17xf32>, vector<18x17xf32> -> vector<18x34xf32>
    %c0_17 = arith.constant 0 : index
    %c0_18 = arith.constant 0 : index
    %53 = vector.load %arg4[%c0_17, %c0_18] : memref<34x32xf32, #tpu.memory_space<vmem>>, vector<34x32xf32>
    %cst_19 = arith.constant dense<0.000000e+00> : vector<18x32xf32>
    %54 = tpu.matmul %52, %53, %cst_19 {dimension_numbers = #tpu.dot_dimension_numbers<[1], [0], [0], [1], [0, 0, 1, 1], [], []>} : vector<18x34xf32>, vector<34x32xf32>, vector<18x32xf32> -> vector<18x32xf32>
    %c0_20 = arith.constant 0 : index
    %c0_21 = arith.constant 0 : index
    %55 = vector.load %arg5[%c0_20, %c0_21] : memref<18x32xf32, #tpu.memory_space<vmem>>, vector<18x32xf32>
    tpu.vector_store %arg5[%c0_20, %c0_21], %54 {strides = array<i32>} : memref<18x32xf32, #tpu.memory_space<vmem>>, vector<18x32xf32>,
    return
  }
}

</mosaic_0001>

<llo_original>
// kernel: comb_sub_fast_forward.10
$region0: #{comb_sub_fast_forward.10}
  #allocation0 [shape = 'u32[]', space=smem, size = 0x4, offset = 0x4, fixed_abs, tag = 'smem constant byte address 0x4 - core index']
  #allocation1 [shape = 'u32[144,128]{1,0:T(1,128)}', space=vmem, size = 0x12000, scoped, tag = 'internal scratch']
  %s0 = inlined_call_operand.vmem [shape: f32[16,64], index: 0, kind: input, shape index: {}]
  %s1 = inlined_call_operand.vmem [shape: f32[1,64], index: 1, kind: input, shape index: {}]
  %s2 = inlined_call_operand.vmem [shape: f32[1,64], index: 2, kind: input, shape index: {}]
  %s3 = inlined_call_operand.vmem [shape: f32[64,51], index: 3, kind: input, shape index: {}]
  %s4 = inlined_call_operand.vmem [shape: f32[1,51], index: 4, kind: input, shape index: {}]
  %s5 = inlined_call_operand.hbm [shape: f32[16,64], index: 5, kind: output, shape index: {0}]
  %s6 = inlined_call_operand.vmem [shape: f32[16,51], index: 6, kind: output, shape index: {1}]
  %7 = xla_tuple %s5, %s6
  %s8 = sld [smem:[#allocation0]]
  $region38: #{comb_sub_fast_forward.10} parent=0
    _
  %s10 = ssub.s32 1, %s8
  %s11 = scalar_select 0, %s10, %s8
  $region1: #{comb_sub_fast_forward.10} parent=0
    #allocation2 [shape = 'u8[8192]{0}', space=vmem, size = 0x2000, scoped, tag = 'output window, operand 0, single buffered']
    #allocation3 [shape = 's32[1]{0}', space=sflag, size = 0x4, scoped, tag = 'scoped memory for comb_sub_fast_forward.10']
    %12 = vsyncpa [#allocation3], 0
    // Predicated region
    $region2: #{comb_sub_fast_forward.10} parent=1 // pred_check
      _
    $region3: #{comb_sub_fast_forward.10} parent=1 // pred_check_branch
      %14 = sbr.rel (0) target = $region5
    $region4: #{comb_sub_fast_forward.10} parent=1 // pred_region
      _
    $region5: #{comb_sub_fast_forward.10} parent=1 // pred_fallthru
      _
    // Predicated region
    $region6: #{comb_sub_fast_forward.10} parent=1 // pred_check
      _
    $region7: #{comb_sub_fast_forward.10} parent=1 // pred_check_branch
      %16 = sbr.rel (0) target = $region9
    $region8: #{comb_sub_fast_forward.10} parent=1 // pred_region
      _
    $region9: #{comb_sub_fast_forward.10} parent=1 // pred_fallthru
      _
    // Predicated region
    $region10: #{comb_sub_fast_forward.10} parent=1 // pred_check
      _
    $region11: #{comb_sub_fast_forward.10} parent=1 // pred_check_branch
      %18 = sbr.rel (0) target = $region13
    $region12: #{comb_sub_fast_forward.10} parent=1 // pred_region
      _
    $region13: #{comb_sub_fast_forward.10} parent=1 // pred_fallthru
      _
    // Predicated region
    $region14: #{comb_sub_fast_forward.10} parent=1 // pred_check
      _
    $region15: #{comb_sub_fast_forward.10} parent=1 // pred_check_branch
      %20 = sbr.rel (0) target = $region17
    $region16: #{comb_sub_fast_forward.10} parent=1 // pred_region
      _
    $region17: #{comb_sub_fast_forward.10} parent=1 // pred_fallthru
      _
    // Predicated region
    $region18: #{comb_sub_fast_forward.10} parent=1 // pred_check
      _
    $region19: #{comb_sub_fast_forward.10} parent=1 // pred_check_branch
      %22 = sbr.rel (0) target = $region21
    $region20: #{comb_sub_fast_forward.10} parent=1 // pred_region
      _
    $region21: #{comb_sub_fast_forward.10} parent=1 // pred_fallthru
      _
    %v23 = vld [vmem:[%s0] sm:$0xff]
    %v24 = vld [vmem:[%s0 + $0x8] sm:$0xff]
    %v25 = vld [vmem:[%s1] sm:$0x1]
    %v26 = vld [vmem:[%s2] sm:$0x1]
    %vm27 = vcmask 523264
    %v28 = vsel %vm27, %v23, 0.0
    %29 = vadd.xlane.f32.xlu0 %v28
    %v30 = vpop.xlane.xlu0 %29
    %v31 = vsel %vm27, %v24, 0.0
    %32 = vadd.xlane.f32.xlu0 %v31
    %v33 = vpop.xlane.xlu0 %32
    %v34 = vrcp.pop 64.0
    %v35 = vmul.f32 %v30, %v34
    %v36 = vmul.f32 %v33, %v34
    %v37 = vsub.f32 %v23, %v35
    %v38 = vsub.f32 %v24, %v36
    %v39 = vmul.f32 %v37, %v37
    %v40 = vmul.f32 %v38, %v38
    %v41 = vsel %vm27, %v39, 0.0
    %42 = vadd.xlane.f32.xlu0 %v41
    %v43 = vpop.xlane.xlu0 %42
    %v44 = vsel %vm27, %v40, 0.0
    %45 = vadd.xlane.f32.xlu0 %v44
    %v46 = vpop.xlane.xlu0 %45
    %v47 = vmul.f32 %v43, %v34
    %v48 = vmul.f32 %v46, %v34
    %v49 = vadd.f32 %v47, 1e-05
    %v50 = vadd.f32 %v48, 1e-05
    %v51 = vrsqrt.pop %v49
    %v52 = vrsqrt.pop %v50
    %v53 = vmul.f32 %v37, %v51
    %v54 = vmul.f32 %v38, %v52
    %v56 = vlaneseq
    %v57 = vshrl.u32 %v56, 7
    %v58 = vsub.s32 0, %v57
    %v59 = vrot.slane %v25, %v58
    %v61 = vmul.f32 %v53, %v59
    %v62 = vmul.f32 %v54, %v59
    %v64 = vlaneseq
    %v65 = vshrl.u32 %v64, 7
    %v66 = vsub.s32 0, %v65
    %v67 = vrot.slane %v26, %v66
    %v69 = vadd.f32 %v61, %v67
    %v70 = vadd.f32 %v62, %v67
    %71 = vst.msk [vmem:[#allocation2] sm:$0xff] %vm27, %v69
    %72 = vst.msk [vmem:[#allocation2 + $0x8] sm:$0xff] %vm27, %v70
    %v73 = vld [vmem:[%s3] sm:$0xff]
    %v74 = vld [vmem:[%s3 + $0x8] sm:$0xff]
    %v75 = vld [vmem:[%s3 + $0x10] sm:$0xff]
    %v76 = vld [vmem:[%s3 + $0x18] sm:$0xff]
    %v77 = vld [vmem:[%s3 + $0x20] sm:$0xff]
    %v78 = vld [vmem:[%s3 + $0x28] sm:$0xff]
    %v79 = vld [vmem:[%s3 + $0x30] sm:$0xff]
    %v80 = vld [vmem:[%s3 + $0x38] sm:$0xff]
    %v81 = vld [vmem:[%s4] sm:$0x1]
    %v83 = vlaneseq
    %v84 = vshrl.u32 %v83, 7
    %v85 = vsub.s32 0, %v84
    %v86 = vrot.slane %v81, %v85
    %v89 = vsel %vm27, %v69, 0
    %v92 = vsel %vm27, %v70, 0
    %94 = vmatprep.subr.mxu0 0.0
    %95 = vmatpush1.msra.mxu0 0.0
    %96 = vmatprep.subr.mxu0 0.0
    %97 = vmatpush1.msra.mxu0 0.0
    %98 = vmatprep.subr.mxu0 0.0
    %99 = vmatpush1.msra.mxu0 0.0
    %100 = vmatprep.subr.mxu0 0.0
    %101 = vmatpush1.msra.mxu0 0.0
    %102 = vmatprep.subr.mxu0 0.0
    %103 = vmatpush1.msra.mxu0 0.0
    %104 = vmatprep.subr.mxu0 0.0
    %105 = vmatpush1.msra.mxu0 0.0
    %106 = vmatprep.subr.mxu0 0.0
    %107 = vmatpush1.msra.mxu0 0.0
    %108 = vmatprep.subr.mxu0 0.0
    %109 = vmatpush1.msra.mxu0 0.0
    %110 = vmatprep.subr.mxu0 0.0
    %111 = vmatpush1.msra.mxu0 %v80
    %112 = vmatprep.subr.mxu0 0.0
    %113 = vmatpush1.msra.mxu0 %v79
    %114 = vmatprep.subr.mxu0 0.0
    %115 = vmatpush1.msra.mxu0 %v78
    %116 = vmatprep.subr.mxu0 0.0
    %117 = vmatpush1.msra.mxu0 %v77
    %118 = vmatprep.subr.mxu0 0.0
    %119 = vmatpush1.msra.mxu0 %v76
    %120 = vmatprep.subr.mxu0 0.0
    %121 = vmatpush1.msra.mxu0 %v75
    %122 = vmatprep.subr.mxu0 0.0
    %123 = vmatpush1.msra.mxu0 %v74
    %124 = vmatprep.subr.mxu0 0.0
    %125 = vmatpush1.msra.mxu0 %v73
    %126 = vmatprep.subr.mxu0 0.0
    %127 = vmatpush2.msra.mxu0 0.0
    %128 = vmatprep.subr.mxu0 0.0
    %129 = vmatpush2.msra.mxu0 0.0
    %130 = vmatprep.subr.mxu0 0.0
    %131 = vmatpush2.msra.mxu0 0.0
    %132 = vmatprep.subr.mxu0 0.0
    %133 = vmatpush2.msra.mxu0 0.0
    %134 = vmatprep.subr.mxu0 0.0
    %135 = vmatpush2.msra.mxu0 0.0
    %136 = vmatprep.subr.mxu0 0.0
    %137 = vmatpush2.msra.mxu0 0.0
    %138 = vmatprep.subr.mxu0 0.0
    %139 = vmatpush2.msra.mxu0 0.0
    %140 = vmatprep.subr.mxu0 0.0
    %141 = vmatpush2.msra.mxu0 0.0
    %142 = vmatprep.subr.mxu0 0.0
    %143 = vmatpush2.msra.mxu0 0.0
    %144 = vmatprep.subr.mxu0 0.0
    %145 = vmatpush2.msra.mxu0 0.0
    %146 = vmatprep.subr.mxu0 0.0
    %147 = vmatpush2.msra.mxu0 0.0
    %148 = vmatprep.subr.mxu0 0.0
    %149 = vmatpush2.msra.mxu0 0.0
    %150 = vmatprep.subr.mxu0 0.0
    %151 = vmatpush2.msra.mxu0 0.0
    %152 = vmatprep.subr.mxu0 0.0
    %153 = vmatpush2.msra.mxu0 0.0
    %154 = vmatprep.subr.mxu0 0.0
    %155 = vmatpush2.msra.mxu0 0.0
    %156 = vmatprep.subr.mxu0 0.0
    %157 = vmatpush2.msra.mxu0 0.0
    %158 = vmatprep.mubr.f32.mxu0 0.0
    %159 = vmatmul.mubr.f32.gmra.mxu0 %v89
    %v160 = vpop.f32.mrf.mxu0
    %v161 = vadd.f32 %v86, %v160
    %v162 = vpop.f32.mrf.mxu0
    %163 = vmatprep.mubr.f32.mxu0 0.0
    %164 = vmatmul.mubr.f32.gmra.mxu0 %v92
    %v165 = vpop.f32.mrf.mxu0
    %v166 = vadd.f32 %v86, %v165
    %v167 = vpop.f32.mrf.mxu0
    %168 = vdwg.mxu0
    %vm169 = vcmask 416768
    %170 = vst.msk [vmem:[%s6] sm:$0xff] %vm169, %v161
    %171 = vst.msk [vmem:[%s6 + $0x8] sm:$0xff] %vm169, %v166
    // Predicated region
    $region22: #{comb_sub_fast_forward.10} parent=1 // pred_check
      _
    $region23: #{comb_sub_fast_forward.10} parent=1 // pred_check_branch
      %173 = sbr.rel (0) target = $region25
    $region24: #{comb_sub_fast_forward.10} parent=1 // pred_region
      %s175 = ssub.s32 256, 256
      %176 = vsyncadd [#allocation3], %s175
      %s177 = sshll.u32 [#allocation2], 4
      %s178 = int_to_ptr.vmem [resolvable:$true] %s177
      %183 = dma.vmem_to_hbm [thread:$0]  %s178, 256, %s5, [#allocation3], 128, 128, 8
    $region25: #{comb_sub_fast_forward.10} parent=1 // pred_fallthru
      _
    // Predicated region
    $region26: #{comb_sub_fast_forward.10} parent=1 // pred_check
      _
    $region27: #{comb_sub_fast_forward.10} parent=1 // pred_check_branch
      %185 = sbr.rel (0) target = $region29
    $region28: #{comb_sub_fast_forward.10} parent=1 // pred_region
      _
    $region29: #{comb_sub_fast_forward.10} parent=1 // pred_fallthru
      _
    // Predicated region
    $region30: #{comb_sub_fast_forward.10} parent=1 // pred_check
      _
    $region31: #{comb_sub_fast_forward.10} parent=1 // pred_check_branch
      %187 = sbr.rel (0) target = $region33
    $region32: #{comb_sub_fast_forward.10} parent=1 // pred_region
      %188 = dma.done [#allocation3], 256
    $region33: #{comb_sub_fast_forward.10} parent=1 // pred_fallthru
      _
    // Predicated region
    $region34: #{comb_sub_fast_forward.10} parent=1 // pred_check
      _
    $region35: #{comb_sub_fast_forward.10} parent=1 // pred_check_branch
      %190 = sbr.rel (0) target = $region37
    $region36: #{comb_sub_fast_forward.10} parent=1 // pred_region
      _
    $region37: #{comb_sub_fast_forward.10} parent=1 // pred_fallthru
      _
    %191 = vsyncpa [#allocation3], 1

// kernel: comb_sub_fast_forward.6
$region0: #{comb_sub_fast_forward.6}
  #allocation0 [shape = 'u32[]', space=smem, size = 0x4, offset = 0x4, fixed_abs, tag = 'smem constant byte address 0x4 - core index']
  #allocation1 [shape = 'u32[144,128]{1,0:T(1,128)}', space=vmem, size = 0x12000, scoped, tag = 'internal scratch']
  #allocation2 [shape = 'f32[10,32]{1,0:T(8,128)}', space=vmem, size = 0x2000, scoped, tag = 'scratch operand']
  #allocation3 [shape = 'f32[10,64]{1,0:T(8,128)}', space=vmem, size = 0x2000, scoped, tag = 'scratch operand']
  %s0 = inlined_call_operand.vmem [shape: f32[2,8,32], index: 0, kind: input, shape index: {}]
  %s1 = inlined_call_operand.vmem [shape: f32[96,64], index: 1, kind: input, shape index: {}]
  %s2 = inlined_call_operand.vmem [shape: f32[1,64], index: 2, kind: input, shape index: {}]
  %s3 = inlined_call_operand.vmem [shape: f32[1,64], index: 3, kind: input, shape index: {}]
  %s4 = inlined_call_operand.vmem [shape: f32[1,64], index: 4, kind: input, shape index: {}]
  %s5 = inlined_call_operand.vmem [shape: f32[192,64], index: 5, kind: input, shape index: {}]
  %s6 = inlined_call_operand.vmem [shape: f32[1,64], index: 6, kind: input, shape index: {}]
  %s7 = inlined_call_operand.vmem [shape: f32[2,8,3], index: 7, kind: input, shape index: {}]
  %s8 = inlined_call_operand.vmem [shape: f32[3,64], index: 8, kind: input, shape index: {}]
  %s9 = inlined_call_operand.vmem [shape: f32[1,64], index: 9, kind: input, shape index: {}]
  %s10 = inlined_call_operand.vmem [shape: f32[2,8,64], index: 10, kind: output, shape index: {}]
  %s11 = sld [smem:[#allocation0]]
  $region73: #{comb_sub_fast_forward.6} parent=0
    _
  %s13 = ssub.s32 1, %s11
  %s14 = scalar_select 0, %s13, %s11
  loop: start=0, step=1, limit=4
  $region2: #{comb_sub_fast_forward.6} parent=0 // loop_pre_header
    _
  $region3: #{comb_sub_fast_forward.6} parent=0 // loop_header
    %s16 = sphi 0, %s20
    %p17 = scmp.ge.s32.totalorder %s16, 4
    %s26 = sphi 0, %s28
    %s29 = sphi 0, %s26
    %s30 = sphi 0, %s29
    %s46 = sphi 0, %s30
    %s50 = sphi 0, %s50
    %s52 = sphi 0, %s50
    %s53 = sphi 0, %s52
    %s67 = sphi 0, %s53
    %s71 = sphi 0, %s71
    %s73 = sphi 0, %s71
    %s74 = sphi 0, %s73
    %s88 = sphi 0, %s74
    %s92 = sphi 0, %s92
    %s94 = sphi 0, %s92
    %s95 = sphi 0, %s94
    %s109 = sphi 0, %s95
    %s113 = sphi 0, %s113
    %s115 = sphi 0, %s113
    %s116 = sphi 0, %s115
    %s130 = sphi 0, %s116
    %s134 = sphi 0, %s134
    %s136 = sphi 0, %s134
    %s137 = sphi 0, %s136
    %s151 = sphi 0, %s137
    %s155 = sphi 0, %s155
    %s157 = sphi 0, %s155
    %s158 = sphi 0, %s157
    %s172 = sphi 0, %s158
    %s178 = sphi 0, %s180
    %s181 = sphi 0, %s178
    %s182 = sphi 0, %s181
    %s198 = sphi 0, %s182
    %s202 = sphi 0, %s202
    %s204 = sphi 0, %s202
    %s205 = sphi 0, %s204
    %s219 = sphi 0, %s205
    %s223 = sphi 0, %s223
    %s225 = sphi 0, %s223
    %s226 = sphi 0, %s225
    %s240 = sphi 0, %s226
    %s246 = sphi 0, %s248
    %s249 = sphi 0, %s246
    %s250 = sphi 0, %s249
    %s266 = sphi 0, %s250
  $region4: #{comb_sub_fast_forward.6} parent=0 // loop_header_branch
    %19 = sbr.rel (%p17) target = $region8
  $region5: #{comb_sub_fast_forward.6} parent=0 // loop_body
    %s21 = ssub.s32 %s16, 1
    %s22 = ssub.s32 %s16, 2
    %s23 = sadd.s32 %s16, 1
    %s24 = ssub.s32 %s16, %s23
    %p25 = scmp.eq.s32.totalorder %s24, 0
    %s27 = sadd.s32 %s26, 1
    %s28 = scalar_select %p25, %s26, %s27
    %p31 = pneg %p25
    %p32 = scmp.eq.s32.totalorder %s16, 1
    %p33 = por %p31, %p32
    %p34 = scmp.ne.s32.totalorder %s26, %s29
    %p35 = scmp.eq.s32.totalorder %s16, 0
    %p36 = por %p34, %p35
    %p37 = scmp.ne.s32.totalorder %s26, %s29
    %p38 = scmp.eq.s32.totalorder %s21, 1
    %p39 = por %p37, %p38
    %p40 = scmp.ne.s32.totalorder %s29, %s30
    %p41 = scmp.eq.s32.totalorder %s21, 0
    %p42 = por %p40, %p41
    %p43 = scmp.ne.s32.totalorder %s29, %s30
    %p44 = scmp.eq.s32.totalorder %s22, 1
    %p45 = por %p43, %p44
    %p47 = scmp.ne.s32.totalorder %s30, %s46
    %p48 = scmp.eq.s32.totalorder %s22, 0
    %p49 = por %p47, %p48
    %s51 = sadd.s32 %s50, 1
    %p54 = scmp.eq.s32.totalorder %s16, 1
    %p55 = scmp.ne.s32.totalorder %s50, %s52
    %p56 = scmp.eq.s32.totalorder %s16, 0
    %p57 = por %p55, %p56
    %p58 = scmp.ne.s32.totalorder %s50, %s52
    %p59 = scmp.eq.s32.totalorder %s21, 1
    %p60 = por %p58, %p59
    %p61 = scmp.ne.s32.totalorder %s52, %s53
    %p62 = scmp.eq.s32.totalorder %s21, 0
    %p63 = por %p61, %p62
    %p64 = scmp.ne.s32.totalorder %s52, %s53
    %p65 = scmp.eq.s32.totalorder %s22, 1
    %p66 = por %p64, %p65
    %p68 = scmp.ne.s32.totalorder %s53, %s67
    %p69 = scmp.eq.s32.totalorder %s22, 0
    %p70 = por %p68, %p69
    %s72 = sadd.s32 %s71, 1
    %p75 = scmp.eq.s32.totalorder %s16, 1
    %p76 = scmp.ne.s32.totalorder %s71, %s73
    %p77 = scmp.eq.s32.totalorder %s16, 0
    %p78 = por %p76, %p77
    %p79 = scmp.ne.s32.totalorder %s71, %s73
    %p80 = scmp.eq.s32.totalorder %s21, 1
    %p81 = por %p79, %p80
    %p82 = scmp.ne.s32.totalorder %s73, %s74
    %p83 = scmp.eq.s32.totalorder %s21, 0
    %p84 = por %p82, %p83
    %p85 = scmp.ne.s32.totalorder %s73, %s74
    %p86 = scmp.eq.s32.totalorder %s22, 1
    %p87 = por %p85, %p86
    %p89 = scmp.ne.s32.totalorder %s74, %s88
    %p90 = scmp.eq.s32.totalorder %s22, 0
    %p91 = por %p89, %p90
    %s93 = sadd.s32 %s92, 1
    %p96 = scmp.eq.s32.totalorder %s16, 1
    %p97 = scmp.ne.s32.totalorder %s92, %s94
    %p98 = scmp.eq.s32.totalorder %s16, 0
    %p99 = por %p97, %p98
    %p100 = scmp.ne.s32.totalorder %s92, %s94
    %p101 = scmp.eq.s32.totalorder %s21, 1
    %p102 = por %p100, %p101
    %p103 = scmp.ne.s32.totalorder %s94, %s95
    %p104 = scmp.eq.s32.totalorder %s21, 0
    %p105 = por %p103, %p104
    %p106 = scmp.ne.s32.totalorder %s94, %s95
    %p107 = scmp.eq.s32.totalorder %s22, 1
    %p108 = por %p106, %p107
    %p110 = scmp.ne.s32.totalorder %s95, %s109
    %p111 = scmp.eq.s32.totalorder %s22, 0
    %p112 = por %p110, %p111
    %s114 = sadd.s32 %s113, 1
    %p117 = scmp.eq.s32.totalorder %s16, 1
    %p118 = scmp.ne.s32.totalorder %s113, %s115
    %p119 = scmp.eq.s32.totalorder %s16, 0
    %p120 = por %p118, %p119
    %p121 = scmp.ne.s32.totalorder %s113, %s115
    %p122 = scmp.eq.s32.totalorder %s21, 1
    %p123 = por %p121, %p122
    %p124 = scmp.ne.s32.totalorder %s115, %s116
    %p125 = scmp.eq.s32.totalorder %s21, 0
    %p126 = por %p124, %p125
    %p127 = scmp.ne.s32.totalorder %s115, %s116
    %p128 = scmp.eq.s32.totalorder %s22, 1
    %p129 = por %p127, %p128
    %p131 = scmp.ne.s32.totalorder %s116, %s130
    %p132 = scmp.eq.s32.totalorder %s22, 0
    %p133 = por %p131, %p132
    %s135 = sadd.s32 %s134, 1
    %p138 = scmp.eq.s32.totalorder %s16, 1
    %p139 = scmp.ne.s32.totalorder %s134, %s136
    %p140 = scmp.eq.s32.totalorder %s16, 0
    %p141 = por %p139, %p140
    %p142 = scmp.ne.s32.totalorder %s134, %s136
    %p143 = scmp.eq.s32.totalorder %s21, 1
    %p144 = por %p142, %p143
    %p145 = scmp.ne.s32.totalorder %s136, %s137
    %p146 = scmp.eq.s32.totalorder %s21, 0
    %p147 = por %p145, %p146
    %p148 = scmp.ne.s32.totalorder %s136, %s137
    %p149 = scmp.eq.s32.totalorder %s22, 1
    %p150 = por %p148, %p149
    %p152 = scmp.ne.s32.totalorder %s137, %s151
    %p153 = scmp.eq.s32.totalorder %s22, 0
    %p154 = por %p152, %p153
    %s156 = sadd.s32 %s155, 1
    %p159 = scmp.eq.s32.totalorder %s16, 1
    %p160 = scmp.ne.s32.totalorder %s155, %s157
    %p161 = scmp.eq.s32.totalorder %s16, 0
    %p162 = por %p160, %p161
    %p163 = scmp.ne.s32.totalorder %s155, %s157
    %p164 = scmp.eq.s32.totalorder %s21, 1
    %p165 = por %p163, %p164
    %p166 = scmp.ne.s32.totalorder %s157, %s158
    %p167 = scmp.eq.s32.totalorder %s21, 0
    %p168 = por %p166, %p167
    %p169 = scmp.ne.s32.totalorder %s157, %s158
    %p170 = scmp.eq.s32.totalorder %s22, 1
    %p171 = por %p169, %p170
    %p173 = scmp.ne.s32.totalorder %s158, %s172
    %p174 = scmp.eq.s32.totalorder %s22, 0
    %p175 = por %p173, %p174
    %s176 = ssub.s32 %s16, %s23
    %p177 = scmp.eq.s32.totalorder %s176, 0
    %s179 = sadd.s32 %s178, 1
    %s180 = scalar_select %p177, %s178, %s179
    %p183 = pneg %p177
    %p184 = scmp.eq.s32.totalorder %s16, 1
    %p185 = por %p183, %p184
    %p186 = scmp.ne.s32.totalorder %s178, %s181
    %p187 = scmp.eq.s32.totalorder %s16, 0
    %p188 = por %p186, %p187
    %p189 = scmp.ne.s32.totalorder %s178, %s181
    %p190 = scmp.eq.s32.totalorder %s21, 1
    %p191 = por %p189, %p190
    %p192 = scmp.ne.s32.totalorder %s181, %s182
    %p193 = scmp.eq.s32.totalorder %s21, 0
    %p194 = por %p192, %p193
    %p195 = scmp.ne.s32.totalorder %s181, %s182
    %p196 = scmp.eq.s32.totalorder %s22, 1
    %p197 = por %p195, %p196
    %p199 = scmp.ne.s32.totalorder %s182, %s198
    %p200 = scmp.eq.s32.totalorder %s22, 0
    %p201 = por %p199, %p200
    %s203 = sadd.s32 %s202, 1
    %p206 = scmp.eq.s32.totalorder %s16, 1
    %p207 = scmp.ne.s32.totalorder %s202, %s204
    %p208 = scmp.eq.s32.totalorder %s16, 0
    %p209 = por %p207, %p208
    %p210 = scmp.ne.s32.totalorder %s202, %s204
    %p211 = scmp.eq.s32.totalorder %s21, 1
    %p212 = por %p210, %p211
    %p213 = scmp.ne.s32.totalorder %s204, %s205
    %p214 = scmp.eq.s32.totalorder %s21, 0
    %p215 = por %p213, %p214
    %p216 = scmp.ne.s32.totalorder %s204, %s205
    %p217 = scmp.eq.s32.totalorder %s22, 1
    %p218 = por %p216, %p217
    %p220 = scmp.ne.s32.totalorder %s205, %s219
    %p221 = scmp.eq.s32.totalorder %s22, 0
    %p222 = por %p220, %p221
    %s224 = sadd.s32 %s223, 1
    %p227 = scmp.eq.s32.totalorder %s16, 1
    %p228 = scmp.ne.s32.totalorder %s223, %s225
    %p229 = scmp.eq.s32.totalorder %s16, 0
    %p230 = por %p228, %p229
    %p231 = scmp.ne.s32.totalorder %s223, %s225
    %p232 = scmp.eq.s32.totalorder %s21, 1
    %p233 = por %p231, %p232
    %p234 = scmp.ne.s32.totalorder %s225, %s226
    %p235 = scmp.eq.s32.totalorder %s21, 0
    %p236 = por %p234, %p235
    %p237 = scmp.ne.s32.totalorder %s225, %s226
    %p238 = scmp.eq.s32.totalorder %s22, 1
    %p239 = por %p237, %p238
    %p241 = scmp.ne.s32.totalorder %s226, %s240
    %p242 = scmp.eq.s32.totalorder %s22, 0
    %p243 = por %p241, %p242
    %s244 = ssub.s32 %s16, %s23
    %p245 = scmp.eq.s32.totalorder %s244, 0
    %s247 = sadd.s32 %s246, 1
    %s248 = scalar_select %p245, %s246, %s247
    %p251 = pneg %p245
    %p252 = scmp.eq.s32.totalorder %s16, 1
    %p253 = por %p251, %p252
    %p254 = scmp.ne.s32.totalorder %s246, %s249
    %p255 = scmp.eq.s32.totalorder %s16, 0
    %p256 = por %p254, %p255
    %p257 = scmp.ne.s32.totalorder %s246, %s249
    %p258 = scmp.eq.s32.totalorder %s21, 1
    %p259 = por %p257, %p258
    %p260 = scmp.ne.s32.totalorder %s249, %s250
    %p261 = scmp.eq.s32.totalorder %s21, 0
    %p262 = por %p260, %p261
    %p263 = scmp.ne.s32.totalorder %s249, %s250
    %p264 = scmp.eq.s32.totalorder %s22, 1
    %p265 = por %p263, %p264
    %p267 = scmp.ne.s32.totalorder %s250, %s266
    %p268 = scmp.eq.s32.totalorder %s22, 0
    %p269 = por %p267, %p268
    %p270 = scmp.le.s32.totalorder 1, %s16
    %p271 = scmp.lt.s32.totalorder %s16, 3
    %p272 = pnand %p270, %p271
    %p273 = pneg %p272
    // Predicated region
    $region9: #{comb_sub_fast_forward.6} parent=5 // pred_check
      _
    $region10: #{comb_sub_fast_forward.6} parent=5 // pred_check_branch
      %275 = sbr.rel (%p272) target = $region12
    $region11: #{comb_sub_fast_forward.6} parent=5 // pred_region
      %s276 = ssub.s32 %s16, 1
      // Predicated region
      $region13: #{comb_sub_fast_forward.6} parent=11 // pred_check
        %p277 = pneg %p63
      $region14: #{comb_sub_fast_forward.6} parent=11 // pred_check_branch
        %279 = sbr.rel (%p277) target = $region16
      $region15: #{comb_sub_fast_forward.6} parent=11 // pred_region
        _
      $region16: #{comb_sub_fast_forward.6} parent=11 // pred_fallthru
        _
      // Predicated region
      $region17: #{comb_sub_fast_forward.6} parent=11 // pred_check
        %p280 = pneg %p84
      $region18: #{comb_sub_fast_forward.6} parent=11 // pred_check_branch
        %282 = sbr.rel (%p280) target = $region20
      $region19: #{comb_sub_fast_forward.6} parent=11 // pred_region
        _
      $region20: #{comb_sub_fast_forward.6} parent=11 // pred_fallthru
        _
      // Predicated region
      $region21: #{comb_sub_fast_forward.6} parent=11 // pred_check
        %p283 = pneg %p105
      $region22: #{comb_sub_fast_forward.6} parent=11 // pred_check_branch
        %285 = sbr.rel (%p283) target = $region24
      $region23: #{comb_sub_fast_forward.6} parent=11 // pred_region
        _
      $region24: #{comb_sub_fast_forward.6} parent=11 // pred_fallthru
        _
      // Predicated region
      $region25: #{comb_sub_fast_forward.6} parent=11 // pred_check
        %p286 = pneg %p126
      $region26: #{comb_sub_fast_forward.6} parent=11 // pred_check_branch
        %288 = sbr.rel (%p286) target = $region28
      $region27: #{comb_sub_fast_forward.6} parent=11 // pred_region
        _
      $region28: #{comb_sub_fast_forward.6} parent=11 // pred_fallthru
        _
      // Predicated region
      $region29: #{comb_sub_fast_forward.6} parent=11 // pred_check
        %p289 = pneg %p147
      $region30: #{comb_sub_fast_forward.6} parent=11 // pred_check_branch
        %291 = sbr.rel (%p289) target = $region32
      $region31: #{comb_sub_fast_forward.6} parent=11 // pred_region
        _
      $region32: #{comb_sub_fast_forward.6} parent=11 // pred_fallthru
        _
      // Predicated region
      $region33: #{comb_sub_fast_forward.6} parent=11 // pred_check
        %p292 = pneg %p168
      $region34: #{comb_sub_fast_forward.6} parent=11 // pred_check_branch
        %294 = sbr.rel (%p292) target = $region36
      $region35: #{comb_sub_fast_forward.6} parent=11 // pred_region
        _
      $region36: #{comb_sub_fast_forward.6} parent=11 // pred_fallthru
        _
      // Predicated region
      $region37: #{comb_sub_fast_forward.6} parent=11 // pred_check
        %p295 = pneg %p215
      $region38: #{comb_sub_fast_forward.6} parent=11 // pred_check_branch
        %297 = sbr.rel (%p295) target = $region40
      $region39: #{comb_sub_fast_forward.6} parent=11 // pred_region
        _
      $region40: #{comb_sub_fast_forward.6} parent=11 // pred_fallthru
        _
      // Predicated region
      $region41: #{comb_sub_fast_forward.6} parent=11 // pred_check
        %p298 = pneg %p236
      $region42: #{comb_sub_fast_forward.6} parent=11 // pred_check_branch
        %300 = sbr.rel (%p298) target = $region44
      $region43: #{comb_sub_fast_forward.6} parent=11 // pred_region
        _
      $region44: #{comb_sub_fast_forward.6} parent=11 // pred_fallthru
        _
    $region12: #{comb_sub_fast_forward.6} parent=5 // pred_fallthru
      _
    %p301 = scmp.lt.s32.totalorder %s16, 2
    // Predicated region
    $region45: #{comb_sub_fast_forward.6} parent=5 // pred_check
      %p302 = pneg %p301
    $region46: #{comb_sub_fast_forward.6} parent=5 // pred_check_branch
      %304 = sbr.rel (%p302) target = $region48
    $region47: #{comb_sub_fast_forward.6} parent=5 // pred_region
      // Predicated region
      $region49: #{comb_sub_fast_forward.6} parent=47 // pred_check
        %p305 = pneg %p36
      $region50: #{comb_sub_fast_forward.6} parent=47 // pred_check_branch
        %307 = sbr.rel (%p305) target = $region52
      $region51: #{comb_sub_fast_forward.6} parent=47 // pred_region
        %p308 = scmp.lt.s32.totalorder %s16, 1
        %s309 = scalar_select %p308, %s16, 1
        %s310 = smul.addr %s309, 8
        %s311 = scalar_lea.vmem %s0, %s310
      $region52: #{comb_sub_fast_forward.6} parent=47 // pred_fallthru
        _
      // Predicated region
      $region53: #{comb_sub_fast_forward.6} parent=47 // pred_check
        %p312 = pneg %p188
      $region54: #{comb_sub_fast_forward.6} parent=47 // pred_check_branch
        %314 = sbr.rel (%p312) target = $region56
      $region55: #{comb_sub_fast_forward.6} parent=47 // pred_region
        %p315 = scmp.lt.s32.totalorder %s16, 1
        %s316 = scalar_select %p315, %s16, 1
        %s317 = smul.addr %s316, 8
        %s318 = scalar_lea.vmem %s7, %s317
      $region56: #{comb_sub_fast_forward.6} parent=47 // pred_fallthru
        _
    $region48: #{comb_sub_fast_forward.6} parent=5 // pred_fallthru
      _
    %p319 = scmp.le.s32.totalorder 1, %s16
    %p320 = scmp.lt.s32.totalorder %s16, 3
    %p321 = pnand %p319, %p320
    %p322 = pneg %p321
    // Predicated region
    $region57: #{comb_sub_fast_forward.6} parent=5 // pred_check
      _
    $region58: #{comb_sub_fast_forward.6} parent=5 // pred_check_branch
      %324 = sbr.rel (%p321) target = $region60
    $region59: #{comb_sub_fast_forward.6} parent=5 // pred_region
      %s325 = ssub.s32 %s16, 1
      %p326 = scmp.lt.s32.totalorder %s21, 1
      %s327 = scalar_select %p326, %s21, 1
      %s328 = smul.addr %s327, 8
      %s329 = scalar_lea.vmem %s0, %s328
      %p330 = pneg %p42
      %p331 = pneg %p39
      %p332 = pneg %p63
      %p333 = pneg %p60
      %p334 = pneg %p84
      %p335 = pneg %p81
      %p336 = pneg %p105
      %p337 = pneg %p102
      %p338 = pneg %p126
      %p339 = pneg %p123
      %p340 = pneg %p147
      %p341 = pneg %p144
      %p342 = pneg %p168
      %p343 = pneg %p165
      %p344 = scmp.lt.s32.totalorder %s21, 1
      %s345 = scalar_select %p344, %s21, 1
      %s346 = smul.addr %s345, 8
      %s347 = scalar_lea.vmem %s7, %s346
      %p348 = pneg %p194
      %p349 = pneg %p191
      %p350 = pneg %p215
      %p351 = pneg %p212
      %p352 = pneg %p236
      %p353 = pneg %p233
      %p354 = pneg %p262
      %p355 = pneg %p259
      %p356 = scmp.lt.s32.totalorder %s21, 1
      %s357 = scalar_select %p356, %s21, 1
      %s358 = smul.addr %s357, 8
      %s359 = scalar_lea.vmem %s10, %s358
      %p360 = scmp.lt.s32.totalorder %s21, 1
      %s361 = scalar_select %p360, %s21, 1
      %s362 = smul.addr %s361, 8
      %s363 = scalar_lea.vmem %s0, %s362
      %p364 = scmp.lt.s32.totalorder %s21, 1
      %s365 = scalar_select %p364, %s21, 1
      %s366 = smul.addr %s365, 8
      %s367 = scalar_lea.vmem %s7, %s366
      %p368 = scmp.lt.s32.totalorder %s21, 1
      %s369 = scalar_select %p368, %s21, 1
      %s370 = smul.addr %s369, 8
      %s371 = scalar_lea.vmem %s10, %s370
      %v372 = vld [vmem:[%s363] sm:$0xff]
      %vm373 = vcmask 261120
      %374 = vst.msk [vmem:[#allocation2] sm:$0xff] %vm373, 0.0
      %vm375 = vcmask 254976
      %376 = vst.msk [vmem:[#allocation2 + $0x8] sm:$0x3] %vm375, 0.0
      %377 = vst.msk [vmem:[#allocation2 + $0x1] sm:$0xff] %vm373, %v372
      %v378 = vld [vmem:[#allocation2] sm:$0xff]
      %v379 = vld [vmem:[#allocation2 + $0x1] sm:$0xff]
      %v380 = vld [vmem:[#allocation2 + $0x2] sm:$0xff]
      %382 = vrot.lane.b32.xlu0 %v379, 32
      %v383 = vpop.permute.xlu0 %382
      %386 = vrot.lane.b32.xlu0 %v380, 64
      %v387 = vpop.permute.xlu0 %386
      %v389 = vsel %vm373, %v378, %v383
      %vm390 = vcmask 523264
      %v391 = vsel %vm390, %v389, %v387
      %v392 = vld [vmem:[%s1] sm:$0xff]
      %v393 = vld [vmem:[%s1 + $0x8] sm:$0xff]
      %v394 = vld [vmem:[%s1 + $0x10] sm:$0xff]
      %v395 = vld [vmem:[%s1 + $0x18] sm:$0xff]
      %v396 = vld [vmem:[%s1 + $0x20] sm:$0xff]
      %v397 = vld [vmem:[%s1 + $0x28] sm:$0xff]
      %v398 = vld [vmem:[%s1 + $0x30] sm:$0xff]
      %v399 = vld [vmem:[%s1 + $0x38] sm:$0xff]
      %v400 = vld [vmem:[%s1 + $0x40] sm:$0xff]
      %v401 = vld [vmem:[%s1 + $0x48] sm:$0xff]
      %v402 = vld [vmem:[%s1 + $0x50] sm:$0xff]
      %v403 = vld [vmem:[%s1 + $0x58] sm:$0xff]
      %v404 = vld [vmem:[%s2] sm:$0x1]
      %v406 = vlaneseq
      %v407 = vshrl.u32 %v406, 7
      %v408 = vsub.s32 0, %v407
      %v409 = vrot.slane %v404, %v408
      %vm411 = vcmask 785408
      %v413 = vsel %vm411, %v391, 0
      %415 = vmatprep.subr.mxu0 0.0
      %416 = vmatpush1.msra.mxu0 0.0
      %417 = vmatprep.subr.mxu0 0.0
      %418 = vmatpush1.msra.mxu0 0.0
      %419 = vmatprep.subr.mxu0 0.0
      %420 = vmatpush1.msra.mxu0 0.0
      %421 = vmatprep.subr.mxu0 0.0
      %422 = vmatpush1.msra.mxu0 0.0
      %423 = vmatprep.subr.mxu0 0.0
      %424 = vmatpush1.msra.mxu0 %v403
      %425 = vmatprep.subr.mxu0 0.0
      %426 = vmatpush1.msra.mxu0 %v402
      %427 = vmatprep.subr.mxu0 0.0
      %428 = vmatpush1.msra.mxu0 %v401
      %429 = vmatprep.subr.mxu0 0.0
      %430 = vmatpush1.msra.mxu0 %v400
      %431 = vmatprep.subr.mxu0 0.0
      %432 = vmatpush1.msra.mxu0 %v399
      %433 = vmatprep.subr.mxu0 0.0
      %434 = vmatpush1.msra.mxu0 %v398
      %435 = vmatprep.subr.mxu0 0.0
      %436 = vmatpush1.msra.mxu0 %v397
      %437 = vmatprep.subr.mxu0 0.0
      %438 = vmatpush1.msra.mxu0 %v396
      %439 = vmatprep.subr.mxu0 0.0
      %440 = vmatpush1.msra.mxu0 %v395
      %441 = vmatprep.subr.mxu0 0.0
      %442 = vmatpush1.msra.mxu0 %v394
      %443 = vmatprep.subr.mxu0 0.0
      %444 = vmatpush1.msra.mxu0 %v393
      %445 = vmatprep.subr.mxu0 0.0
      %446 = vmatpush1.msra.mxu0 %v392
      %447 = vmatprep.subr.mxu0 0.0
      %448 = vmatpush2.msra.mxu0 0.0
      %449 = vmatprep.subr.mxu0 0.0
      %450 = vmatpush2.msra.mxu0 0.0
      %451 = vmatprep.subr.mxu0 0.0
      %452 = vmatpush2.msra.mxu0 0.0
      %453 = vmatprep.subr.mxu0 0.0
      %454 = vmatpush2.msra.mxu0 0.0
      %455 = vmatprep.subr.mxu0 0.0
      %456 = vmatpush2.msra.mxu0 0.0
      %457 = vmatprep.subr.mxu0 0.0
      %458 = vmatpush2.msra.mxu0 0.0
      %459 = vmatprep.subr.mxu0 0.0
      %460 = vmatpush2.msra.mxu0 0.0
      %461 = vmatprep.subr.mxu0 0.0
      %462 = vmatpush2.msra.mxu0 0.0
      %463 = vmatprep.subr.mxu0 0.0
      %464 = vmatpush2.msra.mxu0 0.0
      %465 = vmatprep.subr.mxu0 0.0
      %466 = vmatpush2.msra.mxu0 0.0
      %467 = vmatprep.subr.mxu0 0.0
      %468 = vmatpush2.msra.mxu0 0.0
      %469 = vmatprep.subr.mxu0 0.0
      %470 = vmatpush2.msra.mxu0 0.0
      %471 = vmatprep.subr.mxu0 0.0
      %472 = vmatpush2.msra.mxu0 0.0
      %473 = vmatprep.subr.mxu0 0.0
      %474 = vmatpush2.msra.mxu0 0.0
      %475 = vmatprep.subr.mxu0 0.0
      %476 = vmatpush2.msra.mxu0 0.0
      %477 = vmatprep.subr.mxu0 0.0
      %478 = vmatpush2.msra.mxu0 0.0
      %479 = vmatprep.mubr.f32.mxu0 0.0
      %480 = vmatmul.mubr.f32.gmra.mxu0 %v413
      %v481 = vpop.f32.mrf.mxu0
      %v482 = vadd.f32 %v409, %v481
      %v483 = vpop.f32.mrf.mxu0
      %484 = vdwg.mxu0
      %vm485 = vcmask 130048
      %v486 = vsel %vm485, %v482, 0.0
      %487 = vadd.xlane.f32.xlu0 %v486
      %v488 = vpop.xlane.xlu0 %487
      %v489 = vrot.slane %v488, 4
      %v490 = vadd.f32 %v488, %v489
      %v491 = vrot.slane %v490, 2
      %v492 = vadd.f32 %v490, %v491
      %v493 = vrot.slane %v492, 1
      %v494 = vadd.f32 %v492, %v493
      %s495 = vtos %v494
      %v496 = vstv %s495
      %v497 = vrcp.pop 128.0
      %v498 = vmul.f32 %v496, %v497
      %v499 = vsub.f32 %v482, %v498
      %v500 = vmul.f32 %v499, %v499
      %v501 = vsel %vm485, %v500, 0.0
      %502 = vadd.xlane.f32.xlu0 %v501
      %v503 = vpop.xlane.xlu0 %502
      %v504 = vrot.slane %v503, 4
      %v505 = vadd.f32 %v503, %v504
      %v506 = vrot.slane %v505, 2
      %v507 = vadd.f32 %v505, %v506
      %v508 = vrot.slane %v507, 1
      %v509 = vadd.f32 %v507, %v508
      %s510 = vtos %v509
      %v511 = vstv %s510
      %v512 = vmul.f32 %v511, %v497
      %v513 = vadd.f32 %v512, 1e-05
      %v514 = vrsqrt.pop %v513
      %v515 = vmul.f32 %v499, %v514
      %517 = vrot.lane.b32.xlu0 %v482, 112
      %v518 = vpop.permute.xlu0 %517
      %v520 = vsel %vm485, %v518, 0.0
      %521 = vadd.xlane.f32.xlu0 %v520
      %v522 = vpop.xlane.xlu0 %521
      %v523 = vrot.slane %v522, 4
      %v524 = vadd.f32 %v522, %v523
      %v525 = vrot.slane %v524, 2
      %v526 = vadd.f32 %v524, %v525
      %v527 = vrot.slane %v526, 1
      %v528 = vadd.f32 %v526, %v527
      %s529 = vtos %v528
      %v530 = vstv %s529
      %v531 = vmul.f32 %v530, %v497
      %v532 = vsub.f32 %v482, %v531
      %v533 = vmul.f32 %v532, %v532
      %535 = vrot.lane.b32.xlu0 %v533, 112
      %v536 = vpop.permute.xlu0 %535
      %v538 = vsel %vm485, %v536, 0.0
      %539 = vadd.xlane.f32.xlu0 %v538
      %v540 = vpop.xlane.xlu0 %539
      %v541 = vrot.slane %v540, 4
      %v542 = vadd.f32 %v540, %v541
      %v543 = vrot.slane %v542, 2
      %v544 = vadd.f32 %v542, %v543
      %v545 = vrot.slane %v544, 1
      %v546 = vadd.f32 %v544, %v545
      %s547 = vtos %v546
      %v548 = vstv %s547
      %v549 = vmul.f32 %v548, %v497
      %v550 = vadd.f32 %v549, 1e-05
      %v551 = vrsqrt.pop %v550
      %v552 = vmul.f32 %v532, %v551
      %553 = vrot.lane.b32.xlu0 %v482, 96
      %v554 = vpop.permute.xlu0 %553
      %v556 = vsel %vm485, %v554, 0.0
      %557 = vadd.xlane.f32.xlu0 %v556
      %v558 = vpop.xlane.xlu0 %557
      %v559 = vrot.slane %v558, 4
      %v560 = vadd.f32 %v558, %v559
      %v561 = vrot.slane %v560, 2
      %v562 = vadd.f32 %v560, %v561
      %v563 = vrot.slane %v562, 1
      %v564 = vadd.f32 %v562, %v563
      %s565 = vtos %v564
      %v566 = vstv %s565
      %v567 = vmul.f32 %v566, %v497
      %v568 = vsub.f32 %v482, %v567
      %v569 = vmul.f32 %v568, %v568
      %571 = vrot.lane.b32.xlu0 %v569, 96
      %v572 = vpop.permute.xlu0 %571
      %v574 = vsel %vm485, %v572, 0.0
      %575 = vadd.xlane.f32.xlu0 %v574
      %v576 = vpop.xlane.xlu0 %575
      %v577 = vrot.slane %v576, 4
      %v578 = vadd.f32 %v576, %v577
      %v579 = vrot.slane %v578, 2
      %v580 = vadd.f32 %v578, %v579
      %v581 = vrot.slane %v580, 1
      %v582 = vadd.f32 %v580, %v581
      %s583 = vtos %v582
      %v584 = vstv %s583
      %v585 = vmul.f32 %v584, %v497
      %v586 = vadd.f32 %v585, 1e-05
      %v587 = vrsqrt.pop %v586
      %v588 = vmul.f32 %v568, %v587
      %589 = vrot.lane.b32.xlu0 %v482, 80
      %v590 = vpop.permute.xlu0 %589
      %v592 = vsel %vm485, %v590, 0.0
      %593 = vadd.xlane.f32.xlu0 %v592
      %v594 = vpop.xlane.xlu0 %593
      %v595 = vrot.slane %v594, 4
      %v596 = vadd.f32 %v594, %v595
      %v597 = vrot.slane %v596, 2
      %v598 = vadd.f32 %v596, %v597
      %v599 = vrot.slane %v598, 1
      %v600 = vadd.f32 %v598, %v599
      %s601 = vtos %v600
      %v602 = vstv %s601
      %v603 = vmul.f32 %v602, %v497
      %v604 = vsub.f32 %v482, %v603
      %v605 = vmul.f32 %v604, %v604
      %607 = vrot.lane.b32.xlu0 %v605, 80
      %v608 = vpop.permute.xlu0 %607
      %v610 = vsel %vm485, %v608, 0.0
      %611 = vadd.xlane.f32.xlu0 %v610
      %v612 = vpop.xlane.xlu0 %611
      %v613 = vrot.slane %v612, 4
      %v614 = vadd.f32 %v612, %v613
      %v615 = vrot.slane %v614, 2
      %v616 = vadd.f32 %v614, %v615
      %v617 = vrot.slane %v616, 1
      %v618 = vadd.f32 %v616, %v617
      %s619 = vtos %v618
      %v620 = vstv %s619
      %v621 = vmul.f32 %v620, %v497
      %v622 = vadd.f32 %v621, 1e-05
      %v623 = vrsqrt.pop %v622
      %v624 = vmul.f32 %v604, %v623
      %v625 = vsel %vm485, %v515, %v552
      %v626 = vsel %vm373, %v625, %v588
      %vm627 = vcmask 392192
      %v628 = vsel %vm627, %v626, %v624
      %v629 = vld [vmem:[%s3] sm:$0x1]
      %v631 = vlaneseq
      %v632 = vshrl.u32 %v631, 7
      %v633 = vsub.s32 0, %v632
      %v634 = vrot.slane %v629, %v633
      %v636 = vmul.f32 %v628, %v634
      %v637 = vld [vmem:[%s4] sm:$0x1]
      %v639 = vlaneseq
      %v640 = vshrl.u32 %v639, 7
      %v641 = vsub.s32 0, %v640
      %v642 = vrot.slane %v637, %v641
      %v644 = vadd.f32 %v636, %v642
      %vm645 = vcmp.ge.f32.partialorder %v644, 0.0
      %v646 = vmul.f32 %v644, 0.01
      %v647 = vsel %vm645, %v644, %v646
      %648 = vst.msk [vmem:[#allocation3] sm:$0xff] %vm390, 0.0
      %vm649 = vcmask 517120
      %650 = vst.msk [vmem:[#allocation3 + $0x8] sm:$0x3] %vm649, 0.0
      %651 = vst.msk [vmem:[#allocation3 + $0x1] sm:$0xff] %vm390, %v647
      %v652 = vld [vmem:[#allocation3] sm:$0xff]
      %v653 = vld [vmem:[#allocation3 + $0x1] sm:$0xff]
      %v654 = vld [vmem:[#allocation3 + $0x2] sm:$0xff]
      %656 = vrot.lane.b32.xlu0 %v653, 64
      %v657 = vpop.permute.xlu0 %656
      %v659 = vsel %vm390, %v652, %v657
      %v660 = vld [vmem:[%s5] sm:$0xff]
      %v661 = vld [vmem:[%s5 + $0x8] sm:$0xff]
      %v662 = vld [vmem:[%s5 + $0x10] sm:$0xff]
      %v663 = vld [vmem:[%s5 + $0x18] sm:$0xff]
      %v664 = vld [vmem:[%s5 + $0x20] sm:$0xff]
      %v665 = vld [vmem:[%s5 + $0x28] sm:$0xff]
      %v666 = vld [vmem:[%s5 + $0x30] sm:$0xff]
      %v667 = vld [vmem:[%s5 + $0x38] sm:$0xff]
      %v668 = vld [vmem:[%s5 + $0x40] sm:$0xff]
      %v669 = vld [vmem:[%s5 + $0x48] sm:$0xff]
      %v670 = vld [vmem:[%s5 + $0x50] sm:$0xff]
      %v671 = vld [vmem:[%s5 + $0x58] sm:$0xff]
      %v672 = vld [vmem:[%s5 + $0x60] sm:$0xff]
      %v673 = vld [vmem:[%s5 + $0x68] sm:$0xff]
      %v674 = vld [vmem:[%s5 + $0x70] sm:$0xff]
      %v675 = vld [vmem:[%s5 + $0x78] sm:$0xff]
      %v676 = vld [vmem:[%s5 + $0x80] sm:$0xff]
      %v677 = vld [vmem:[%s5 + $0x88] sm:$0xff]
      %v678 = vld [vmem:[%s5 + $0x90] sm:$0xff]
      %v679 = vld [vmem:[%s5 + $0x98] sm:$0xff]
      %v680 = vld [vmem:[%s5 + $0xa0] sm:$0xff]
      %v681 = vld [vmem:[%s5 + $0xa8] sm:$0xff]
      %v682 = vld [vmem:[%s5 + $0xb0] sm:$0xff]
      %v683 = vld [vmem:[%s5 + $0xb8] sm:$0xff]
      %v684 = vld [vmem:[%s6] sm:$0x1]
      %v686 = vlaneseq
      %v687 = vshrl.u32 %v686, 7
      %v688 = vsub.s32 0, %v687
      %v689 = vrot.slane %v684, %v688
      %v692 = vsel %vm390, %v654, 0
      %694 = vmatprep.subr.mxu0 0.0
      %695 = vmatpush1.msra.mxu0 %v675
      %696 = vmatprep.subr.mxu0 0.0
      %697 = vmatpush1.msra.mxu0 %v674
      %698 = vmatprep.subr.mxu0 0.0
      %699 = vmatpush1.msra.mxu0 %v673
      %700 = vmatprep.subr.mxu0 0.0
      %701 = vmatpush1.msra.mxu0 %v672
      %702 = vmatprep.subr.mxu0 0.0
      %703 = vmatpush1.msra.mxu0 %v671
      %704 = vmatprep.subr.mxu0 0.0
      %705 = vmatpush1.msra.mxu0 %v670
      %706 = vmatprep.subr.mxu0 0.0
      %707 = vmatpush1.msra.mxu0 %v669
      %708 = vmatprep.subr.mxu0 0.0
      %709 = vmatpush1.msra.mxu0 %v668
      %710 = vmatprep.subr.mxu0 0.0
      %711 = vmatpush1.msra.mxu0 %v667
      %712 = vmatprep.subr.mxu0 0.0
      %713 = vmatpush1.msra.mxu0 %v666
      %714 = vmatprep.subr.mxu0 0.0
      %715 = vmatpush1.msra.mxu0 %v665
      %716 = vmatprep.subr.mxu0 0.0
      %717 = vmatpush1.msra.mxu0 %v664
      %718 = vmatprep.subr.mxu0 0.0
      %719 = vmatpush1.msra.mxu0 %v663
      %720 = vmatprep.subr.mxu0 0.0
      %721 = vmatpush1.msra.mxu0 %v662
      %722 = vmatprep.subr.mxu0 0.0
      %723 = vmatpush1.msra.mxu0 %v661
      %724 = vmatprep.subr.mxu0 0.0
      %725 = vmatpush1.msra.mxu0 %v660
      %726 = vmatprep.subr.mxu0 0.0
      %727 = vmatpush2.msra.mxu0 0.0
      %728 = vmatprep.subr.mxu0 0.0
      %729 = vmatpush2.msra.mxu0 0.0
      %730 = vmatprep.subr.mxu0 0.0
      %731 = vmatpush2.msra.mxu0 0.0
      %732 = vmatprep.subr.mxu0 0.0
      %733 = vmatpush2.msra.mxu0 0.0
      %734 = vmatprep.subr.mxu0 0.0
      %735 = vmatpush2.msra.mxu0 0.0
      %736 = vmatprep.subr.mxu0 0.0
      %737 = vmatpush2.msra.mxu0 0.0
      %738 = vmatprep.subr.mxu0 0.0
      %739 = vmatpush2.msra.mxu0 0.0
      %740 = vmatprep.subr.mxu0 0.0
      %741 = vmatpush2.msra.mxu0 0.0
      %742 = vmatprep.subr.mxu0 0.0
      %743 = vmatpush2.msra.mxu0 %v683
      %744 = vmatprep.subr.mxu0 0.0
      %745 = vmatpush2.msra.mxu0 %v682
      %746 = vmatprep.subr.mxu0 0.0
      %747 = vmatpush2.msra.mxu0 %v681
      %748 = vmatprep.subr.mxu0 0.0
      %749 = vmatpush2.msra.mxu0 %v680
      %750 = vmatprep.subr.mxu0 0.0
      %751 = vmatpush2.msra.mxu0 %v679
      %752 = vmatprep.subr.mxu0 0.0
      %753 = vmatpush2.msra.mxu0 %v678
      %754 = vmatprep.subr.mxu0 0.0
      %755 = vmatpush2.msra.mxu0 %v677
      %756 = vmatprep.subr.mxu0 0.0
      %757 = vmatpush2.msra.mxu0 %v676
      %758 = vmatprep.mubr.f32.mxu0 %v692
      %759 = vmatmul.mubr.f32.gmra.mxu0 %v659
      %v760 = vpop.f32.mrf.mxu0
      %v761 = vadd.f32 %v689, %v760
      %v762 = vpop.f32.mrf.mxu0
      %763 = vdwg.mxu0
      %v764 = vld [vmem:[%s367] sm:$0xff]
      %v765 = vld [vmem:[%s8] sm:$0x7]
      %v766 = vld [vmem:[%s9] sm:$0x1]
      %v768 = vlaneseq
      %v769 = vshrl.u32 %v768, 7
      %v770 = vsub.s32 0, %v769
      %v771 = vrot.slane %v766, %v770
      %vm773 = vcmask 23552
      %v775 = vsel %vm773, %v764, 0
      %vm777 = vcmask 1042432
      %v779 = vsel %vm777, %v765, 0
      %781 = vmatprep.subr.mxu0 0.0
      %782 = vmatpush1.msra.mxu0 0.0
      %783 = vmatprep.subr.mxu0 0.0
      %784 = vmatpush1.msra.mxu0 0.0
      %785 = vmatprep.subr.mxu0 0.0
      %786 = vmatpush1.msra.mxu0 0.0
      %787 = vmatprep.subr.mxu0 0.0
      %788 = vmatpush1.msra.mxu0 0.0
      %789 = vmatprep.subr.mxu0 0.0
      %790 = vmatpush1.msra.mxu0 0.0
      %791 = vmatprep.subr.mxu0 0.0
      %792 = vmatpush1.msra.mxu0 0.0
      %793 = vmatprep.subr.mxu0 0.0
      %794 = vmatpush1.msra.mxu0 0.0
      %795 = vmatprep.subr.mxu0 0.0
      %796 = vmatpush1.msra.mxu0 0.0
      %797 = vmatprep.subr.mxu0 0.0
      %798 = vmatpush1.msra.mxu0 0.0
      %799 = vmatprep.subr.mxu0 0.0
      %800 = vmatpush1.msra.mxu0 0.0
      %801 = vmatprep.subr.mxu0 0.0
      %802 = vmatpush1.msra.mxu0 0.0
      %803 = vmatprep.subr.mxu0 0.0
      %804 = vmatpush1.msra.mxu0 0.0
      %805 = vmatprep.subr.mxu0 0.0
      %806 = vmatpush1.msra.mxu0 0.0
      %807 = vmatprep.subr.mxu0 0.0
      %808 = vmatpush1.msra.mxu0 0.0
      %809 = vmatprep.subr.mxu0 0.0
      %810 = vmatpush1.msra.mxu0 0.0
      %811 = vmatprep.subr.mxu0 0.0
      %812 = vmatpush1.msra.mxu0 %v779
      %813 = vmatprep.subr.mxu0 0.0
      %814 = vmatpush2.msra.mxu0 0.0
      %815 = vmatprep.subr.mxu0 0.0
      %816 = vmatpush2.msra.mxu0 0.0
      %817 = vmatprep.subr.mxu0 0.0
      %818 = vmatpush2.msra.mxu0 0.0
      %819 = vmatprep.subr.mxu0 0.0
      %820 = vmatpush2.msra.mxu0 0.0
      %821 = vmatprep.subr.mxu0 0.0
      %822 = vmatpush2.msra.mxu0 0.0
      %823 = vmatprep.subr.mxu0 0.0
      %824 = vmatpush2.msra.mxu0 0.0
      %825 = vmatprep.subr.mxu0 0.0
      %826 = vmatpush2.msra.mxu0 0.0
      %827 = vmatprep.subr.mxu0 0.0
      %828 = vmatpush2.msra.mxu0 0.0
      %829 = vmatprep.subr.mxu0 0.0
      %830 = vmatpush2.msra.mxu0 0.0
      %831 = vmatprep.subr.mxu0 0.0
      %832 = vmatpush2.msra.mxu0 0.0
      %833 = vmatprep.subr.mxu0 0.0
      %834 = vmatpush2.msra.mxu0 0.0
      %835 = vmatprep.subr.mxu0 0.0
      %836 = vmatpush2.msra.mxu0 0.0
      %837 = vmatprep.subr.mxu0 0.0
      %838 = vmatpush2.msra.mxu0 0.0
      %839 = vmatprep.subr.mxu0 0.0
      %840 = vmatpush2.msra.mxu0 0.0
      %841 = vmatprep.subr.mxu0 0.0
      %842 = vmatpush2.msra.mxu0 0.0
      %843 = vmatprep.subr.mxu0 0.0
      %844 = vmatpush2.msra.mxu0 0.0
      %845 = vmatprep.mubr.f32.mxu0 0.0
      %846 = vmatmul.mubr.f32.gmra.mxu0 %v775
      %v847 = vpop.f32.mrf.mxu0
      %v848 = vadd.f32 %v771, %v847
      %v849 = vpop.f32.mrf.mxu0
      %850 = vdwg.mxu0
      %v851 = vadd.f32 %v761, %v848
      %852 = vst.msk [vmem:[%s371] sm:$0xff] %vm390, %v851
      %p853 = scmp.lt.s32.totalorder %s21, 1
      %s854 = scalar_select %p853, %s21, 1
      %s855 = smul.addr %s854, 8
      %s856 = scalar_lea.vmem %s10, %s855
      // Predicated region
      $region61: #{comb_sub_fast_forward.6} parent=59 // pred_check
        %p857 = pneg %p259
      $region62: #{comb_sub_fast_forward.6} parent=59 // pred_check_branch
        %859 = sbr.rel (%p857) target = $region64
      $region63: #{comb_sub_fast_forward.6} parent=59 // pred_region
        _
      $region64: #{comb_sub_fast_forward.6} parent=59 // pred_fallthru
        _
    $region60: #{comb_sub_fast_forward.6} parent=5 // pred_fallthru
      _
    %p860 = scmp.le.s32.totalorder 2, %s16
    // Predicated region
    $region65: #{comb_sub_fast_forward.6} parent=5 // pred_check
      %p861 = pneg %p860
    $region66: #{comb_sub_fast_forward.6} parent=5 // pred_check_branch
      %863 = sbr.rel (%p861) target = $region68
    $region67: #{comb_sub_fast_forward.6} parent=5 // pred_region
      %s864 = ssub.s32 %s16, 2
      // Predicated region
      $region69: #{comb_sub_fast_forward.6} parent=67 // pred_check
        %p865 = pneg %p265
      $region70: #{comb_sub_fast_forward.6} parent=67 // pred_check_branch
        %867 = sbr.rel (%p865) target = $region72
      $region71: #{comb_sub_fast_forward.6} parent=67 // pred_region
        %p868 = scmp.lt.s32.totalorder %s22, 1
        %s869 = scalar_select %p868, %s22, 1
        %s870 = smul.addr %s869, 8
        %s871 = scalar_lea.vmem %s10, %s870
      $region72: #{comb_sub_fast_forward.6} parent=67 // pred_fallthru
        _
    $region68: #{comb_sub_fast_forward.6} parent=5 // pred_fallthru
      _
  $region6: #{comb_sub_fast_forward.6} parent=0 // loop_footer
    %s20 = sadd.s32 1, %s16
  $region7: #{comb_sub_fast_forward.6} parent=0 // loop_footer_branch
    %15 = sbr.rel target = $region3
  $region8: #{comb_sub_fast_forward.6} parent=0 // loop_exit
    _

// kernel: comb_sub_fast_forward.7
$region0: #{comb_sub_fast_forward.7}
  #allocation0 [shape = 'u32[]', space=smem, size = 0x4, offset = 0x4, fixed_abs, tag = 'smem constant byte address 0x4 - core index']
  #allocation1 [shape = 'u32[144,128]{1,0:T(1,128)}', space=vmem, size = 0x12000, scoped, tag = 'internal scratch']
  #allocation2 [shape = 'f32[38,128]{1,0:T(8,128)}', space=vmem, size = 0x5000, scoped, tag = 'scratch operand']
  %s0 = inlined_call_operand.vmem [shape: f32[2,8,64], index: 0, kind: input, shape index: {}]
  %s1 = inlined_call_operand.vmem [shape: f32[1,64], index: 1, kind: input, shape index: {}]
  %s2 = inlined_call_operand.vmem [shape: f32[1,64], index: 2, kind: input, shape index: {}]
  %s3 = inlined_call_operand.vmem [shape: f32[64,192], index: 3, kind: input, shape index: {}]
  %s4 = inlined_call_operand.vmem [shape: f32[64,64], index: 4, kind: input, shape index: {}]
  %s5 = inlined_call_operand.vmem [shape: f32[1,64], index: 5, kind: input, shape index: {}]
  %s6 = inlined_call_operand.vmem [shape: f32[1,64], index: 6, kind: input, shape index: {}]
  %s7 = inlined_call_operand.vmem [shape: f32[1,64], index: 7, kind: input, shape index: {}]
  %s8 = inlined_call_operand.vmem [shape: f32[64,256], index: 8, kind: input, shape index: {}]
  %s9 = inlined_call_operand.vmem [shape: f32[1,256], index: 9, kind: input, shape index: {}]
  %s10 = inlined_call_operand.vmem [shape: f32[31,128], index: 10, kind: input, shape index: {}]
  %s11 = inlined_call_operand.vmem [shape: f32[1,128], index: 11, kind: input, shape index: {}]
  %s12 = inlined_call_operand.vmem [shape: f32[128,64], index: 12, kind: input, shape index: {}]
  %s13 = inlined_call_operand.vmem [shape: f32[1,64], index: 13, kind: input, shape index: {}]
  %s14 = inlined_call_operand.vmem [shape: f32[2,8,64], index: 14, kind: output, shape index: {}]
  %s15 = sld [smem:[#allocation0]]
  $region89: #{comb_sub_fast_forward.7} parent=0
    _
  %s17 = ssub.s32 1, %s15
  %s18 = scalar_select 0, %s17, %s15
  loop: start=0, step=1, limit=4
  $region2: #{comb_sub_fast_forward.7} parent=0 // loop_pre_header
    _
  $region3: #{comb_sub_fast_forward.7} parent=0 // loop_header
    %s20 = sphi 0, %s24
    %p21 = scmp.ge.s32.totalorder %s20, 4
    %s30 = sphi 0, %s32
    %s33 = sphi 0, %s30
    %s34 = sphi 0, %s33
    %s50 = sphi 0, %s34
    %s54 = sphi 0, %s54
    %s56 = sphi 0, %s54
    %s57 = sphi 0, %s56
    %s71 = sphi 0, %s57
    %s75 = sphi 0, %s75
    %s77 = sphi 0, %s75
    %s78 = sphi 0, %s77
    %s92 = sphi 0, %s78
    %s96 = sphi 0, %s96
    %s98 = sphi 0, %s96
    %s99 = sphi 0, %s98
    %s113 = sphi 0, %s99
    %s117 = sphi 0, %s117
    %s119 = sphi 0, %s117
    %s120 = sphi 0, %s119
    %s134 = sphi 0, %s120
    %s138 = sphi 0, %s138
    %s140 = sphi 0, %s138
    %s141 = sphi 0, %s140
    %s155 = sphi 0, %s141
    %s159 = sphi 0, %s159
    %s161 = sphi 0, %s159
    %s162 = sphi 0, %s161
    %s176 = sphi 0, %s162
    %s180 = sphi 0, %s180
    %s182 = sphi 0, %s180
    %s183 = sphi 0, %s182
    %s197 = sphi 0, %s183
    %s201 = sphi 0, %s201
    %s203 = sphi 0, %s201
    %s204 = sphi 0, %s203
    %s218 = sphi 0, %s204
    %s222 = sphi 0, %s222
    %s224 = sphi 0, %s222
    %s225 = sphi 0, %s224
    %s239 = sphi 0, %s225
    %s243 = sphi 0, %s243
    %s245 = sphi 0, %s243
    %s246 = sphi 0, %s245
    %s260 = sphi 0, %s246
    %s264 = sphi 0, %s264
    %s266 = sphi 0, %s264
    %s267 = sphi 0, %s266
    %s281 = sphi 0, %s267
    %s285 = sphi 0, %s285
    %s287 = sphi 0, %s285
    %s288 = sphi 0, %s287
    %s302 = sphi 0, %s288
    %s306 = sphi 0, %s306
    %s308 = sphi 0, %s306
    %s309 = sphi 0, %s308
    %s323 = sphi 0, %s309
    %s329 = sphi 0, %s331
    %s332 = sphi 0, %s329
    %s333 = sphi 0, %s332
    %s349 = sphi 0, %s333
  $region4: #{comb_sub_fast_forward.7} parent=0 // loop_header_branch
    %23 = sbr.rel (%p21) target = $region8
  $region5: #{comb_sub_fast_forward.7} parent=0 // loop_body
    %s25 = ssub.s32 %s20, 1
    %s26 = ssub.s32 %s20, 2
    %s27 = sadd.s32 %s20, 1
    %s28 = ssub.s32 %s20, %s27
    %p29 = scmp.eq.s32.totalorder %s28, 0
    %s31 = sadd.s32 %s30, 1
    %s32 = scalar_select %p29, %s30, %s31
    %p35 = pneg %p29
    %p36 = scmp.eq.s32.totalorder %s20, 1
    %p37 = por %p35, %p36
    %p38 = scmp.ne.s32.totalorder %s30, %s33
    %p39 = scmp.eq.s32.totalorder %s20, 0
    %p40 = por %p38, %p39
    %p41 = scmp.ne.s32.totalorder %s30, %s33
    %p42 = scmp.eq.s32.totalorder %s25, 1
    %p43 = por %p41, %p42
    %p44 = scmp.ne.s32.totalorder %s33, %s34
    %p45 = scmp.eq.s32.totalorder %s25, 0
    %p46 = por %p44, %p45
    %p47 = scmp.ne.s32.totalorder %s33, %s34
    %p48 = scmp.eq.s32.totalorder %s26, 1
    %p49 = por %p47, %p48
    %p51 = scmp.ne.s32.totalorder %s34, %s50
    %p52 = scmp.eq.s32.totalorder %s26, 0
    %p53 = por %p51, %p52
    %s55 = sadd.s32 %s54, 1
    %p58 = scmp.eq.s32.totalorder %s20, 1
    %p59 = scmp.ne.s32.totalorder %s54, %s56
    %p60 = scmp.eq.s32.totalorder %s20, 0
    %p61 = por %p59, %p60
    %p62 = scmp.ne.s32.totalorder %s54, %s56
    %p63 = scmp.eq.s32.totalorder %s25, 1
    %p64 = por %p62, %p63
    %p65 = scmp.ne.s32.totalorder %s56, %s57
    %p66 = scmp.eq.s32.totalorder %s25, 0
    %p67 = por %p65, %p66
    %p68 = scmp.ne.s32.totalorder %s56, %s57
    %p69 = scmp.eq.s32.totalorder %s26, 1
    %p70 = por %p68, %p69
    %p72 = scmp.ne.s32.totalorder %s57, %s71
    %p73 = scmp.eq.s32.totalorder %s26, 0
    %p74 = por %p72, %p73
    %s76 = sadd.s32 %s75, 1
    %p79 = scmp.eq.s32.totalorder %s20, 1
    %p80 = scmp.ne.s32.totalorder %s75, %s77
    %p81 = scmp.eq.s32.totalorder %s20, 0
    %p82 = por %p80, %p81
    %p83 = scmp.ne.s32.totalorder %s75, %s77
    %p84 = scmp.eq.s32.totalorder %s25, 1
    %p85 = por %p83, %p84
    %p86 = scmp.ne.s32.totalorder %s77, %s78
    %p87 = scmp.eq.s32.totalorder %s25, 0
    %p88 = por %p86, %p87
    %p89 = scmp.ne.s32.totalorder %s77, %s78
    %p90 = scmp.eq.s32.totalorder %s26, 1
    %p91 = por %p89, %p90
    %p93 = scmp.ne.s32.totalorder %s78, %s92
    %p94 = scmp.eq.s32.totalorder %s26, 0
    %p95 = por %p93, %p94
    %s97 = sadd.s32 %s96, 1
    %p100 = scmp.eq.s32.totalorder %s20, 1
    %p101 = scmp.ne.s32.totalorder %s96, %s98
    %p102 = scmp.eq.s32.totalorder %s20, 0
    %p103 = por %p101, %p102
    %p104 = scmp.ne.s32.totalorder %s96, %s98
    %p105 = scmp.eq.s32.totalorder %s25, 1
    %p106 = por %p104, %p105
    %p107 = scmp.ne.s32.totalorder %s98, %s99
    %p108 = scmp.eq.s32.totalorder %s25, 0
    %p109 = por %p107, %p108
    %p110 = scmp.ne.s32.totalorder %s98, %s99
    %p111 = scmp.eq.s32.totalorder %s26, 1
    %p112 = por %p110, %p111
    %p114 = scmp.ne.s32.totalorder %s99, %s113
    %p115 = scmp.eq.s32.totalorder %s26, 0
    %p116 = por %p114, %p115
    %s118 = sadd.s32 %s117, 1
    %p121 = scmp.eq.s32.totalorder %s20, 1
    %p122 = scmp.ne.s32.totalorder %s117, %s119
    %p123 = scmp.eq.s32.totalorder %s20, 0
    %p124 = por %p122, %p123
    %p125 = scmp.ne.s32.totalorder %s117, %s119
    %p126 = scmp.eq.s32.totalorder %s25, 1
    %p127 = por %p125, %p126
    %p128 = scmp.ne.s32.totalorder %s119, %s120
    %p129 = scmp.eq.s32.totalorder %s25, 0
    %p130 = por %p128, %p129
    %p131 = scmp.ne.s32.totalorder %s119, %s120
    %p132 = scmp.eq.s32.totalorder %s26, 1
    %p133 = por %p131, %p132
    %p135 = scmp.ne.s32.totalorder %s120, %s134
    %p136 = scmp.eq.s32.totalorder %s26, 0
    %p137 = por %p135, %p136
    %s139 = sadd.s32 %s138, 1
    %p142 = scmp.eq.s32.totalorder %s20, 1
    %p143 = scmp.ne.s32.totalorder %s138, %s140
    %p144 = scmp.eq.s32.totalorder %s20, 0
    %p145 = por %p143, %p144
    %p146 = scmp.ne.s32.totalorder %s138, %s140
    %p147 = scmp.eq.s32.totalorder %s25, 1
    %p148 = por %p146, %p147
    %p149 = scmp.ne.s32.totalorder %s140, %s141
    %p150 = scmp.eq.s32.totalorder %s25, 0
    %p151 = por %p149, %p150
    %p152 = scmp.ne.s32.totalorder %s140, %s141
    %p153 = scmp.eq.s32.totalorder %s26, 1
    %p154 = por %p152, %p153
    %p156 = scmp.ne.s32.totalorder %s141, %s155
    %p157 = scmp.eq.s32.totalorder %s26, 0
    %p158 = por %p156, %p157
    %s160 = sadd.s32 %s159, 1
    %p163 = scmp.eq.s32.totalorder %s20, 1
    %p164 = scmp.ne.s32.totalorder %s159, %s161
    %p165 = scmp.eq.s32.totalorder %s20, 0
    %p166 = por %p164, %p165
    %p167 = scmp.ne.s32.totalorder %s159, %s161
    %p168 = scmp.eq.s32.totalorder %s25, 1
    %p169 = por %p167, %p168
    %p170 = scmp.ne.s32.totalorder %s161, %s162
    %p171 = scmp.eq.s32.totalorder %s25, 0
    %p172 = por %p170, %p171
    %p173 = scmp.ne.s32.totalorder %s161, %s162
    %p174 = scmp.eq.s32.totalorder %s26, 1
    %p175 = por %p173, %p174
    %p177 = scmp.ne.s32.totalorder %s162, %s176
    %p178 = scmp.eq.s32.totalorder %s26, 0
    %p179 = por %p177, %p178
    %s181 = sadd.s32 %s180, 1
    %p184 = scmp.eq.s32.totalorder %s20, 1
    %p185 = scmp.ne.s32.totalorder %s180, %s182
    %p186 = scmp.eq.s32.totalorder %s20, 0
    %p187 = por %p185, %p186
    %p188 = scmp.ne.s32.totalorder %s180, %s182
    %p189 = scmp.eq.s32.totalorder %s25, 1
    %p190 = por %p188, %p189
    %p191 = scmp.ne.s32.totalorder %s182, %s183
    %p192 = scmp.eq.s32.totalorder %s25, 0
    %p193 = por %p191, %p192
    %p194 = scmp.ne.s32.totalorder %s182, %s183
    %p195 = scmp.eq.s32.totalorder %s26, 1
    %p196 = por %p194, %p195
    %p198 = scmp.ne.s32.totalorder %s183, %s197
    %p199 = scmp.eq.s32.totalorder %s26, 0
    %p200 = por %p198, %p199
    %s202 = sadd.s32 %s201, 1
    %p205 = scmp.eq.s32.totalorder %s20, 1
    %p206 = scmp.ne.s32.totalorder %s201, %s203
    %p207 = scmp.eq.s32.totalorder %s20, 0
    %p208 = por %p206, %p207
    %p209 = scmp.ne.s32.totalorder %s201, %s203
    %p210 = scmp.eq.s32.totalorder %s25, 1
    %p211 = por %p209, %p210
    %p212 = scmp.ne.s32.totalorder %s203, %s204
    %p213 = scmp.eq.s32.totalorder %s25, 0
    %p214 = por %p212, %p213
    %p215 = scmp.ne.s32.totalorder %s203, %s204
    %p216 = scmp.eq.s32.totalorder %s26, 1
    %p217 = por %p215, %p216
    %p219 = scmp.ne.s32.totalorder %s204, %s218
    %p220 = scmp.eq.s32.totalorder %s26, 0
    %p221 = por %p219, %p220
    %s223 = sadd.s32 %s222, 1
    %p226 = scmp.eq.s32.totalorder %s20, 1
    %p227 = scmp.ne.s32.totalorder %s222, %s224
    %p228 = scmp.eq.s32.totalorder %s20, 0
    %p229 = por %p227, %p228
    %p230 = scmp.ne.s32.totalorder %s222, %s224
    %p231 = scmp.eq.s32.totalorder %s25, 1
    %p232 = por %p230, %p231
    %p233 = scmp.ne.s32.totalorder %s224, %s225
    %p234 = scmp.eq.s32.totalorder %s25, 0
    %p235 = por %p233, %p234
    %p236 = scmp.ne.s32.totalorder %s224, %s225
    %p237 = scmp.eq.s32.totalorder %s26, 1
    %p238 = por %p236, %p237
    %p240 = scmp.ne.s32.totalorder %s225, %s239
    %p241 = scmp.eq.s32.totalorder %s26, 0
    %p242 = por %p240, %p241
    %s244 = sadd.s32 %s243, 1
    %p247 = scmp.eq.s32.totalorder %s20, 1
    %p248 = scmp.ne.s32.totalorder %s243, %s245
    %p249 = scmp.eq.s32.totalorder %s20, 0
    %p250 = por %p248, %p249
    %p251 = scmp.ne.s32.totalorder %s243, %s245
    %p252 = scmp.eq.s32.totalorder %s25, 1
    %p253 = por %p251, %p252
    %p254 = scmp.ne.s32.totalorder %s245, %s246
    %p255 = scmp.eq.s32.totalorder %s25, 0
    %p256 = por %p254, %p255
    %p257 = scmp.ne.s32.totalorder %s245, %s246
    %p258 = scmp.eq.s32.totalorder %s26, 1
    %p259 = por %p257, %p258
    %p261 = scmp.ne.s32.totalorder %s246, %s260
    %p262 = scmp.eq.s32.totalorder %s26, 0
    %p263 = por %p261, %p262
    %s265 = sadd.s32 %s264, 1
    %p268 = scmp.eq.s32.totalorder %s20, 1
    %p269 = scmp.ne.s32.totalorder %s264, %s266
    %p270 = scmp.eq.s32.totalorder %s20, 0
    %p271 = por %p269, %p270
    %p272 = scmp.ne.s32.totalorder %s264, %s266
    %p273 = scmp.eq.s32.totalorder %s25, 1
    %p274 = por %p272, %p273
    %p275 = scmp.ne.s32.totalorder %s266, %s267
    %p276 = scmp.eq.s32.totalorder %s25, 0
    %p277 = por %p275, %p276
    %p278 = scmp.ne.s32.totalorder %s266, %s267
    %p279 = scmp.eq.s32.totalorder %s26, 1
    %p280 = por %p278, %p279
    %p282 = scmp.ne.s32.totalorder %s267, %s281
    %p283 = scmp.eq.s32.totalorder %s26, 0
    %p284 = por %p282, %p283
    %s286 = sadd.s32 %s285, 1
    %p289 = scmp.eq.s32.totalorder %s20, 1
    %p290 = scmp.ne.s32.totalorder %s285, %s287
    %p291 = scmp.eq.s32.totalorder %s20, 0
    %p292 = por %p290, %p291
    %p293 = scmp.ne.s32.totalorder %s285, %s287
    %p294 = scmp.eq.s32.totalorder %s25, 1
    %p295 = por %p293, %p294
    %p296 = scmp.ne.s32.totalorder %s287, %s288
    %p297 = scmp.eq.s32.totalorder %s25, 0
    %p298 = por %p296, %p297
    %p299 = scmp.ne.s32.totalorder %s287, %s288
    %p300 = scmp.eq.s32.totalorder %s26, 1
    %p301 = por %p299, %p300
    %p303 = scmp.ne.s32.totalorder %s288, %s302
    %p304 = scmp.eq.s32.totalorder %s26, 0
    %p305 = por %p303, %p304
    %s307 = sadd.s32 %s306, 1
    %p310 = scmp.eq.s32.totalorder %s20, 1
    %p311 = scmp.ne.s32.totalorder %s306, %s308
    %p312 = scmp.eq.s32.totalorder %s20, 0
    %p313 = por %p311, %p312
    %p314 = scmp.ne.s32.totalorder %s306, %s308
    %p315 = scmp.eq.s32.totalorder %s25, 1
    %p316 = por %p314, %p315
    %p317 = scmp.ne.s32.totalorder %s308, %s309
    %p318 = scmp.eq.s32.totalorder %s25, 0
    %p319 = por %p317, %p318
    %p320 = scmp.ne.s32.totalorder %s308, %s309
    %p321 = scmp.eq.s32.totalorder %s26, 1
    %p322 = por %p320, %p321
    %p324 = scmp.ne.s32.totalorder %s309, %s323
    %p325 = scmp.eq.s32.totalorder %s26, 0
    %p326 = por %p324, %p325
    %s327 = ssub.s32 %s20, %s27
    %p328 = scmp.eq.s32.totalorder %s327, 0
    %s330 = sadd.s32 %s329, 1
    %s331 = scalar_select %p328, %s329, %s330
    %p334 = pneg %p328
    %p335 = scmp.eq.s32.totalorder %s20, 1
    %p336 = por %p334, %p335
    %p337 = scmp.ne.s32.totalorder %s329, %s332
    %p338 = scmp.eq.s32.totalorder %s20, 0
    %p339 = por %p337, %p338
    %p340 = scmp.ne.s32.totalorder %s329, %s332
    %p341 = scmp.eq.s32.totalorder %s25, 1
    %p342 = por %p340, %p341
    %p343 = scmp.ne.s32.totalorder %s332, %s333
    %p344 = scmp.eq.s32.totalorder %s25, 0
    %p345 = por %p343, %p344
    %p346 = scmp.ne.s32.totalorder %s332, %s333
    %p347 = scmp.eq.s32.totalorder %s26, 1
    %p348 = por %p346, %p347
    %p350 = scmp.ne.s32.totalorder %s333, %s349
    %p351 = scmp.eq.s32.totalorder %s26, 0
    %p352 = por %p350, %p351
    %p353 = scmp.le.s32.totalorder 1, %s20
    %p354 = scmp.lt.s32.totalorder %s20, 3
    %p355 = pnand %p353, %p354
    %p356 = pneg %p355
    // Predicated region
    $region9: #{comb_sub_fast_forward.7} parent=5 // pred_check
      _
    $region10: #{comb_sub_fast_forward.7} parent=5 // pred_check_branch
      %358 = sbr.rel (%p355) target = $region12
    $region11: #{comb_sub_fast_forward.7} parent=5 // pred_region
      %s359 = ssub.s32 %s20, 1
      // Predicated region
      $region13: #{comb_sub_fast_forward.7} parent=11 // pred_check
        %p360 = pneg %p67
      $region14: #{comb_sub_fast_forward.7} parent=11 // pred_check_branch
        %362 = sbr.rel (%p360) target = $region16
      $region15: #{comb_sub_fast_forward.7} parent=11 // pred_region
        _
      $region16: #{comb_sub_fast_forward.7} parent=11 // pred_fallthru
        _
      // Predicated region
      $region17: #{comb_sub_fast_forward.7} parent=11 // pred_check
        %p363 = pneg %p88
      $region18: #{comb_sub_fast_forward.7} parent=11 // pred_check_branch
        %365 = sbr.rel (%p363) target = $region20
      $region19: #{comb_sub_fast_forward.7} parent=11 // pred_region
        _
      $region20: #{comb_sub_fast_forward.7} parent=11 // pred_fallthru
        _
      // Predicated region
      $region21: #{comb_sub_fast_forward.7} parent=11 // pred_check
        %p366 = pneg %p109
      $region22: #{comb_sub_fast_forward.7} parent=11 // pred_check_branch
        %368 = sbr.rel (%p366) target = $region24
      $region23: #{comb_sub_fast_forward.7} parent=11 // pred_region
        _
      $region24: #{comb_sub_fast_forward.7} parent=11 // pred_fallthru
        _
      // Predicated region
      $region25: #{comb_sub_fast_forward.7} parent=11 // pred_check
        %p369 = pneg %p130
      $region26: #{comb_sub_fast_forward.7} parent=11 // pred_check_branch
        %371 = sbr.rel (%p369) target = $region28
      $region27: #{comb_sub_fast_forward.7} parent=11 // pred_region
        _
      $region28: #{comb_sub_fast_forward.7} parent=11 // pred_fallthru
        _
      // Predicated region
      $region29: #{comb_sub_fast_forward.7} parent=11 // pred_check
        %p372 = pneg %p151
      $region30: #{comb_sub_fast_forward.7} parent=11 // pred_check_branch
        %374 = sbr.rel (%p372) target = $region32
      $region31: #{comb_sub_fast_forward.7} parent=11 // pred_region
        _
      $region32: #{comb_sub_fast_forward.7} parent=11 // pred_fallthru
        _
      // Predicated region
      $region33: #{comb_sub_fast_forward.7} parent=11 // pred_check
        %p375 = pneg %p172
      $region34: #{comb_sub_fast_forward.7} parent=11 // pred_check_branch
        %377 = sbr.rel (%p375) target = $region36
      $region35: #{comb_sub_fast_forward.7} parent=11 // pred_region
        _
      $region36: #{comb_sub_fast_forward.7} parent=11 // pred_fallthru
        _
      // Predicated region
      $region37: #{comb_sub_fast_forward.7} parent=11 // pred_check
        %p378 = pneg %p193
      $region38: #{comb_sub_fast_forward.7} parent=11 // pred_check_branch
        %380 = sbr.rel (%p378) target = $region40
      $region39: #{comb_sub_fast_forward.7} parent=11 // pred_region
        _
      $region40: #{comb_sub_fast_forward.7} parent=11 // pred_fallthru
        _
      // Predicated region
      $region41: #{comb_sub_fast_forward.7} parent=11 // pred_check
        %p381 = pneg %p214
      $region42: #{comb_sub_fast_forward.7} parent=11 // pred_check_branch
        %383 = sbr.rel (%p381) target = $region44
      $region43: #{comb_sub_fast_forward.7} parent=11 // pred_region
        _
      $region44: #{comb_sub_fast_forward.7} parent=11 // pred_fallthru
        _
      // Predicated region
      $region45: #{comb_sub_fast_forward.7} parent=11 // pred_check
        %p384 = pneg %p235
      $region46: #{comb_sub_fast_forward.7} parent=11 // pred_check_branch
        %386 = sbr.rel (%p384) target = $region48
      $region47: #{comb_sub_fast_forward.7} parent=11 // pred_region
        _
      $region48: #{comb_sub_fast_forward.7} parent=11 // pred_fallthru
        _
      // Predicated region
      $region49: #{comb_sub_fast_forward.7} parent=11 // pred_check
        %p387 = pneg %p256
      $region50: #{comb_sub_fast_forward.7} parent=11 // pred_check_branch
        %389 = sbr.rel (%p387) target = $region52
      $region51: #{comb_sub_fast_forward.7} parent=11 // pred_region
        _
      $region52: #{comb_sub_fast_forward.7} parent=11 // pred_fallthru
        _
      // Predicated region
      $region53: #{comb_sub_fast_forward.7} parent=11 // pred_check
        %p390 = pneg %p277
      $region54: #{comb_sub_fast_forward.7} parent=11 // pred_check_branch
        %392 = sbr.rel (%p390) target = $region56
      $region55: #{comb_sub_fast_forward.7} parent=11 // pred_region
        _
      $region56: #{comb_sub_fast_forward.7} parent=11 // pred_fallthru
        _
      // Predicated region
      $region57: #{comb_sub_fast_forward.7} parent=11 // pred_check
        %p393 = pneg %p298
      $region58: #{comb_sub_fast_forward.7} parent=11 // pred_check_branch
        %395 = sbr.rel (%p393) target = $region60
      $region59: #{comb_sub_fast_forward.7} parent=11 // pred_region
        _
      $region60: #{comb_sub_fast_forward.7} parent=11 // pred_fallthru
        _
      // Predicated region
      $region61: #{comb_sub_fast_forward.7} parent=11 // pred_check
        %p396 = pneg %p319
      $region62: #{comb_sub_fast_forward.7} parent=11 // pred_check_branch
        %398 = sbr.rel (%p396) target = $region64
      $region63: #{comb_sub_fast_forward.7} parent=11 // pred_region
        _
      $region64: #{comb_sub_fast_forward.7} parent=11 // pred_fallthru
        _
    $region12: #{comb_sub_fast_forward.7} parent=5 // pred_fallthru
      _
    %p399 = scmp.lt.s32.totalorder %s20, 2
    // Predicated region
    $region65: #{comb_sub_fast_forward.7} parent=5 // pred_check
      %p400 = pneg %p399
    $region66: #{comb_sub_fast_forward.7} parent=5 // pred_check_branch
      %402 = sbr.rel (%p400) target = $region68
    $region67: #{comb_sub_fast_forward.7} parent=5 // pred_region
      // Predicated region
      $region69: #{comb_sub_fast_forward.7} parent=67 // pred_check
        %p403 = pneg %p40
      $region70: #{comb_sub_fast_forward.7} parent=67 // pred_check_branch
        %405 = sbr.rel (%p403) target = $region72
      $region71: #{comb_sub_fast_forward.7} parent=67 // pred_region
        %p406 = scmp.lt.s32.totalorder %s20, 1
        %s407 = scalar_select %p406, %s20, 1
        %s408 = smul.addr %s407, 8
        %s409 = scalar_lea.vmem %s0, %s408
      $region72: #{comb_sub_fast_forward.7} parent=67 // pred_fallthru
        _
    $region68: #{comb_sub_fast_forward.7} parent=5 // pred_fallthru
      _
    %p410 = scmp.le.s32.totalorder 1, %s20
    %p411 = scmp.lt.s32.totalorder %s20, 3
    %p412 = pnand %p410, %p411
    %p413 = pneg %p412
    // Predicated region
    $region73: #{comb_sub_fast_forward.7} parent=5 // pred_check
      _
    $region74: #{comb_sub_fast_forward.7} parent=5 // pred_check_branch
      %415 = sbr.rel (%p412) target = $region76
    $region75: #{comb_sub_fast_forward.7} parent=5 // pred_region
      %s416 = ssub.s32 %s20, 1
      %p417 = scmp.lt.s32.totalorder %s25, 1
      %s418 = scalar_select %p417, %s25, 1
      %s419 = smul.addr %s418, 8
      %s420 = scalar_lea.vmem %s0, %s419
      %p421 = pneg %p46
      %p422 = pneg %p43
      %p423 = pneg %p67
      %p424 = pneg %p64
      %p425 = pneg %p88
      %p426 = pneg %p85
      %p427 = pneg %p109
      %p428 = pneg %p106
      %p429 = pneg %p130
      %p430 = pneg %p127
      %p431 = pneg %p151
      %p432 = pneg %p148
      %p433 = pneg %p172
      %p434 = pneg %p169
      %p435 = pneg %p193
      %p436 = pneg %p190
      %p437 = pneg %p214
      %p438 = pneg %p211
      %p439 = pneg %p235
      %p440 = pneg %p232
      %p441 = pneg %p256
      %p442 = pneg %p253
      %p443 = pneg %p277
      %p444 = pneg %p274
      %p445 = pneg %p298
      %p446 = pneg %p295
      %p447 = pneg %p319
      %p448 = pneg %p316
      %p449 = pneg %p345
      %p450 = pneg %p342
      %p451 = scmp.lt.s32.totalorder %s25, 1
      %s452 = scalar_select %p451, %s25, 1
      %s453 = smul.addr %s452, 8
      %s454 = scalar_lea.vmem %s14, %s453
      %p455 = scmp.lt.s32.totalorder %s25, 1
      %s456 = scalar_select %p455, %s25, 1
      %s457 = smul.addr %s456, 8
      %s458 = scalar_lea.vmem %s0, %s457
      %p459 = scmp.lt.s32.totalorder %s25, 1
      %s460 = scalar_select %p459, %s25, 1
      %s461 = smul.addr %s460, 8
      %s462 = scalar_lea.vmem %s14, %s461
      %v463 = vld [vmem:[%s458] sm:$0xff]
      %v464 = vld [vmem:[%s1] sm:$0x1]
      %v465 = vld [vmem:[%s2] sm:$0x1]
      %vm466 = vcmask 523264
      %v467 = vsel %vm466, %v463, 0.0
      %468 = vadd.xlane.f32.xlu0 %v467
      %v469 = vpop.xlane.xlu0 %468
      %v470 = vrcp.pop 64.0
      %v471 = vmul.f32 %v469, %v470
      %v472 = vsub.f32 %v463, %v471
      %v473 = vmul.f32 %v472, %v472
      %v474 = vsel %vm466, %v473, 0.0
      %475 = vadd.xlane.f32.xlu0 %v474
      %v476 = vpop.xlane.xlu0 %475
      %v477 = vmul.f32 %v476, %v470
      %v478 = vadd.f32 %v477, 1e-05
      %v479 = vrsqrt.pop %v478
      %v480 = vmul.f32 %v472, %v479
      %v482 = vlaneseq
      %v483 = vshrl.u32 %v482, 7
      %v484 = vsub.s32 0, %v483
      %v485 = vrot.slane %v464, %v484
      %v487 = vmul.f32 %v480, %v485
      %v489 = vlaneseq
      %v490 = vshrl.u32 %v489, 7
      %v491 = vsub.s32 0, %v490
      %v492 = vrot.slane %v465, %v491
      %v494 = vadd.f32 %v487, %v492
      %v495 = vld [vmem:[%s3] sm:$0xff]
      %v496 = vld [vmem:[%s3 + $0x8] sm:$0xff]
      %v497 = vld [vmem:[%s3 + $0x10] sm:$0xff]
      %v498 = vld [vmem:[%s3 + $0x18] sm:$0xff]
      %v499 = vld [vmem:[%s3 + $0x20] sm:$0xff]
      %v500 = vld [vmem:[%s3 + $0x28] sm:$0xff]
      %v501 = vld [vmem:[%s3 + $0x30] sm:$0xff]
      %v502 = vld [vmem:[%s3 + $0x38] sm:$0xff]
      %v503 = vld [vmem:[%s3 + $0x40] sm:$0xff]
      %v504 = vld [vmem:[%s3 + $0x48] sm:$0xff]
      %v505 = vld [vmem:[%s3 + $0x50] sm:$0xff]
      %v506 = vld [vmem:[%s3 + $0x58] sm:$0xff]
      %v507 = vld [vmem:[%s3 + $0x60] sm:$0xff]
      %v508 = vld [vmem:[%s3 + $0x68] sm:$0xff]
      %v509 = vld [vmem:[%s3 + $0x70] sm:$0xff]
      %v510 = vld [vmem:[%s3 + $0x78] sm:$0xff]
      %v512 = vsel %vm466, %v494, 0
      %514 = vmatprep.subr.mxu0 0.0
      %515 = vmatpush1.msra.mxu0 0.0
      %516 = vmatprep.subr.mxu0 0.0
      %517 = vmatpush1.msra.mxu0 0.0
      %518 = vmatprep.subr.mxu0 0.0
      %519 = vmatpush1.msra.mxu0 0.0
      %520 = vmatprep.subr.mxu0 0.0
      %521 = vmatpush1.msra.mxu0 0.0
      %522 = vmatprep.subr.mxu0 0.0
      %523 = vmatpush1.msra.mxu0 0.0
      %524 = vmatprep.subr.mxu0 0.0
      %525 = vmatpush1.msra.mxu0 0.0
      %526 = vmatprep.subr.mxu0 0.0
      %527 = vmatpush1.msra.mxu0 0.0
      %528 = vmatprep.subr.mxu0 0.0
      %529 = vmatpush1.msra.mxu0 0.0
      %530 = vmatprep.subr.mxu0 %v510
      %531 = vmatpush1.msra.mxu0 %v509
      %532 = vmatprep.subr.mxu0 %v508
      %533 = vmatpush1.msra.mxu0 %v507
      %534 = vmatprep.subr.mxu0 %v506
      %535 = vmatpush1.msra.mxu0 %v505
      %536 = vmatprep.subr.mxu0 %v504
      %537 = vmatpush1.msra.mxu0 %v503
      %538 = vmatprep.subr.mxu0 %v502
      %539 = vmatpush1.msra.mxu0 %v501
      %540 = vmatprep.subr.mxu0 %v500
      %541 = vmatpush1.msra.mxu0 %v499
      %542 = vmatprep.subr.mxu0 %v498
      %543 = vmatpush1.msra.mxu0 %v497
      %544 = vmatprep.subr.mxu0 %v496
      %545 = vmatpush1.msra.mxu0 %v495
      %546 = vmatprep.subr.mxu0 0.0
      %547 = vmatpush2.msra.mxu0 0.0
      %548 = vmatprep.subr.mxu0 0.0
      %549 = vmatpush2.msra.mxu0 0.0
      %550 = vmatprep.subr.mxu0 0.0
      %551 = vmatpush2.msra.mxu0 0.0
      %552 = vmatprep.subr.mxu0 0.0
      %553 = vmatpush2.msra.mxu0 0.0
      %554 = vmatprep.subr.mxu0 0.0
      %555 = vmatpush2.msra.mxu0 0.0
      %556 = vmatprep.subr.mxu0 0.0
      %557 = vmatpush2.msra.mxu0 0.0
      %558 = vmatprep.subr.mxu0 0.0
      %559 = vmatpush2.msra.mxu0 0.0
      %560 = vmatprep.subr.mxu0 0.0
      %561 = vmatpush2.msra.mxu0 0.0
      %562 = vmatprep.subr.mxu0 0.0
      %563 = vmatpush2.msra.mxu0 0.0
      %564 = vmatprep.subr.mxu0 0.0
      %565 = vmatpush2.msra.mxu0 0.0
      %566 = vmatprep.subr.mxu0 0.0
      %567 = vmatpush2.msra.mxu0 0.0
      %568 = vmatprep.subr.mxu0 0.0
      %569 = vmatpush2.msra.mxu0 0.0
      %570 = vmatprep.subr.mxu0 0.0
      %571 = vmatpush2.msra.mxu0 0.0
      %572 = vmatprep.subr.mxu0 0.0
      %573 = vmatpush2.msra.mxu0 0.0
      %574 = vmatprep.subr.mxu0 0.0
      %575 = vmatpush2.msra.mxu0 0.0
      %576 = vmatprep.subr.mxu0 0.0
      %577 = vmatpush2.msra.mxu0 0.0
      %578 = vmatprep.mubr.f32.mxu0 0.0
      %579 = vmatmul.mubr.f32.gmra.mxu0 %v512
      %v580 = vpop.f32.mrf.mxu0
      %v581 = vadd.f32 0.0, %v580
      %v582 = vpop.f32.mrf.mxu0
      %v583 = vadd.f32 0.0, %v582
      %584 = vdwg.mxu0
      %586 = vrot.lane.b32.xlu0 %v581, 64
      %v587 = vpop.permute.xlu0 %586
      %vm588 = vcmask 130048
      %v589 = vsel %vm588, %v581, 0
      %v591 = vsel %vm588, %v587, 0
      %593 = vmatprep.subr.mxu0 0.0
      %594 = vmatpush1.xpose.msra.mxu0 0.0
      %595 = vmatprep.subr.mxu0 0.0
      %596 = vmatpush1.xpose.msra.mxu0 0.0
      %597 = vmatprep.subr.mxu0 0.0
      %598 = vmatpush1.xpose.msra.mxu0 0.0
      %599 = vmatprep.subr.mxu0 0.0
      %600 = vmatpush1.xpose.msra.mxu0 0.0
      %601 = vmatprep.subr.mxu0 0.0
      %602 = vmatpush1.xpose.msra.mxu0 0.0
      %603 = vmatprep.subr.mxu0 0.0
      %604 = vmatpush1.xpose.msra.mxu0 0.0
      %605 = vmatprep.subr.mxu0 0.0
      %606 = vmatpush1.xpose.msra.mxu0 0.0
      %607 = vmatprep.subr.mxu0 0.0
      %608 = vmatpush1.xpose.msra.mxu0 0.0
      %609 = vmatprep.subr.mxu0 0.0
      %610 = vmatpush1.xpose.msra.mxu0 0.0
      %611 = vmatprep.subr.mxu0 0.0
      %612 = vmatpush1.xpose.msra.mxu0 0.0
      %613 = vmatprep.subr.mxu0 0.0
      %614 = vmatpush1.xpose.msra.mxu0 0.0
      %615 = vmatprep.subr.mxu0 0.0
      %616 = vmatpush1.xpose.msra.mxu0 0.0
      %617 = vmatprep.subr.mxu0 0.0
      %618 = vmatpush1.xpose.msra.mxu0 0.0
      %619 = vmatprep.subr.mxu0 0.0
      %620 = vmatpush1.xpose.msra.mxu0 0.0
      %621 = vmatprep.subr.mxu0 0.0
      %622 = vmatpush1.xpose.msra.mxu0 0.0
      %623 = vmatprep.subr.mxu0 0.0
      %624 = vmatpush1.xpose.msra.mxu0 %v591
      %625 = vmatprep.subr.mxu0 0.0
      %626 = vmatpush2.xpose.msra.mxu0 0.0
      %627 = vmatprep.subr.mxu0 0.0
      %628 = vmatpush2.xpose.msra.mxu0 0.0
      %629 = vmatprep.subr.mxu0 0.0
      %630 = vmatpush2.xpose.msra.mxu0 0.0
      %631 = vmatprep.subr.mxu0 0.0
      %632 = vmatpush2.xpose.msra.mxu0 0.0
      %633 = vmatprep.subr.mxu0 0.0
      %634 = vmatpush2.xpose.msra.mxu0 0.0
      %635 = vmatprep.subr.mxu0 0.0
      %636 = vmatpush2.xpose.msra.mxu0 0.0
      %637 = vmatprep.subr.mxu0 0.0
      %638 = vmatpush2.xpose.msra.mxu0 0.0
      %639 = vmatprep.subr.mxu0 0.0
      %640 = vmatpush2.xpose.msra.mxu0 0.0
      %641 = vmatprep.subr.mxu0 0.0
      %642 = vmatpush2.xpose.msra.mxu0 0.0
      %643 = vmatprep.subr.mxu0 0.0
      %644 = vmatpush2.xpose.msra.mxu0 0.0
      %645 = vmatprep.subr.mxu0 0.0
      %646 = vmatpush2.xpose.msra.mxu0 0.0
      %647 = vmatprep.subr.mxu0 0.0
      %648 = vmatpush2.xpose.msra.mxu0 0.0
      %649 = vmatprep.subr.mxu0 0.0
      %650 = vmatpush2.xpose.msra.mxu0 0.0
      %651 = vmatprep.subr.mxu0 0.0
      %652 = vmatpush2.xpose.msra.mxu0 0.0
      %653 = vmatprep.subr.mxu0 0.0
      %654 = vmatpush2.xpose.msra.mxu0 0.0
      %655 = vmatprep.subr.mxu0 0.0
      %656 = vmatpush2.xpose.msra.mxu0 0.0
      %657 = vmatprep.mubr.f32.mxu0 0.0
      %658 = vmatmul.mubr.f32.gmra.mxu0 %v589
      %v659 = vpop.f32.mrf.mxu0
      %v660 = vadd.f32 0.0, %v659
      %v661 = vpop.f32.mrf.mxu0
      %662 = vdwg.mxu0
      %v663 = vmul.f32 %v660, 0.25
      %vm664 = vcmask 64512
      %v665 = vsel %vm664, %v663, -inf
      %666 = vmax.xlane.f32.xlu0 %v665
      %v667 = vpop.xlane.xlu0 %666
      %v668 = vsub.f32 %v663, %v667
      %v669 = vmul.f32 %v668, 1.442695
      %v670 = vpow.pop %v669
      %v671 = vsel %vm664, %v670, 0.0
      %672 = vadd.xlane.f32.xlu0 %v671
      %v673 = vpop.xlane.xlu0 %672
      %v674 = vrcp.pop %v673
      %v675 = vmul.f32 %v670, %v674
      %v677 = vsel %vm664, %v675, 0
      %679 = vmatprep.subr.mxu0 0.0
      %680 = vmatpush1.msra.mxu0 0.0
      %681 = vmatprep.subr.mxu0 0.0
      %682 = vmatpush1.msra.mxu0 0.0
      %683 = vmatprep.subr.mxu0 0.0
      %684 = vmatpush1.msra.mxu0 0.0
      %685 = vmatprep.subr.mxu0 0.0
      %686 = vmatpush1.msra.mxu0 0.0
      %687 = vmatprep.subr.mxu0 0.0
      %688 = vmatpush1.msra.mxu0 0.0
      %689 = vmatprep.subr.mxu0 0.0
      %690 = vmatpush1.msra.mxu0 0.0
      %691 = vmatprep.subr.mxu0 0.0
      %692 = vmatpush1.msra.mxu0 0.0
      %693 = vmatprep.subr.mxu0 0.0
      %694 = vmatpush1.msra.mxu0 0.0
      %695 = vmatprep.subr.mxu0 0.0
      %696 = vmatpush1.msra.mxu0 0.0
      %697 = vmatprep.subr.mxu0 0.0
      %698 = vmatpush1.msra.mxu0 0.0
      %699 = vmatprep.subr.mxu0 0.0
      %700 = vmatpush1.msra.mxu0 0.0
      %701 = vmatprep.subr.mxu0 0.0
      %702 = vmatpush1.msra.mxu0 0.0
      %703 = vmatprep.subr.mxu0 0.0
      %704 = vmatpush1.msra.mxu0 0.0
      %705 = vmatprep.subr.mxu0 0.0
      %706 = vmatpush1.msra.mxu0 0.0
      %707 = vmatprep.subr.mxu0 0.0
      %708 = vmatpush1.msra.mxu0 0.0
      %709 = vmatprep.subr.mxu0 0.0
      %710 = vmatpush1.msra.mxu0 %v583
      %711 = vmatprep.subr.mxu0 0.0
      %712 = vmatpush2.msra.mxu0 0.0
      %713 = vmatprep.subr.mxu0 0.0
      %714 = vmatpush2.msra.mxu0 0.0
      %715 = vmatprep.subr.mxu0 0.0
      %716 = vmatpush2.msra.mxu0 0.0
      %717 = vmatprep.subr.mxu0 0.0
      %718 = vmatpush2.msra.mxu0 0.0
      %719 = vmatprep.subr.mxu0 0.0
      %720 = vmatpush2.msra.mxu0 0.0
      %721 = vmatprep.subr.mxu0 0.0
      %722 = vmatpush2.msra.mxu0 0.0
      %723 = vmatprep.subr.mxu0 0.0
      %724 = vmatpush2.msra.mxu0 0.0
      %725 = vmatprep.subr.mxu0 0.0
      %726 = vmatpush2.msra.mxu0 0.0
      %727 = vmatprep.subr.mxu0 0.0
      %728 = vmatpush2.msra.mxu0 0.0
      %729 = vmatprep.subr.mxu0 0.0
      %730 = vmatpush2.msra.mxu0 0.0
      %731 = vmatprep.subr.mxu0 0.0
      %732 = vmatpush2.msra.mxu0 0.0
      %733 = vmatprep.subr.mxu0 0.0
      %734 = vmatpush2.msra.mxu0 0.0
      %735 = vmatprep.subr.mxu0 0.0
      %736 = vmatpush2.msra.mxu0 0.0
      %737 = vmatprep.subr.mxu0 0.0
      %738 = vmatpush2.msra.mxu0 0.0
      %739 = vmatprep.subr.mxu0 0.0
      %740 = vmatpush2.msra.mxu0 0.0
      %741 = vmatprep.subr.mxu0 0.0
      %742 = vmatpush2.msra.mxu0 0.0
      %743 = vmatprep.mubr.f32.mxu0 0.0
      %744 = vmatmul.mubr.f32.gmra.mxu0 %v677
      %v745 = vpop.f32.mrf.mxu0
      %v746 = vadd.f32 0.0, %v745
      %v747 = vpop.f32.mrf.mxu0
      %748 = vdwg.mxu0
      %749 = vrot.lane.b32.xlu0 %v581, 112
      %v750 = vpop.permute.xlu0 %749
      %751 = vrot.lane.b32.xlu0 %v581, 48
      %v752 = vpop.permute.xlu0 %751
      %v753 = vsel %vm588, %v750, 0
      %v755 = vsel %vm588, %v752, 0
      %757 = vmatprep.subr.mxu0 0.0
      %758 = vmatpush1.xpose.msra.mxu0 0.0
      %759 = vmatprep.subr.mxu0 0.0
      %760 = vmatpush1.xpose.msra.mxu0 0.0
      %761 = vmatprep.subr.mxu0 0.0
      %762 = vmatpush1.xpose.msra.mxu0 0.0
      %763 = vmatprep.subr.mxu0 0.0
      %764 = vmatpush1.xpose.msra.mxu0 0.0
      %765 = vmatprep.subr.mxu0 0.0
      %766 = vmatpush1.xpose.msra.mxu0 0.0
      %767 = vmatprep.subr.mxu0 0.0
      %768 = vmatpush1.xpose.msra.mxu0 0.0
      %769 = vmatprep.subr.mxu0 0.0
      %770 = vmatpush1.xpose.msra.mxu0 0.0
      %771 = vmatprep.subr.mxu0 0.0
      %772 = vmatpush1.xpose.msra.mxu0 0.0
      %773 = vmatprep.subr.mxu0 0.0
      %774 = vmatpush1.xpose.msra.mxu0 0.0
      %775 = vmatprep.subr.mxu0 0.0
      %776 = vmatpush1.xpose.msra.mxu0 0.0
      %777 = vmatprep.subr.mxu0 0.0
      %778 = vmatpush1.xpose.msra.mxu0 0.0
      %779 = vmatprep.subr.mxu0 0.0
      %780 = vmatpush1.xpose.msra.mxu0 0.0
      %781 = vmatprep.subr.mxu0 0.0
      %782 = vmatpush1.xpose.msra.mxu0 0.0
      %783 = vmatprep.subr.mxu0 0.0
      %784 = vmatpush1.xpose.msra.mxu0 0.0
      %785 = vmatprep.subr.mxu0 0.0
      %786 = vmatpush1.xpose.msra.mxu0 0.0
      %787 = vmatprep.subr.mxu0 0.0
      %788 = vmatpush1.xpose.msra.mxu0 %v755
      %789 = vmatprep.subr.mxu0 0.0
      %790 = vmatpush2.xpose.msra.mxu0 0.0
      %791 = vmatprep.subr.mxu0 0.0
      %792 = vmatpush2.xpose.msra.mxu0 0.0
      %793 = vmatprep.subr.mxu0 0.0
      %794 = vmatpush2.xpose.msra.mxu0 0.0
      %795 = vmatprep.subr.mxu0 0.0
      %796 = vmatpush2.xpose.msra.mxu0 0.0
      %797 = vmatprep.subr.mxu0 0.0
      %798 = vmatpush2.xpose.msra.mxu0 0.0
      %799 = vmatprep.subr.mxu0 0.0
      %800 = vmatpush2.xpose.msra.mxu0 0.0
      %801 = vmatprep.subr.mxu0 0.0
      %802 = vmatpush2.xpose.msra.mxu0 0.0
      %803 = vmatprep.subr.mxu0 0.0
      %804 = vmatpush2.xpose.msra.mxu0 0.0
      %805 = vmatprep.subr.mxu0 0.0
      %806 = vmatpush2.xpose.msra.mxu0 0.0
      %807 = vmatprep.subr.mxu0 0.0
      %808 = vmatpush2.xpose.msra.mxu0 0.0
      %809 = vmatprep.subr.mxu0 0.0
      %810 = vmatpush2.xpose.msra.mxu0 0.0
      %811 = vmatprep.subr.mxu0 0.0
      %812 = vmatpush2.xpose.msra.mxu0 0.0
      %813 = vmatprep.subr.mxu0 0.0
      %814 = vmatpush2.xpose.msra.mxu0 0.0
      %815 = vmatprep.subr.mxu0 0.0
      %816 = vmatpush2.xpose.msra.mxu0 0.0
      %817 = vmatprep.subr.mxu0 0.0
      %818 = vmatpush2.xpose.msra.mxu0 0.0
      %819 = vmatprep.subr.mxu0 0.0
      %820 = vmatpush2.xpose.msra.mxu0 0.0
      %821 = vmatprep.mubr.f32.mxu0 0.0
      %822 = vmatmul.mubr.f32.gmra.mxu0 %v753
      %v823 = vpop.f32.mrf.mxu0
      %v824 = vadd.f32 0.0, %v823
      %v825 = vpop.f32.mrf.mxu0
      %826 = vdwg.mxu0
      %v827 = vmul.f32 %v824, 0.25
      %v828 = vsel %vm664, %v827, -inf
      %829 = vmax.xlane.f32.xlu0 %v828
      %v830 = vpop.xlane.xlu0 %829
      %v831 = vsub.f32 %v827, %v830
      %v832 = vmul.f32 %v831, 1.442695
      %v833 = vpow.pop %v832
      %v834 = vsel %vm664, %v833, 0.0
      %835 = vadd.xlane.f32.xlu0 %v834
      %v836 = vpop.xlane.xlu0 %835
      %v837 = vrcp.pop %v836
      %v838 = vmul.f32 %v833, %v837
      %840 = vrot.lane.b32.xlu0 %v583, 112
      %v841 = vpop.permute.xlu0 %840
      %v844 = vsel %vm664, %v838, 0
      %846 = vmatprep.subr.mxu0 0.0
      %847 = vmatpush1.msra.mxu0 0.0
      %848 = vmatprep.subr.mxu0 0.0
      %849 = vmatpush1.msra.mxu0 0.0
      %850 = vmatprep.subr.mxu0 0.0
      %851 = vmatpush1.msra.mxu0 0.0
      %852 = vmatprep.subr.mxu0 0.0
      %853 = vmatpush1.msra.mxu0 0.0
      %854 = vmatprep.subr.mxu0 0.0
      %855 = vmatpush1.msra.mxu0 0.0
      %856 = vmatprep.subr.mxu0 0.0
      %857 = vmatpush1.msra.mxu0 0.0
      %858 = vmatprep.subr.mxu0 0.0
      %859 = vmatpush1.msra.mxu0 0.0
      %860 = vmatprep.subr.mxu0 0.0
      %861 = vmatpush1.msra.mxu0 0.0
      %862 = vmatprep.subr.mxu0 0.0
      %863 = vmatpush1.msra.mxu0 0.0
      %864 = vmatprep.subr.mxu0 0.0
      %865 = vmatpush1.msra.mxu0 0.0
      %866 = vmatprep.subr.mxu0 0.0
      %867 = vmatpush1.msra.mxu0 0.0
      %868 = vmatprep.subr.mxu0 0.0
      %869 = vmatpush1.msra.mxu0 0.0
      %870 = vmatprep.subr.mxu0 0.0
      %871 = vmatpush1.msra.mxu0 0.0
      %872 = vmatprep.subr.mxu0 0.0
      %873 = vmatpush1.msra.mxu0 0.0
      %874 = vmatprep.subr.mxu0 0.0
      %875 = vmatpush1.msra.mxu0 0.0
      %876 = vmatprep.subr.mxu0 0.0
      %877 = vmatpush1.msra.mxu0 %v841
      %878 = vmatprep.subr.mxu0 0.0
      %879 = vmatpush2.msra.mxu0 0.0
      %880 = vmatprep.subr.mxu0 0.0
      %881 = vmatpush2.msra.mxu0 0.0
      %882 = vmatprep.subr.mxu0 0.0
      %883 = vmatpush2.msra.mxu0 0.0
      %884 = vmatprep.subr.mxu0 0.0
      %885 = vmatpush2.msra.mxu0 0.0
      %886 = vmatprep.subr.mxu0 0.0
      %887 = vmatpush2.msra.mxu0 0.0
      %888 = vmatprep.subr.mxu0 0.0
      %889 = vmatpush2.msra.mxu0 0.0
      %890 = vmatprep.subr.mxu0 0.0
      %891 = vmatpush2.msra.mxu0 0.0
      %892 = vmatprep.subr.mxu0 0.0
      %893 = vmatpush2.msra.mxu0 0.0
      %894 = vmatprep.subr.mxu0 0.0
      %895 = vmatpush2.msra.mxu0 0.0
      %896 = vmatprep.subr.mxu0 0.0
      %897 = vmatpush2.msra.mxu0 0.0
      %898 = vmatprep.subr.mxu0 0.0
      %899 = vmatpush2.msra.mxu0 0.0
      %900 = vmatprep.subr.mxu0 0.0
      %901 = vmatpush2.msra.mxu0 0.0
      %902 = vmatprep.subr.mxu0 0.0
      %903 = vmatpush2.msra.mxu0 0.0
      %904 = vmatprep.subr.mxu0 0.0
      %905 = vmatpush2.msra.mxu0 0.0
      %906 = vmatprep.subr.mxu0 0.0
      %907 = vmatpush2.msra.mxu0 0.0
      %908 = vmatprep.subr.mxu0 0.0
      %909 = vmatpush2.msra.mxu0 0.0
      %910 = vmatprep.mubr.f32.mxu0 0.0
      %911 = vmatmul.mubr.f32.gmra.mxu0 %v844
      %v912 = vpop.f32.mrf.mxu0
      %v913 = vadd.f32 0.0, %v912
      %v914 = vpop.f32.mrf.mxu0
      %915 = vdwg.mxu0
      %916 = vrot.lane.b32.xlu0 %v581, 96
      %v917 = vpop.permute.xlu0 %916
      %918 = vrot.lane.b32.xlu0 %v581, 32
      %v919 = vpop.permute.xlu0 %918
      %v920 = vsel %vm588, %v917, 0
      %v922 = vsel %vm588, %v919, 0
      %924 = vmatprep.subr.mxu0 0.0
      %925 = vmatpush1.xpose.msra.mxu0 0.0
      %926 = vmatprep.subr.mxu0 0.0
      %927 = vmatpush1.xpose.msra.mxu0 0.0
      %928 = vmatprep.subr.mxu0 0.0
      %929 = vmatpush1.xpose.msra.mxu0 0.0
      %930 = vmatprep.subr.mxu0 0.0
      %931 = vmatpush1.xpose.msra.mxu0 0.0
      %932 = vmatprep.subr.mxu0 0.0
      %933 = vmatpush1.xpose.msra.mxu0 0.0
      %934 = vmatprep.subr.mxu0 0.0
      %935 = vmatpush1.xpose.msra.mxu0 0.0
      %936 = vmatprep.subr.mxu0 0.0
      %937 = vmatpush1.xpose.msra.mxu0 0.0
      %938 = vmatprep.subr.mxu0 0.0
      %939 = vmatpush1.xpose.msra.mxu0 0.0
      %940 = vmatprep.subr.mxu0 0.0
      %941 = vmatpush1.xpose.msra.mxu0 0.0
      %942 = vmatprep.subr.mxu0 0.0
      %943 = vmatpush1.xpose.msra.mxu0 0.0
      %944 = vmatprep.subr.mxu0 0.0
      %945 = vmatpush1.xpose.msra.mxu0 0.0
      %946 = vmatprep.subr.mxu0 0.0
      %947 = vmatpush1.xpose.msra.mxu0 0.0
      %948 = vmatprep.subr.mxu0 0.0
      %949 = vmatpush1.xpose.msra.mxu0 0.0
      %950 = vmatprep.subr.mxu0 0.0
      %951 = vmatpush1.xpose.msra.mxu0 0.0
      %952 = vmatprep.subr.mxu0 0.0
      %953 = vmatpush1.xpose.msra.mxu0 0.0
      %954 = vmatprep.subr.mxu0 0.0
      %955 = vmatpush1.xpose.msra.mxu0 %v922
      %956 = vmatprep.subr.mxu0 0.0
      %957 = vmatpush2.xpose.msra.mxu0 0.0
      %958 = vmatprep.subr.mxu0 0.0
      %959 = vmatpush2.xpose.msra.mxu0 0.0
      %960 = vmatprep.subr.mxu0 0.0
      %961 = vmatpush2.xpose.msra.mxu0 0.0
      %962 = vmatprep.subr.mxu0 0.0
      %963 = vmatpush2.xpose.msra.mxu0 0.0
      %964 = vmatprep.subr.mxu0 0.0
      %965 = vmatpush2.xpose.msra.mxu0 0.0
      %966 = vmatprep.subr.mxu0 0.0
      %967 = vmatpush2.xpose.msra.mxu0 0.0
      %968 = vmatprep.subr.mxu0 0.0
      %969 = vmatpush2.xpose.msra.mxu0 0.0
      %970 = vmatprep.subr.mxu0 0.0
      %971 = vmatpush2.xpose.msra.mxu0 0.0
      %972 = vmatprep.subr.mxu0 0.0
      %973 = vmatpush2.xpose.msra.mxu0 0.0
      %974 = vmatprep.subr.mxu0 0.0
      %975 = vmatpush2.xpose.msra.mxu0 0.0
      %976 = vmatprep.subr.mxu0 0.0
      %977 = vmatpush2.xpose.msra.mxu0 0.0
      %978 = vmatprep.subr.mxu0 0.0
      %979 = vmatpush2.xpose.msra.mxu0 0.0
      %980 = vmatprep.subr.mxu0 0.0
      %981 = vmatpush2.xpose.msra.mxu0 0.0
      %982 = vmatprep.subr.mxu0 0.0
      %983 = vmatpush2.xpose.msra.mxu0 0.0
      %984 = vmatprep.subr.mxu0 0.0
      %985 = vmatpush2.xpose.msra.mxu0 0.0
      %986 = vmatprep.subr.mxu0 0.0
      %987 = vmatpush2.xpose.msra.mxu0 0.0
      %988 = vmatprep.mubr.f32.mxu0 0.0
      %989 = vmatmul.mubr.f32.gmra.mxu0 %v920
      %v990 = vpop.f32.mrf.mxu0
      %v991 = vadd.f32 0.0, %v990
      %v992 = vpop.f32.mrf.mxu0
      %993 = vdwg.mxu0
      %v994 = vmul.f32 %v991, 0.25
      %v995 = vsel %vm664, %v994, -inf
      %996 = vmax.xlane.f32.xlu0 %v995
      %v997 = vpop.xlane.xlu0 %996
      %v998 = vsub.f32 %v994, %v997
      %v999 = vmul.f32 %v998, 1.442695
      %v1000 = vpow.pop %v999
      %v1001 = vsel %vm664, %v1000, 0.0
      %1002 = vadd.xlane.f32.xlu0 %v1001
      %v1003 = vpop.xlane.xlu0 %1002
      %v1004 = vrcp.pop %v1003
      %v1005 = vmul.f32 %v1000, %v1004
      %1006 = vrot.lane.b32.xlu0 %v583, 96
      %v1007 = vpop.permute.xlu0 %1006
      %v1010 = vsel %vm664, %v1005, 0
      %1012 = vmatprep.subr.mxu0 0.0
      %1013 = vmatpush1.msra.mxu0 0.0
      %1014 = vmatprep.subr.mxu0 0.0
      %1015 = vmatpush1.msra.mxu0 0.0
      %1016 = vmatprep.subr.mxu0 0.0
      %1017 = vmatpush1.msra.mxu0 0.0
      %1018 = vmatprep.subr.mxu0 0.0
      %1019 = vmatpush1.msra.mxu0 0.0
      %1020 = vmatprep.subr.mxu0 0.0
      %1021 = vmatpush1.msra.mxu0 0.0
      %1022 = vmatprep.subr.mxu0 0.0
      %1023 = vmatpush1.msra.mxu0 0.0
      %1024 = vmatprep.subr.mxu0 0.0
      %1025 = vmatpush1.msra.mxu0 0.0
      %1026 = vmatprep.subr.mxu0 0.0
      %1027 = vmatpush1.msra.mxu0 0.0
      %1028 = vmatprep.subr.mxu0 0.0
      %1029 = vmatpush1.msra.mxu0 0.0
      %1030 = vmatprep.subr.mxu0 0.0
      %1031 = vmatpush1.msra.mxu0 0.0
      %1032 = vmatprep.subr.mxu0 0.0
      %1033 = vmatpush1.msra.mxu0 0.0
      %1034 = vmatprep.subr.mxu0 0.0
      %1035 = vmatpush1.msra.mxu0 0.0
      %1036 = vmatprep.subr.mxu0 0.0
      %1037 = vmatpush1.msra.mxu0 0.0
      %1038 = vmatprep.subr.mxu0 0.0
      %1039 = vmatpush1.msra.mxu0 0.0
      %1040 = vmatprep.subr.mxu0 0.0
      %1041 = vmatpush1.msra.mxu0 0.0
      %1042 = vmatprep.subr.mxu0 0.0
      %1043 = vmatpush1.msra.mxu0 %v1007
      %1044 = vmatprep.subr.mxu0 0.0
      %1045 = vmatpush2.msra.mxu0 0.0
      %1046 = vmatprep.subr.mxu0 0.0
      %1047 = vmatpush2.msra.mxu0 0.0
      %1048 = vmatprep.subr.mxu0 0.0
      %1049 = vmatpush2.msra.mxu0 0.0
      %1050 = vmatprep.subr.mxu0 0.0
      %1051 = vmatpush2.msra.mxu0 0.0
      %1052 = vmatprep.subr.mxu0 0.0
      %1053 = vmatpush2.msra.mxu0 0.0
      %1054 = vmatprep.subr.mxu0 0.0
      %1055 = vmatpush2.msra.mxu0 0.0
      %1056 = vmatprep.subr.mxu0 0.0
      %1057 = vmatpush2.msra.mxu0 0.0
      %1058 = vmatprep.subr.mxu0 0.0
      %1059 = vmatpush2.msra.mxu0 0.0
      %1060 = vmatprep.subr.mxu0 0.0
      %1061 = vmatpush2.msra.mxu0 0.0
      %1062 = vmatprep.subr.mxu0 0.0
      %1063 = vmatpush2.msra.mxu0 0.0
      %1064 = vmatprep.subr.mxu0 0.0
      %1065 = vmatpush2.msra.mxu0 0.0
      %1066 = vmatprep.subr.mxu0 0.0
      %1067 = vmatpush2.msra.mxu0 0.0
      %1068 = vmatprep.subr.mxu0 0.0
      %1069 = vmatpush2.msra.mxu0 0.0
      %1070 = vmatprep.subr.mxu0 0.0
      %1071 = vmatpush2.msra.mxu0 0.0
      %1072 = vmatprep.subr.mxu0 0.0
      %1073 = vmatpush2.msra.mxu0 0.0
      %1074 = vmatprep.subr.mxu0 0.0
      %1075 = vmatpush2.msra.mxu0 0.0
      %1076 = vmatprep.mubr.f32.mxu0 0.0
      %1077 = vmatmul.mubr.f32.gmra.mxu0 %v1010
      %v1078 = vpop.f32.mrf.mxu0
      %v1079 = vadd.f32 0.0, %v1078
      %v1080 = vpop.f32.mrf.mxu0
      %1081 = vdwg.mxu0
      %1082 = vrot.lane.b32.xlu0 %v581, 80
      %v1083 = vpop.permute.xlu0 %1082
      %1084 = vrot.lane.b32.xlu0 %v581, 16
      %v1085 = vpop.permute.xlu0 %1084
      %v1086 = vsel %vm588, %v1083, 0
      %v1088 = vsel %vm588, %v1085, 0
      %1090 = vmatprep.subr.mxu0 0.0
      %1091 = vmatpush1.xpose.msra.mxu0 0.0
      %1092 = vmatprep.subr.mxu0 0.0
      %1093 = vmatpush1.xpose.msra.mxu0 0.0
      %1094 = vmatprep.subr.mxu0 0.0
      %1095 = vmatpush1.xpose.msra.mxu0 0.0
      %1096 = vmatprep.subr.mxu0 0.0
      %1097 = vmatpush1.xpose.msra.mxu0 0.0
      %1098 = vmatprep.subr.mxu0 0.0
      %1099 = vmatpush1.xpose.msra.mxu0 0.0
      %1100 = vmatprep.subr.mxu0 0.0
      %1101 = vmatpush1.xpose.msra.mxu0 0.0
      %1102 = vmatprep.subr.mxu0 0.0
      %1103 = vmatpush1.xpose.msra.mxu0 0.0
      %1104 = vmatprep.subr.mxu0 0.0
      %1105 = vmatpush1.xpose.msra.mxu0 0.0
      %1106 = vmatprep.subr.mxu0 0.0
      %1107 = vmatpush1.xpose.msra.mxu0 0.0
      %1108 = vmatprep.subr.mxu0 0.0
      %1109 = vmatpush1.xpose.msra.mxu0 0.0
      %1110 = vmatprep.subr.mxu0 0.0
      %1111 = vmatpush1.xpose.msra.mxu0 0.0
      %1112 = vmatprep.subr.mxu0 0.0
      %1113 = vmatpush1.xpose.msra.mxu0 0.0
      %1114 = vmatprep.subr.mxu0 0.0
      %1115 = vmatpush1.xpose.msra.mxu0 0.0
      %1116 = vmatprep.subr.mxu0 0.0
      %1117 = vmatpush1.xpose.msra.mxu0 0.0
      %1118 = vmatprep.subr.mxu0 0.0
      %1119 = vmatpush1.xpose.msra.mxu0 0.0
      %1120 = vmatprep.subr.mxu0 0.0
      %1121 = vmatpush1.xpose.msra.mxu0 %v1088
      %1122 = vmatprep.subr.mxu0 0.0
      %1123 = vmatpush2.xpose.msra.mxu0 0.0
      %1124 = vmatprep.subr.mxu0 0.0
      %1125 = vmatpush2.xpose.msra.mxu0 0.0
      %1126 = vmatprep.subr.mxu0 0.0
      %1127 = vmatpush2.xpose.msra.mxu0 0.0
      %1128 = vmatprep.subr.mxu0 0.0
      %1129 = vmatpush2.xpose.msra.mxu0 0.0
      %1130 = vmatprep.subr.mxu0 0.0
      %1131 = vmatpush2.xpose.msra.mxu0 0.0
      %1132 = vmatprep.subr.mxu0 0.0
      %1133 = vmatpush2.xpose.msra.mxu0 0.0
      %1134 = vmatprep.subr.mxu0 0.0
      %1135 = vmatpush2.xpose.msra.mxu0 0.0
      %1136 = vmatprep.subr.mxu0 0.0
      %1137 = vmatpush2.xpose.msra.mxu0 0.0
      %1138 = vmatprep.subr.mxu0 0.0
      %1139 = vmatpush2.xpose.msra.mxu0 0.0
      %1140 = vmatprep.subr.mxu0 0.0
      %1141 = vmatpush2.xpose.msra.mxu0 0.0
      %1142 = vmatprep.subr.mxu0 0.0
      %1143 = vmatpush2.xpose.msra.mxu0 0.0
      %1144 = vmatprep.subr.mxu0 0.0
      %1145 = vmatpush2.xpose.msra.mxu0 0.0
      %1146 = vmatprep.subr.mxu0 0.0
      %1147 = vmatpush2.xpose.msra.mxu0 0.0
      %1148 = vmatprep.subr.mxu0 0.0
      %1149 = vmatpush2.xpose.msra.mxu0 0.0
      %1150 = vmatprep.subr.mxu0 0.0
      %1151 = vmatpush2.xpose.msra.mxu0 0.0
      %1152 = vmatprep.subr.mxu0 0.0
      %1153 = vmatpush2.xpose.msra.mxu0 0.0
      %1154 = vmatprep.mubr.f32.mxu0 0.0
      %1155 = vmatmul.mubr.f32.gmra.mxu0 %v1086
      %v1156 = vpop.f32.mrf.mxu0
      %v1157 = vadd.f32 0.0, %v1156
      %v1158 = vpop.f32.mrf.mxu0
      %1159 = vdwg.mxu0
      %v1160 = vmul.f32 %v1157, 0.25
      %v1161 = vsel %vm664, %v1160, -inf
      %1162 = vmax.xlane.f32.xlu0 %v1161
      %v1163 = vpop.xlane.xlu0 %1162
      %v1164 = vsub.f32 %v1160, %v1163
      %v1165 = vmul.f32 %v1164, 1.442695
      %v1166 = vpow.pop %v1165
      %v1167 = vsel %vm664, %v1166, 0.0
      %1168 = vadd.xlane.f32.xlu0 %v1167
      %v1169 = vpop.xlane.xlu0 %1168
      %v1170 = vrcp.pop %v1169
      %v1171 = vmul.f32 %v1166, %v1170
      %1172 = vrot.lane.b32.xlu0 %v583, 80
      %v1173 = vpop.permute.xlu0 %1172
      %v1176 = vsel %vm664, %v1171, 0
      %1178 = vmatprep.subr.mxu0 0.0
      %1179 = vmatpush1.msra.mxu0 0.0
      %1180 = vmatprep.subr.mxu0 0.0
      %1181 = vmatpush1.msra.mxu0 0.0
      %1182 = vmatprep.subr.mxu0 0.0
      %1183 = vmatpush1.msra.mxu0 0.0
      %1184 = vmatprep.subr.mxu0 0.0
      %1185 = vmatpush1.msra.mxu0 0.0
      %1186 = vmatprep.subr.mxu0 0.0
      %1187 = vmatpush1.msra.mxu0 0.0
      %1188 = vmatprep.subr.mxu0 0.0
      %1189 = vmatpush1.msra.mxu0 0.0
      %1190 = vmatprep.subr.mxu0 0.0
      %1191 = vmatpush1.msra.mxu0 0.0
      %1192 = vmatprep.subr.mxu0 0.0
      %1193 = vmatpush1.msra.mxu0 0.0
      %1194 = vmatprep.subr.mxu0 0.0
      %1195 = vmatpush1.msra.mxu0 0.0
      %1196 = vmatprep.subr.mxu0 0.0
      %1197 = vmatpush1.msra.mxu0 0.0
      %1198 = vmatprep.subr.mxu0 0.0
      %1199 = vmatpush1.msra.mxu0 0.0
      %1200 = vmatprep.subr.mxu0 0.0
      %1201 = vmatpush1.msra.mxu0 0.0
      %1202 = vmatprep.subr.mxu0 0.0
      %1203 = vmatpush1.msra.mxu0 0.0
      %1204 = vmatprep.subr.mxu0 0.0
      %1205 = vmatpush1.msra.mxu0 0.0
      %1206 = vmatprep.subr.mxu0 0.0
      %1207 = vmatpush1.msra.mxu0 0.0
      %1208 = vmatprep.subr.mxu0 0.0
      %1209 = vmatpush1.msra.mxu0 %v1173
      %1210 = vmatprep.subr.mxu0 0.0
      %1211 = vmatpush2.msra.mxu0 0.0
      %1212 = vmatprep.subr.mxu0 0.0
      %1213 = vmatpush2.msra.mxu0 0.0
      %1214 = vmatprep.subr.mxu0 0.0
      %1215 = vmatpush2.msra.mxu0 0.0
      %1216 = vmatprep.subr.mxu0 0.0
      %1217 = vmatpush2.msra.mxu0 0.0
      %1218 = vmatprep.subr.mxu0 0.0
      %1219 = vmatpush2.msra.mxu0 0.0
      %1220 = vmatprep.subr.mxu0 0.0
      %1221 = vmatpush2.msra.mxu0 0.0
      %1222 = vmatprep.subr.mxu0 0.0
      %1223 = vmatpush2.msra.mxu0 0.0
      %1224 = vmatprep.subr.mxu0 0.0
      %1225 = vmatpush2.msra.mxu0 0.0
      %1226 = vmatprep.subr.mxu0 0.0
      %1227 = vmatpush2.msra.mxu0 0.0
      %1228 = vmatprep.subr.mxu0 0.0
      %1229 = vmatpush2.msra.mxu0 0.0
      %1230 = vmatprep.subr.mxu0 0.0
      %1231 = vmatpush2.msra.mxu0 0.0
      %1232 = vmatprep.subr.mxu0 0.0
      %1233 = vmatpush2.msra.mxu0 0.0
      %1234 = vmatprep.subr.mxu0 0.0
      %1235 = vmatpush2.msra.mxu0 0.0
      %1236 = vmatprep.subr.mxu0 0.0
      %1237 = vmatpush2.msra.mxu0 0.0
      %1238 = vmatprep.subr.mxu0 0.0
      %1239 = vmatpush2.msra.mxu0 0.0
      %1240 = vmatprep.subr.mxu0 0.0
      %1241 = vmatpush2.msra.mxu0 0.0
      %1242 = vmatprep.mubr.f32.mxu0 0.0
      %1243 = vmatmul.mubr.f32.gmra.mxu0 %v1176
      %v1244 = vpop.f32.mrf.mxu0
      %v1245 = vadd.f32 0.0, %v1244
      %v1246 = vpop.f32.mrf.mxu0
      %1247 = vdwg.mxu0
      %1249 = vrot.lane.b32.xlu0 %v913, 16
      %v1250 = vpop.permute.xlu0 %1249
      %1253 = vrot.lane.b32.xlu0 %v1079, 32
      %v1254 = vpop.permute.xlu0 %1253
      %1257 = vrot.lane.b32.xlu0 %v1245, 48
      %v1258 = vpop.permute.xlu0 %1257
      %v1260 = vsel %vm588, %v746, %v1250
      %vm1261 = vcmask 261120
      %v1262 = vsel %vm1261, %v1260, %v1254
      %vm1263 = vcmask 392192
      %v1264 = vsel %vm1263, %v1262, %v1258
      %v1265 = vld [vmem:[%s4] sm:$0xff]
      %v1266 = vld [vmem:[%s4 + $0x8] sm:$0xff]
      %v1267 = vld [vmem:[%s4 + $0x10] sm:$0xff]
      %v1268 = vld [vmem:[%s4 + $0x18] sm:$0xff]
      %v1269 = vld [vmem:[%s4 + $0x20] sm:$0xff]
      %v1270 = vld [vmem:[%s4 + $0x28] sm:$0xff]
      %v1271 = vld [vmem:[%s4 + $0x30] sm:$0xff]
      %v1272 = vld [vmem:[%s4 + $0x38] sm:$0xff]
      %v1274 = vsel %vm466, %v1264, 0
      %1276 = vmatprep.subr.mxu0 0.0
      %1277 = vmatpush1.msra.mxu0 0.0
      %1278 = vmatprep.subr.mxu0 0.0
      %1279 = vmatpush1.msra.mxu0 0.0
      %1280 = vmatprep.subr.mxu0 0.0
      %1281 = vmatpush1.msra.mxu0 0.0
      %1282 = vmatprep.subr.mxu0 0.0
      %1283 = vmatpush1.msra.mxu0 0.0
      %1284 = vmatprep.subr.mxu0 0.0
      %1285 = vmatpush1.msra.mxu0 0.0
      %1286 = vmatprep.subr.mxu0 0.0
      %1287 = vmatpush1.msra.mxu0 0.0
      %1288 = vmatprep.subr.mxu0 0.0
      %1289 = vmatpush1.msra.mxu0 0.0
      %1290 = vmatprep.subr.mxu0 0.0
      %1291 = vmatpush1.msra.mxu0 0.0
      %1292 = vmatprep.subr.mxu0 0.0
      %1293 = vmatpush1.msra.mxu0 %v1272
      %1294 = vmatprep.subr.mxu0 0.0
      %1295 = vmatpush1.msra.mxu0 %v1271
      %1296 = vmatprep.subr.mxu0 0.0
      %1297 = vmatpush1.msra.mxu0 %v1270
      %1298 = vmatprep.subr.mxu0 0.0
      %1299 = vmatpush1.msra.mxu0 %v1269
      %1300 = vmatprep.subr.mxu0 0.0
      %1301 = vmatpush1.msra.mxu0 %v1268
      %1302 = vmatprep.subr.mxu0 0.0
      %1303 = vmatpush1.msra.mxu0 %v1267
      %1304 = vmatprep.subr.mxu0 0.0
      %1305 = vmatpush1.msra.mxu0 %v1266
      %1306 = vmatprep.subr.mxu0 0.0
      %1307 = vmatpush1.msra.mxu0 %v1265
      %1308 = vmatprep.subr.mxu0 0.0
      %1309 = vmatpush2.msra.mxu0 0.0
      %1310 = vmatprep.subr.mxu0 0.0
      %1311 = vmatpush2.msra.mxu0 0.0
      %1312 = vmatprep.subr.mxu0 0.0
      %1313 = vmatpush2.msra.mxu0 0.0
      %1314 = vmatprep.subr.mxu0 0.0
      %1315 = vmatpush2.msra.mxu0 0.0
      %1316 = vmatprep.subr.mxu0 0.0
      %1317 = vmatpush2.msra.mxu0 0.0
      %1318 = vmatprep.subr.mxu0 0.0
      %1319 = vmatpush2.msra.mxu0 0.0
      %1320 = vmatprep.subr.mxu0 0.0
      %1321 = vmatpush2.msra.mxu0 0.0
      %1322 = vmatprep.subr.mxu0 0.0
      %1323 = vmatpush2.msra.mxu0 0.0
      %1324 = vmatprep.subr.mxu0 0.0
      %1325 = vmatpush2.msra.mxu0 0.0
      %1326 = vmatprep.subr.mxu0 0.0
      %1327 = vmatpush2.msra.mxu0 0.0
      %1328 = vmatprep.subr.mxu0 0.0
      %1329 = vmatpush2.msra.mxu0 0.0
      %1330 = vmatprep.subr.mxu0 0.0
      %1331 = vmatpush2.msra.mxu0 0.0
      %1332 = vmatprep.subr.mxu0 0.0
      %1333 = vmatpush2.msra.mxu0 0.0
      %1334 = vmatprep.subr.mxu0 0.0
      %1335 = vmatpush2.msra.mxu0 0.0
      %1336 = vmatprep.subr.mxu0 0.0
      %1337 = vmatpush2.msra.mxu0 0.0
      %1338 = vmatprep.subr.mxu0 0.0
      %1339 = vmatpush2.msra.mxu0 0.0
      %1340 = vmatprep.mubr.f32.mxu0 0.0
      %1341 = vmatmul.mubr.f32.gmra.mxu0 %v1274
      %v1342 = vpop.f32.mrf.mxu0
      %v1343 = vadd.f32 0.0, %v1342
      %v1344 = vpop.f32.mrf.mxu0
      %1345 = vdwg.mxu0
      %v1346 = vadd.f32 %v463, %v1343
      %v1347 = vld [vmem:[%s5] sm:$0x1]
      %v1349 = vlaneseq
      %v1350 = vshrl.u32 %v1349, 7
      %v1351 = vsub.s32 0, %v1350
      %v1352 = vrot.slane %v1347, %v1351
      %v1354 = vadd.f32 %v1346, %v1352
      %v1355 = vld [vmem:[%s6] sm:$0x1]
      %v1356 = vld [vmem:[%s7] sm:$0x1]
      %v1357 = vsel %vm466, %v1354, 0.0
      %1358 = vadd.xlane.f32.xlu0 %v1357
      %v1359 = vpop.xlane.xlu0 %1358
      %v1360 = vmul.f32 %v1359, %v470
      %v1361 = vsub.f32 %v1354, %v1360
      %v1362 = vmul.f32 %v1361, %v1361
      %v1363 = vsel %vm466, %v1362, 0.0
      %1364 = vadd.xlane.f32.xlu0 %v1363
      %v1365 = vpop.xlane.xlu0 %1364
      %v1366 = vmul.f32 %v1365, %v470
      %v1367 = vadd.f32 %v1366, 1e-05
      %v1368 = vrsqrt.pop %v1367
      %v1369 = vmul.f32 %v1361, %v1368
      %v1371 = vlaneseq
      %v1372 = vshrl.u32 %v1371, 7
      %v1373 = vsub.s32 0, %v1372
      %v1374 = vrot.slane %v1355, %v1373
      %v1376 = vmul.f32 %v1369, %v1374
      %v1378 = vlaneseq
      %v1379 = vshrl.u32 %v1378, 7
      %v1380 = vsub.s32 0, %v1379
      %v1381 = vrot.slane %v1356, %v1380
      %v1383 = vadd.f32 %v1376, %v1381
      %v1384 = vld [vmem:[%s8] sm:$0xff]
      %v1385 = vld [vmem:[%s8 + $0x8] sm:$0xff]
      %v1386 = vld [vmem:[%s8 + $0x10] sm:$0xff]
      %v1387 = vld [vmem:[%s8 + $0x18] sm:$0xff]
      %v1388 = vld [vmem:[%s8 + $0x20] sm:$0xff]
      %v1389 = vld [vmem:[%s8 + $0x28] sm:$0xff]
      %v1390 = vld [vmem:[%s8 + $0x30] sm:$0xff]
      %v1391 = vld [vmem:[%s8 + $0x38] sm:$0xff]
      %v1392 = vld [vmem:[%s8 + $0x40] sm:$0xff]
      %v1393 = vld [vmem:[%s8 + $0x48] sm:$0xff]
      %v1394 = vld [vmem:[%s8 + $0x50] sm:$0xff]
      %v1395 = vld [vmem:[%s8 + $0x58] sm:$0xff]
      %v1396 = vld [vmem:[%s8 + $0x60] sm:$0xff]
      %v1397 = vld [vmem:[%s8 + $0x68] sm:$0xff]
      %v1398 = vld [vmem:[%s8 + $0x70] sm:$0xff]
      %v1399 = vld [vmem:[%s8 + $0x78] sm:$0xff]
      %v1400 = vld [vmem:[%s9] sm:$0x3]
      %v1402 = vlaneseq
      %v1403 = vshrl.u32 %v1402, 7
      %v1404 = vsub.s32 0, %v1403
      %v1405 = vrot.slane %v1400, %v1404
      %v1406 = vlaneseq
      %v1407 = vshrl.u32 %v1406, 7
      %v1408 = vsub.s32 1, %v1407
      %v1409 = vrot.slane %v1400, %v1408
      %v1413 = vsel %vm466, %v1383, 0
      %1415 = vmatprep.subr.mxu0 0.0
      %1416 = vmatpush1.msra.mxu0 0.0
      %1417 = vmatprep.subr.mxu0 0.0
      %1418 = vmatpush1.msra.mxu0 0.0
      %1419 = vmatprep.subr.mxu0 0.0
      %1420 = vmatpush1.msra.mxu0 0.0
      %1421 = vmatprep.subr.mxu0 0.0
      %1422 = vmatpush1.msra.mxu0 0.0
      %1423 = vmatprep.subr.mxu0 0.0
      %1424 = vmatpush1.msra.mxu0 0.0
      %1425 = vmatprep.subr.mxu0 0.0
      %1426 = vmatpush1.msra.mxu0 0.0
      %1427 = vmatprep.subr.mxu0 0.0
      %1428 = vmatpush1.msra.mxu0 0.0
      %1429 = vmatprep.subr.mxu0 0.0
      %1430 = vmatpush1.msra.mxu0 0.0
      %1431 = vmatprep.subr.mxu0 %v1399
      %1432 = vmatpush1.msra.mxu0 %v1398
      %1433 = vmatprep.subr.mxu0 %v1397
      %1434 = vmatpush1.msra.mxu0 %v1396
      %1435 = vmatprep.subr.mxu0 %v1395
      %1436 = vmatpush1.msra.mxu0 %v1394
      %1437 = vmatprep.subr.mxu0 %v1393
      %1438 = vmatpush1.msra.mxu0 %v1392
      %1439 = vmatprep.subr.mxu0 %v1391
      %1440 = vmatpush1.msra.mxu0 %v1390
      %1441 = vmatprep.subr.mxu0 %v1389
      %1442 = vmatpush1.msra.mxu0 %v1388
      %1443 = vmatprep.subr.mxu0 %v1387
      %1444 = vmatpush1.msra.mxu0 %v1386
      %1445 = vmatprep.subr.mxu0 %v1385
      %1446 = vmatpush1.msra.mxu0 %v1384
      %1447 = vmatprep.subr.mxu0 0.0
      %1448 = vmatpush2.msra.mxu0 0.0
      %1449 = vmatprep.subr.mxu0 0.0
      %1450 = vmatpush2.msra.mxu0 0.0
      %1451 = vmatprep.subr.mxu0 0.0
      %1452 = vmatpush2.msra.mxu0 0.0
      %1453 = vmatprep.subr.mxu0 0.0
      %1454 = vmatpush2.msra.mxu0 0.0
      %1455 = vmatprep.subr.mxu0 0.0
      %1456 = vmatpush2.msra.mxu0 0.0
      %1457 = vmatprep.subr.mxu0 0.0
      %1458 = vmatpush2.msra.mxu0 0.0
      %1459 = vmatprep.subr.mxu0 0.0
      %1460 = vmatpush2.msra.mxu0 0.0
      %1461 = vmatprep.subr.mxu0 0.0
      %1462 = vmatpush2.msra.mxu0 0.0
      %1463 = vmatprep.subr.mxu0 0.0
      %1464 = vmatpush2.msra.mxu0 0.0
      %1465 = vmatprep.subr.mxu0 0.0
      %1466 = vmatpush2.msra.mxu0 0.0
      %1467 = vmatprep.subr.mxu0 0.0
      %1468 = vmatpush2.msra.mxu0 0.0
      %1469 = vmatprep.subr.mxu0 0.0
      %1470 = vmatpush2.msra.mxu0 0.0
      %1471 = vmatprep.subr.mxu0 0.0
      %1472 = vmatpush2.msra.mxu0 0.0
      %1473 = vmatprep.subr.mxu0 0.0
      %1474 = vmatpush2.msra.mxu0 0.0
      %1475 = vmatprep.subr.mxu0 0.0
      %1476 = vmatpush2.msra.mxu0 0.0
      %1477 = vmatprep.subr.mxu0 0.0
      %1478 = vmatpush2.msra.mxu0 0.0
      %1479 = vmatprep.mubr.f32.mxu0 0.0
      %1480 = vmatmul.mubr.f32.gmra.mxu0 %v1413
      %v1481 = vpop.f32.mrf.mxu0
      %v1482 = vadd.f32 %v1405, %v1481
      %v1483 = vpop.f32.mrf.mxu0
      %v1484 = vadd.f32 %v1409, %v1483
      %1485 = vdwg.mxu0
      %v1486 = vxor.u32 %v1484, 2147483648
      %v1487 = vmul.f32 %v1486, 1.442695
      %v1488 = vpow.pop %v1487
      %v1489 = vadd.f32 %v1488, 1.0
      %v1490 = vrcp.pop %v1489
      %v1491 = vmul.f32 1.0, %v1490
      %v1492 = vmul.f32 %v1482, %v1491
      %1493 = vst [vmem:[#allocation2] sm:$0xff] 0.0
      %1494 = vst [vmem:[#allocation2 + $0x8] sm:$0xff] 0.0
      %1495 = vst [vmem:[#allocation2 + $0x10] sm:$0xff] 0.0
      %1496 = vst [vmem:[#allocation2 + $0x18] sm:$0xff] 0.0
      %1497 = vst [vmem:[#allocation2 + $0x20] sm:$0x3f] 0.0
      %1498 = vst [vmem:[#allocation2 + $0xf] sm:$0xff] %v1492
      %v1499 = vld [vmem:[#allocation2] sm:$0xff]
      %v1500 = vld [vmem:[%s10] sm:$0x1]
      %v1501 = vlaneseq
      %v1502 = vshrl.u32 %v1501, 7
      %v1503 = vsub.s32 0, %v1502
      %v1504 = vrot.slane %v1500, %v1503
      %v1505 = vmul.f32 %v1499, %v1504
      %v1506 = vadd.f32 %v1505, 0.0
      %v1507 = vld [vmem:[#allocation2 + $0x1] sm:$0xff]
      %v1508 = vld [vmem:[%s10 + $0x1] sm:$0x1]
      %v1509 = vlaneseq
      %v1510 = vshrl.u32 %v1509, 7
      %v1511 = vsub.s32 0, %v1510
      %v1512 = vrot.slane %v1508, %v1511
      %v1513 = vmul.f32 %v1507, %v1512
      %v1514 = vadd.f32 %v1506, %v1513
      %v1515 = vld [vmem:[#allocation2 + $0x2] sm:$0xff]
      %v1516 = vld [vmem:[%s10 + $0x2] sm:$0x1]
      %v1517 = vlaneseq
      %v1518 = vshrl.u32 %v1517, 7
      %v1519 = vsub.s32 0, %v1518
      %v1520 = vrot.slane %v1516, %v1519
      %v1521 = vmul.f32 %v1515, %v1520
      %v1522 = vadd.f32 %v1514, %v1521
      %v1523 = vld [vmem:[#allocation2 + $0x3] sm:$0xff]
      %v1524 = vld [vmem:[%s10 + $0x3] sm:$0x1]
      %v1525 = vlaneseq
      %v1526 = vshrl.u32 %v1525, 7
      %v1527 = vsub.s32 0, %v1526
      %v1528 = vrot.slane %v1524, %v1527
      %v1529 = vmul.f32 %v1523, %v1528
      %v1530 = vadd.f32 %v1522, %v1529
      %v1531 = vld [vmem:[#allocation2 + $0x4] sm:$0xff]
      %v1532 = vld [vmem:[%s10 + $0x4] sm:$0x1]
      %v1533 = vlaneseq
      %v1534 = vshrl.u32 %v1533, 7
      %v1535 = vsub.s32 0, %v1534
      %v1536 = vrot.slane %v1532, %v1535
      %v1537 = vmul.f32 %v1531, %v1536
      %v1538 = vadd.f32 %v1530, %v1537
      %v1539 = vld [vmem:[#allocation2 + $0x5] sm:$0xff]
      %v1540 = vld [vmem:[%s10 + $0x5] sm:$0x1]
      %v1541 = vlaneseq
      %v1542 = vshrl.u32 %v1541, 7
      %v1543 = vsub.s32 0, %v1542
      %v1544 = vrot.slane %v1540, %v1543
      %v1545 = vmul.f32 %v1539, %v1544
      %v1546 = vadd.f32 %v1538, %v1545
      %v1547 = vld [vmem:[#allocation2 + $0x6] sm:$0xff]
      %v1548 = vld [vmem:[%s10 + $0x6] sm:$0x1]
      %v1549 = vlaneseq
      %v1550 = vshrl.u32 %v1549, 7
      %v1551 = vsub.s32 0, %v1550
      %v1552 = vrot.slane %v1548, %v1551
      %v1553 = vmul.f32 %v1547, %v1552
      %v1554 = vadd.f32 %v1546, %v1553
      %v1555 = vld [vmem:[#allocation2 + $0x7] sm:$0xff]
      %v1556 = vld [vmem:[%s10 + $0x7] sm:$0x1]
      %v1557 = vlaneseq
      %v1558 = vshrl.u32 %v1557, 7
      %v1559 = vsub.s32 0, %v1558
      %v1560 = vrot.slane %v1556, %v1559
      %v1561 = vmul.f32 %v1555, %v1560
      %v1562 = vadd.f32 %v1554, %v1561
      %v1563 = vld [vmem:[#allocation2 + $0x8] sm:$0xff]
      %v1564 = vld [vmem:[%s10 + $0x8] sm:$0x1]
      %v1565 = vlaneseq
      %v1566 = vshrl.u32 %v1565, 7
      %v1567 = vsub.s32 0, %v1566
      %v1568 = vrot.slane %v1564, %v1567
      %v1569 = vmul.f32 %v1563, %v1568
      %v1570 = vadd.f32 %v1562, %v1569
      %v1571 = vld [vmem:[#allocation2 + $0x9] sm:$0xff]
      %v1572 = vld [vmem:[%s10 + $0x9] sm:$0x1]
      %v1573 = vlaneseq
      %v1574 = vshrl.u32 %v1573, 7
      %v1575 = vsub.s32 0, %v1574
      %v1576 = vrot.slane %v1572, %v1575
      %v1577 = vmul.f32 %v1571, %v1576
      %v1578 = vadd.f32 %v1570, %v1577
      %v1579 = vld [vmem:[#allocation2 + $0xa] sm:$0xff]
      %v1580 = vld [vmem:[%s10 + $0xa] sm:$0x1]
      %v1581 = vlaneseq
      %v1582 = vshrl.u32 %v1581, 7
      %v1583 = vsub.s32 0, %v1582
      %v1584 = vrot.slane %v1580, %v1583
      %v1585 = vmul.f32 %v1579, %v1584
      %v1586 = vadd.f32 %v1578, %v1585
      %v1587 = vld [vmem:[#allocation2 + $0xb] sm:$0xff]
      %v1588 = vld [vmem:[%s10 + $0xb] sm:$0x1]
      %v1589 = vlaneseq
      %v1590 = vshrl.u32 %v1589, 7
      %v1591 = vsub.s32 0, %v1590
      %v1592 = vrot.slane %v1588, %v1591
      %v1593 = vmul.f32 %v1587, %v1592
      %v1594 = vadd.f32 %v1586, %v1593
      %v1595 = vld [vmem:[#allocation2 + $0xc] sm:$0xff]
      %v1596 = vld [vmem:[%s10 + $0xc] sm:$0x1]
      %v1597 = vlaneseq
      %v1598 = vshrl.u32 %v1597, 7
      %v1599 = vsub.s32 0, %v1598
      %v1600 = vrot.slane %v1596, %v1599
      %v1601 = vmul.f32 %v1595, %v1600
      %v1602 = vadd.f32 %v1594, %v1601
      %v1603 = vld [vmem:[#allocation2 + $0xd] sm:$0xff]
      %v1604 = vld [vmem:[%s10 + $0xd] sm:$0x1]
      %v1605 = vlaneseq
      %v1606 = vshrl.u32 %v1605, 7
      %v1607 = vsub.s32 0, %v1606
      %v1608 = vrot.slane %v1604, %v1607
      %v1609 = vmul.f32 %v1603, %v1608
      %v1610 = vadd.f32 %v1602, %v1609
      %v1611 = vld [vmem:[#allocation2 + $0xe] sm:$0xff]
      %v1612 = vld [vmem:[%s10 + $0xe] sm:$0x1]
      %v1613 = vlaneseq
      %v1614 = vshrl.u32 %v1613, 7
      %v1615 = vsub.s32 0, %v1614
      %v1616 = vrot.slane %v1612, %v1615
      %v1617 = vmul.f32 %v1611, %v1616
      %v1618 = vadd.f32 %v1610, %v1617
      %v1619 = vld [vmem:[#allocation2 + $0xf] sm:$0xff]
      %v1620 = vld [vmem:[%s10 + $0xf] sm:$0x1]
      %v1621 = vlaneseq
      %v1622 = vshrl.u32 %v1621, 7
      %v1623 = vsub.s32 0, %v1622
      %v1624 = vrot.slane %v1620, %v1623
      %v1625 = vmul.f32 %v1619, %v1624
      %v1626 = vadd.f32 %v1618, %v1625
      %v1627 = vld [vmem:[#allocation2 + $0x10] sm:$0xff]
      %v1628 = vld [vmem:[%s10 + $0x10] sm:$0x1]
      %v1629 = vlaneseq
      %v1630 = vshrl.u32 %v1629, 7
      %v1631 = vsub.s32 0, %v1630
      %v1632 = vrot.slane %v1628, %v1631
      %v1633 = vmul.f32 %v1627, %v1632
      %v1634 = vadd.f32 %v1626, %v1633
      %v1635 = vld [vmem:[#allocation2 + $0x11] sm:$0xff]
      %v1636 = vld [vmem:[%s10 + $0x11] sm:$0x1]
      %v1637 = vlaneseq
      %v1638 = vshrl.u32 %v1637, 7
      %v1639 = vsub.s32 0, %v1638
      %v1640 = vrot.slane %v1636, %v1639
      %v1641 = vmul.f32 %v1635, %v1640
      %v1642 = vadd.f32 %v1634, %v1641
      %v1643 = vld [vmem:[#allocation2 + $0x12] sm:$0xff]
      %v1644 = vld [vmem:[%s10 + $0x12] sm:$0x1]
      %v1645 = vlaneseq
      %v1646 = vshrl.u32 %v1645, 7
      %v1647 = vsub.s32 0, %v1646
      %v1648 = vrot.slane %v1644, %v1647
      %v1649 = vmul.f32 %v1643, %v1648
      %v1650 = vadd.f32 %v1642, %v1649
      %v1651 = vld [vmem:[#allocation2 + $0x13] sm:$0xff]
      %v1652 = vld [vmem:[%s10 + $0x13] sm:$0x1]
      %v1653 = vlaneseq
      %v1654 = vshrl.u32 %v1653, 7
      %v1655 = vsub.s32 0, %v1654
      %v1656 = vrot.slane %v1652, %v1655
      %v1657 = vmul.f32 %v1651, %v1656
      %v1658 = vadd.f32 %v1650, %v1657
      %v1659 = vld [vmem:[#allocation2 + $0x14] sm:$0xff]
      %v1660 = vld [vmem:[%s10 + $0x14] sm:$0x1]
      %v1661 = vlaneseq
      %v1662 = vshrl.u32 %v1661, 7
      %v1663 = vsub.s32 0, %v1662
      %v1664 = vrot.slane %v1660, %v1663
      %v1665 = vmul.f32 %v1659, %v1664
      %v1666 = vadd.f32 %v1658, %v1665
      %v1667 = vld [vmem:[#allocation2 + $0x15] sm:$0xff]
      %v1668 = vld [vmem:[%s10 + $0x15] sm:$0x1]
      %v1669 = vlaneseq
      %v1670 = vshrl.u32 %v1669, 7
      %v1671 = vsub.s32 0, %v1670
      %v1672 = vrot.slane %v1668, %v1671
      %v1673 = vmul.f32 %v1667, %v1672
      %v1674 = vadd.f32 %v1666, %v1673
      %v1675 = vld [vmem:[#allocation2 + $0x16] sm:$0xff]
      %v1676 = vld [vmem:[%s10 + $0x16] sm:$0x1]
      %v1677 = vlaneseq
      %v1678 = vshrl.u32 %v1677, 7
      %v1679 = vsub.s32 0, %v1678
      %v1680 = vrot.slane %v1676, %v1679
      %v1681 = vmul.f32 %v1675, %v1680
      %v1682 = vadd.f32 %v1674, %v1681
      %v1683 = vld [vmem:[#allocation2 + $0x17] sm:$0xff]
      %v1684 = vld [vmem:[%s10 + $0x17] sm:$0x1]
      %v1685 = vlaneseq
      %v1686 = vshrl.u32 %v1685, 7
      %v1687 = vsub.s32 0, %v1686
      %v1688 = vrot.slane %v1684, %v1687
      %v1689 = vmul.f32 %v1683, %v1688
      %v1690 = vadd.f32 %v1682, %v1689
      %v1691 = vld [vmem:[#allocation2 + $0x18] sm:$0xff]
      %v1692 = vld [vmem:[%s10 + $0x18] sm:$0x1]
      %v1693 = vlaneseq
      %v1694 = vshrl.u32 %v1693, 7
      %v1695 = vsub.s32 0, %v1694
      %v1696 = vrot.slane %v1692, %v1695
      %v1697 = vmul.f32 %v1691, %v1696
      %v1698 = vadd.f32 %v1690, %v1697
      %v1699 = vld [vmem:[#allocation2 + $0x19] sm:$0xff]
      %v1700 = vld [vmem:[%s10 + $0x19] sm:$0x1]
      %v1701 = vlaneseq
      %v1702 = vshrl.u32 %v1701, 7
      %v1703 = vsub.s32 0, %v1702
      %v1704 = vrot.slane %v1700, %v1703
      %v1705 = vmul.f32 %v1699, %v1704
      %v1706 = vadd.f32 %v1698, %v1705
      %v1707 = vld [vmem:[#allocation2 + $0x1a] sm:$0xff]
      %v1708 = vld [vmem:[%s10 + $0x1a] sm:$0x1]
      %v1709 = vlaneseq
      %v1710 = vshrl.u32 %v1709, 7
      %v1711 = vsub.s32 0, %v1710
      %v1712 = vrot.slane %v1708, %v1711
      %v1713 = vmul.f32 %v1707, %v1712
      %v1714 = vadd.f32 %v1706, %v1713
      %v1715 = vld [vmem:[#allocation2 + $0x1b] sm:$0xff]
      %v1716 = vld [vmem:[%s10 + $0x1b] sm:$0x1]
      %v1717 = vlaneseq
      %v1718 = vshrl.u32 %v1717, 7
      %v1719 = vsub.s32 0, %v1718
      %v1720 = vrot.slane %v1716, %v1719
      %v1721 = vmul.f32 %v1715, %v1720
      %v1722 = vadd.f32 %v1714, %v1721
      %v1723 = vld [vmem:[#allocation2 + $0x1c] sm:$0xff]
      %v1724 = vld [vmem:[%s10 + $0x1c] sm:$0x1]
      %v1725 = vlaneseq
      %v1726 = vshrl.u32 %v1725, 7
      %v1727 = vsub.s32 0, %v1726
      %v1728 = vrot.slane %v1724, %v1727
      %v1729 = vmul.f32 %v1723, %v1728
      %v1730 = vadd.f32 %v1722, %v1729
      %v1731 = vld [vmem:[#allocation2 + $0x1d] sm:$0xff]
      %v1732 = vld [vmem:[%s10 + $0x1d] sm:$0x1]
      %v1733 = vlaneseq
      %v1734 = vshrl.u32 %v1733, 7
      %v1735 = vsub.s32 0, %v1734
      %v1736 = vrot.slane %v1732, %v1735
      %v1737 = vmul.f32 %v1731, %v1736
      %v1738 = vadd.f32 %v1730, %v1737
      %v1739 = vld [vmem:[#allocation2 + $0x1e] sm:$0xff]
      %v1740 = vld [vmem:[%s10 + $0x1e] sm:$0x1]
      %v1741 = vlaneseq
      %v1742 = vshrl.u32 %v1741, 7
      %v1743 = vsub.s32 0, %v1742
      %v1744 = vrot.slane %v1740, %v1743
      %v1745 = vmul.f32 %v1739, %v1744
      %v1746 = vadd.f32 %v1738, %v1745
      %v1747 = vld [vmem:[%s11] sm:$0x1]
      %v1749 = vlaneseq
      %v1750 = vshrl.u32 %v1749, 7
      %v1751 = vsub.s32 0, %v1750
      %v1752 = vrot.slane %v1747, %v1751
      %v1754 = vadd.f32 %v1746, %v1752
      %v1755 = vxor.u32 %v1754, 2147483648
      %v1756 = vmul.f32 %v1755, 1.442695
      %v1757 = vpow.pop %v1756
      %v1758 = vadd.f32 %v1757, 1.0
      %v1759 = vrcp.pop %v1758
      %v1760 = vmul.f32 1.0, %v1759
      %v1761 = vmul.f32 %v1754, %v1760
      %v1762 = vld [vmem:[%s12] sm:$0xff]
      %v1763 = vld [vmem:[%s12 + $0x8] sm:$0xff]
      %v1764 = vld [vmem:[%s12 + $0x10] sm:$0xff]
      %v1765 = vld [vmem:[%s12 + $0x18] sm:$0xff]
      %v1766 = vld [vmem:[%s12 + $0x20] sm:$0xff]
      %v1767 = vld [vmem:[%s12 + $0x28] sm:$0xff]
      %v1768 = vld [vmem:[%s12 + $0x30] sm:$0xff]
      %v1769 = vld [vmem:[%s12 + $0x38] sm:$0xff]
      %v1770 = vld [vmem:[%s12 + $0x40] sm:$0xff]
      %v1771 = vld [vmem:[%s12 + $0x48] sm:$0xff]
      %v1772 = vld [vmem:[%s12 + $0x50] sm:$0xff]
      %v1773 = vld [vmem:[%s12 + $0x58] sm:$0xff]
      %v1774 = vld [vmem:[%s12 + $0x60] sm:$0xff]
      %v1775 = vld [vmem:[%s12 + $0x68] sm:$0xff]
      %v1776 = vld [vmem:[%s12 + $0x70] sm:$0xff]
      %v1777 = vld [vmem:[%s12 + $0x78] sm:$0xff]
      %v1778 = vld [vmem:[%s13] sm:$0x1]
      %v1780 = vlaneseq
      %v1781 = vshrl.u32 %v1780, 7
      %v1782 = vsub.s32 0, %v1781
      %v1783 = vrot.slane %v1778, %v1782
      %1785 = vmatprep.subr.mxu0 0.0
      %1786 = vmatpush1.msra.mxu0 %v1777
      %1787 = vmatprep.subr.mxu0 0.0
      %1788 = vmatpush1.msra.mxu0 %v1776
      %1789 = vmatprep.subr.mxu0 0.0
      %1790 = vmatpush1.msra.mxu0 %v1775
      %1791 = vmatprep.subr.mxu0 0.0
      %1792 = vmatpush1.msra.mxu0 %v1774
      %1793 = vmatprep.subr.mxu0 0.0
      %1794 = vmatpush1.msra.mxu0 %v1773
      %1795 = vmatprep.subr.mxu0 0.0
      %1796 = vmatpush1.msra.mxu0 %v1772
      %1797 = vmatprep.subr.mxu0 0.0
      %1798 = vmatpush1.msra.mxu0 %v1771
      %1799 = vmatprep.subr.mxu0 0.0
      %1800 = vmatpush1.msra.mxu0 %v1770
      %1801 = vmatprep.subr.mxu0 0.0
      %1802 = vmatpush1.msra.mxu0 %v1769
      %1803 = vmatprep.subr.mxu0 0.0
      %1804 = vmatpush1.msra.mxu0 %v1768
      %1805 = vmatprep.subr.mxu0 0.0
      %1806 = vmatpush1.msra.mxu0 %v1767
      %1807 = vmatprep.subr.mxu0 0.0
      %1808 = vmatpush1.msra.mxu0 %v1766
      %1809 = vmatprep.subr.mxu0 0.0
      %1810 = vmatpush1.msra.mxu0 %v1765
      %1811 = vmatprep.subr.mxu0 0.0
      %1812 = vmatpush1.msra.mxu0 %v1764
      %1813 = vmatprep.subr.mxu0 0.0
      %1814 = vmatpush1.msra.mxu0 %v1763
      %1815 = vmatprep.subr.mxu0 0.0
      %1816 = vmatpush1.msra.mxu0 %v1762
      %1817 = vmatprep.subr.mxu0 0.0
      %1818 = vmatpush2.msra.mxu0 0.0
      %1819 = vmatprep.subr.mxu0 0.0
      %1820 = vmatpush2.msra.mxu0 0.0
      %1821 = vmatprep.subr.mxu0 0.0
      %1822 = vmatpush2.msra.mxu0 0.0
      %1823 = vmatprep.subr.mxu0 0.0
      %1824 = vmatpush2.msra.mxu0 0.0
      %1825 = vmatprep.subr.mxu0 0.0
      %1826 = vmatpush2.msra.mxu0 0.0
      %1827 = vmatprep.subr.mxu0 0.0
      %1828 = vmatpush2.msra.mxu0 0.0
      %1829 = vmatprep.subr.mxu0 0.0
      %1830 = vmatpush2.msra.mxu0 0.0
      %1831 = vmatprep.subr.mxu0 0.0
      %1832 = vmatpush2.msra.mxu0 0.0
      %1833 = vmatprep.subr.mxu0 0.0
      %1834 = vmatpush2.msra.mxu0 0.0
      %1835 = vmatprep.subr.mxu0 0.0
      %1836 = vmatpush2.msra.mxu0 0.0
      %1837 = vmatprep.subr.mxu0 0.0
      %1838 = vmatpush2.msra.mxu0 0.0
      %1839 = vmatprep.subr.mxu0 0.0
      %1840 = vmatpush2.msra.mxu0 0.0
      %1841 = vmatprep.subr.mxu0 0.0
      %1842 = vmatpush2.msra.mxu0 0.0
      %1843 = vmatprep.subr.mxu0 0.0
      %1844 = vmatpush2.msra.mxu0 0.0
      %1845 = vmatprep.subr.mxu0 0.0
      %1846 = vmatpush2.msra.mxu0 0.0
      %1847 = vmatprep.subr.mxu0 0.0
      %1848 = vmatpush2.msra.mxu0 0.0
      %1849 = vmatprep.mubr.f32.mxu0 0.0
      %1850 = vmatmul.mubr.f32.gmra.mxu0 %v1761
      %v1851 = vpop.f32.mrf.mxu0
      %v1852 = vadd.f32 %v1783, %v1851
      %v1853 = vpop.f32.mrf.mxu0
      %1854 = vdwg.mxu0
      %v1855 = vadd.f32 %v1354, %v1852
      %1856 = vst.msk [vmem:[%s462] sm:$0xff] %vm466, %v1855
      %p1857 = scmp.lt.s32.totalorder %s25, 1
      %s1858 = scalar_select %p1857, %s25, 1
      %s1859 = smul.addr %s1858, 8
      %s1860 = scalar_lea.vmem %s14, %s1859
      // Predicated region
      $region77: #{comb_sub_fast_forward.7} parent=75 // pred_check
        %p1861 = pneg %p342
      $region78: #{comb_sub_fast_forward.7} parent=75 // pred_check_branch
        %1863 = sbr.rel (%p1861) target = $region80
      $region79: #{comb_sub_fast_forward.7} parent=75 // pred_region
        _
      $region80: #{comb_sub_fast_forward.7} parent=75 // pred_fallthru
        _
    $region76: #{comb_sub_fast_forward.7} parent=5 // pred_fallthru
      _
    %p1864 = scmp.le.s32.totalorder 2, %s20
    // Predicated region
    $region81: #{comb_sub_fast_forward.7} parent=5 // pred_check
      %p1865 = pneg %p1864
    $region82: #{comb_sub_fast_forward.7} parent=5 // pred_check_branch
      %1867 = sbr.rel (%p1865) target = $region84
    $region83: #{comb_sub_fast_forward.7} parent=5 // pred_region
      %s1868 = ssub.s32 %s20, 2
      // Predicated region
      $region85: #{comb_sub_fast_forward.7} parent=83 // pred_check
        %p1869 = pneg %p348
      $region86: #{comb_sub_fast_forward.7} parent=83 // pred_check_branch
        %1871 = sbr.rel (%p1869) target = $region88
      $region87: #{comb_sub_fast_forward.7} parent=83 // pred_region
        %p1872 = scmp.lt.s32.totalorder %s26, 1
        %s1873 = scalar_select %p1872, %s26, 1
        %s1874 = smul.addr %s1873, 8
        %s1875 = scalar_lea.vmem %s14, %s1874
      $region88: #{comb_sub_fast_forward.7} parent=83 // pred_fallthru
        _
    $region84: #{comb_sub_fast_forward.7} parent=5 // pred_fallthru
      _
  $region6: #{comb_sub_fast_forward.7} parent=0 // loop_footer
    %s24 = sadd.s32 1, %s20
  $region7: #{comb_sub_fast_forward.7} parent=0 // loop_footer_branch
    %19 = sbr.rel target = $region3
  $region8: #{comb_sub_fast_forward.7} parent=0 // loop_exit
    _

// kernel: comb_sub_fast_forward.11
$region0: #{comb_sub_fast_forward.11}
  #allocation0 [shape = 'u32[]', space=smem, size = 0x4, offset = 0x4, fixed_abs, tag = 'smem constant byte address 0x4 - core index']
  #allocation1 [shape = 'u32[144,128]{1,0:T(1,128)}', space=vmem, size = 0x12000, scoped, tag = 'internal scratch']
  %s0 = inlined_call_operand.vmem [shape: f32[18,32], index: 0, kind: input, shape index: {}]
  %s1 = inlined_call_operand.vmem [shape: f32[18,32], index: 1, kind: input, shape index: {}]
  %s2 = inlined_call_operand.vmem [shape: f32[18,51], index: 2, kind: input, shape index: {}]
  %s3 = inlined_call_operand.vmem [shape: f32[32,34], index: 3, kind: input, shape index: {}]
  %s4 = inlined_call_operand.vmem [shape: f32[34,32], index: 4, kind: input, shape index: {}]
  %s5 = inlined_call_operand.vmem [shape: f32[18,32], index: 5, kind: output, shape index: {}]
  %s6 = sld [smem:[#allocation0]]
  $region30: #{comb_sub_fast_forward.11} parent=0
    _
  %s8 = ssub.s32 1, %s6
  %s9 = scalar_select 0, %s8, %s6
  // Predicated region
  $region2: #{comb_sub_fast_forward.11} parent=0 // pred_check
    _
  $region3: #{comb_sub_fast_forward.11} parent=0 // pred_check_branch
    %11 = sbr.rel (0) target = $region5
  $region4: #{comb_sub_fast_forward.11} parent=0 // pred_region
    _
  $region5: #{comb_sub_fast_forward.11} parent=0 // pred_fallthru
    _
  // Predicated region
  $region6: #{comb_sub_fast_forward.11} parent=0 // pred_check
    _
  $region7: #{comb_sub_fast_forward.11} parent=0 // pred_check_branch
    %13 = sbr.rel (0) target = $region9
  $region8: #{comb_sub_fast_forward.11} parent=0 // pred_region
    _
  $region9: #{comb_sub_fast_forward.11} parent=0 // pred_fallthru
    _
  // Predicated region
  $region10: #{comb_sub_fast_forward.11} parent=0 // pred_check
    _
  $region11: #{comb_sub_fast_forward.11} parent=0 // pred_check_branch
    %15 = sbr.rel (0) target = $region13
  $region12: #{comb_sub_fast_forward.11} parent=0 // pred_region
    _
  $region13: #{comb_sub_fast_forward.11} parent=0 // pred_fallthru
    _
  // Predicated region
  $region14: #{comb_sub_fast_forward.11} parent=0 // pred_check
    _
  $region15: #{comb_sub_fast_forward.11} parent=0 // pred_check_branch
    %17 = sbr.rel (0) target = $region17
  $region16: #{comb_sub_fast_forward.11} parent=0 // pred_region
    _
  $region17: #{comb_sub_fast_forward.11} parent=0 // pred_fallthru
    _
  // Predicated region
  $region18: #{comb_sub_fast_forward.11} parent=0 // pred_check
    _
  $region19: #{comb_sub_fast_forward.11} parent=0 // pred_check_branch
    %19 = sbr.rel (0) target = $region21
  $region20: #{comb_sub_fast_forward.11} parent=0 // pred_region
    _
  $region21: #{comb_sub_fast_forward.11} parent=0 // pred_fallthru
    _
  %v20 = vld [vmem:[%s0] sm:$0xff]
  %v21 = vld [vmem:[%s0 + $0x8] sm:$0xff]
  %v22 = vld [vmem:[%s0 + $0x10] sm:$0x3]
  %v23 = vand.u32 2147483647, %v20
  %v24 = vand.u32 2147483647, %v21
  %v25 = vand.u32 2147483647, %v22
  %vm26 = vcmp.ge.f32.partialorder %v23, 1e+20
  %vm27 = vcmp.ge.f32.partialorder %v24, 1e+20
  %vm28 = vcmp.ge.f32.partialorder %v25, 1e+20
  %v29 = vsel %vm26, 1.0, %v20
  %v30 = vsel %vm27, 1.0, %v21
  %v31 = vsel %vm28, 1.0, %v22
  %v32 = vmul.f32 %v29, 3.1415927
  %v33 = vmul.f32 %v30, 3.1415927
  %v34 = vmul.f32 %v31, 3.1415927
  %vm35 = vcmp.eq.f32.partialorder %v29, 0.0
  %vm36 = vcmp.eq.f32.partialorder %v30, 0.0
  %vm37 = vcmp.eq.f32.partialorder %v31, 0.0
  %v38 = vsel %vm35, 1.0, %v32
  %v39 = vsel %vm36, 1.0, %v33
  %v40 = vsel %vm37, 1.0, %v34
  %v41 = vand.u32 2147483647, %v32
  %vm42 = vcmp.le.f32.partialorder %v41, 0.7853982
  %vm43 = vcmp.lt.s32.totalorder %v32, 0
  %v44 = vand.u32 %v32, 2139095040
  %v45 = vshrl.u32 %v44, 23
  %v46 = vsub.s32 %v45, 127
  %v47 = vand.u32 2147483647, %v32
  %v48 = vand.u32 %v47, 8388607
  %v49 = vor.u32 %v48, 8388608
  %v50 = vsub.s32 0, %v49
  %v51 = vadd.s32 %v46, 1
  %vm52 = vcmp.gt.s32.totalorder %v51, 0
  %v53 = vsel %vm52, %v51, 0
  %v54 = vshrl.u32 %v53, 5
  %v55 = vand.u32 %v53, 31
  %v56 = vsub.s32 32, %v55
  %v57 = vshrl.u32 683565275, %v56
  %v58 = vshll.u32 683565275, %v55
  %v59 = vshrl.u32 2475754826, %v56
  %v60 = vor.u32 %v58, %v59
  %v61 = vshll.u32 2475754826, %v55
  %v62 = vshrl.u32 2131351028, %v56
  %v63 = vor.u32 %v61, %v62
  %v64 = vshll.u32 2131351028, %v55
  %v65 = vshrl.u32 2102212464, %v56
  %v66 = vor.u32 %v64, %v65
  %v67 = vshll.u32 2102212464, %v55
  %v68 = vshrl.u32 920167782, %v56
  %v69 = vor.u32 %v67, %v68
  %v70 = vshll.u32 920167782, %v55
  %v71 = vshrl.u32 1326507024, %v56
  %v72 = vor.u32 %v70, %v71
  %vm73 = vcmp.lt.s32.totalorder %v54, 1
  %vm74 = vcmp.lt.s32.totalorder %v54, 2
  %vm75 = vcmp.lt.s32.totalorder %v54, 3
  %vm76 = vcmp.lt.s32.totalorder %v54, 4
  %v77 = vsel %vm73, %v57, %v60
  %v78 = vsel %vm76, %v66, 2102212464
  %v79 = vsel %vm75, %v63, %v78
  %v80 = vsel %vm74, %v77, %v79
  %v81 = vsel %vm73, %v60, %v63
  %v82 = vsel %vm76, %v69, 920167782
  %v83 = vsel %vm75, %v66, %v82
  %v84 = vsel %vm74, %v81, %v83
  %v85 = vsel %vm73, %v63, %v66
  %v86 = vsel %vm76, %v72, 1326507024
  %v87 = vsel %vm75, %v69, %v86
  %v88 = vsel %vm74, %v85, %v87
  %v89 = vshll.u32 %v49, 8
  %v90 = vmul.u32.u64.compose %v89, %v88
  %v91 = vextract.low.u32 %v90
  %v92 = vextract.high.u32 %v90
  %v93 = vmul.u32.u64.compose %v89, %v84
  %v94 = vextract.low.u32 %v93
  %v95 = vextract.high.u32 %v93
  %v96 = vmul.u32 %v89, %v80
  %v97 = vadd.s32 %v92, %v94
  %vm98 = vc.u32 %v92, %v94
  %v99 = vadd.s32 %v95, 1
  %v100 = vsel %vm98, %v99, %v95
  %v101 = vadd.s32 %v96, %v100
  %v102 = vadd.s32 %v101, 536870912
  %v103 = vshrl.u32 %v102, 30
  %v104 = vshll.u32 %v103, 30
  %v105 = vsub.s32 %v101, %v104
  %vm106 = vcmp.lt.s32.totalorder %v105, 0
  %v107 = vsub.s32 0, %v105
  %v108 = vsel %vm106, %v107, %v105
  %v109 = vclz %v108
  %v110 = vsub.s32 %v109, 2
  %vm111 = vcmp.gt.s32.totalorder 0, %v110
  %v112 = vsel %vm111, 0, %v110
  %v113 = vsub.s32 32, %v112
  %v114 = vshll.u32 %v105, %v112
  %v115 = vshrl.u32 %v97, %v113
  %v116 = vor.u32 %v114, %v115
  %v117 = vsub.s32 4294967266, %v112
  %v118 = vadd.s32 %v117, 127
  %v119 = vshll.u32 %v118, 23
  %v120 = vor.u32 4788187, %v119
  %v121 = vand.u32 2147483647, %v120
  %v123 = vcvt.s32.f32 %v116
  %v124 = vmul.f32 %v123, %v121
  %v125 = vxor.u32 %v124, 2147483648
  %v126 = vsel %vm43, %v125, %v124
  %v127 = vsub.s32 4, %v103
  %v128 = vsel %vm43, %v127, %v103
  %v129 = vsel %vm42, %v32, %v126
  %v130 = vsel %vm42, 0, %v128
  %v131 = vcosq.f32.pop %v129
  %v132 = vsinq.f32.pop %v129
  %vm133 = vweird.f32 %v32
  %v134 = vadd.s32 %v130, 3
  %v135 = vand.u32 %v134, 3
  %vm136 = vcmp.lt.s32.totalorder %v135, 2
  %vm137 = vcmp.eq.s32.totalorder %v135, 0
  %v138 = vxor.u32 %v132, 2147483648
  %v139 = vsel %vm137, %v131, %v138
  %vm140 = vcmp.eq.s32.totalorder %v135, 2
  %v141 = vxor.u32 %v131, 2147483648
  %v142 = vsel %vm140, %v141, %v132
  %v143 = vsel %vm136, %v139, %v142
  %v144 = vsel %vm133, nan, %v143
  %v145 = vand.u32 2147483647, %v33
  %vm146 = vcmp.le.f32.partialorder %v145, 0.7853982
  %vm147 = vcmp.lt.s32.totalorder %v33, 0
  %v148 = vand.u32 %v33, 2139095040
  %v149 = vshrl.u32 %v148, 23
  %v150 = vsub.s32 %v149, 127
  %v151 = vand.u32 2147483647, %v33
  %v152 = vand.u32 %v151, 8388607
  %v153 = vor.u32 %v152, 8388608
  %v154 = vsub.s32 0, %v153
  %v155 = vadd.s32 %v150, 1
  %vm156 = vcmp.gt.s32.totalorder %v155, 0
  %v157 = vsel %vm156, %v155, 0
  %v158 = vshrl.u32 %v157, 5
  %v159 = vand.u32 %v157, 31
  %v160 = vsub.s32 32, %v159
  %v161 = vshrl.u32 683565275, %v160
  %v162 = vshll.u32 683565275, %v159
  %v163 = vshrl.u32 2475754826, %v160
  %v164 = vor.u32 %v162, %v163
  %v165 = vshll.u32 2475754826, %v159
  %v166 = vshrl.u32 2131351028, %v160
  %v167 = vor.u32 %v165, %v166
  %v168 = vshll.u32 2131351028, %v159
  %v169 = vshrl.u32 2102212464, %v160
  %v170 = vor.u32 %v168, %v169
  %v171 = vshll.u32 2102212464, %v159
  %v172 = vshrl.u32 920167782, %v160
  %v173 = vor.u32 %v171, %v172
  %v174 = vshll.u32 920167782, %v159
  %v175 = vshrl.u32 1326507024, %v160
  %v176 = vor.u32 %v174, %v175
  %vm177 = vcmp.lt.s32.totalorder %v158, 1
  %vm178 = vcmp.lt.s32.totalorder %v158, 2
  %vm179 = vcmp.lt.s32.totalorder %v158, 3
  %vm180 = vcmp.lt.s32.totalorder %v158, 4
  %v181 = vsel %vm177, %v161, %v164
  %v182 = vsel %vm180, %v170, 2102212464
  %v183 = vsel %vm179, %v167, %v182
  %v184 = vsel %vm178, %v181, %v183
  %v185 = vsel %vm177, %v164, %v167
  %v186 = vsel %vm180, %v173, 920167782
  %v187 = vsel %vm179, %v170, %v186
  %v188 = vsel %vm178, %v185, %v187
  %v189 = vsel %vm177, %v167, %v170
  %v190 = vsel %vm180, %v176, 1326507024
  %v191 = vsel %vm179, %v173, %v190
  %v192 = vsel %vm178, %v189, %v191
  %v193 = vshll.u32 %v153, 8
  %v194 = vmul.u32.u64.compose %v193, %v192
  %v195 = vextract.low.u32 %v194
  %v196 = vextract.high.u32 %v194
  %v197 = vmul.u32.u64.compose %v193, %v188
  %v198 = vextract.low.u32 %v197
  %v199 = vextract.high.u32 %v197
  %v200 = vmul.u32 %v193, %v184
  %v201 = vadd.s32 %v196, %v198
  %vm202 = vc.u32 %v196, %v198
  %v203 = vadd.s32 %v199, 1
  %v204 = vsel %vm202, %v203, %v199
  %v205 = vadd.s32 %v200, %v204
  %v206 = vadd.s32 %v205, 536870912
  %v207 = vshrl.u32 %v206, 30
  %v208 = vshll.u32 %v207, 30
  %v209 = vsub.s32 %v205, %v208
  %vm210 = vcmp.lt.s32.totalorder %v209, 0
  %v211 = vsub.s32 0, %v209
  %v212 = vsel %vm210, %v211, %v209
  %v213 = vclz %v212
  %v214 = vsub.s32 %v213, 2
  %vm215 = vcmp.gt.s32.totalorder 0, %v214
  %v216 = vsel %vm215, 0, %v214
  %v217 = vsub.s32 32, %v216
  %v218 = vshll.u32 %v209, %v216
  %v219 = vshrl.u32 %v201, %v217
  %v220 = vor.u32 %v218, %v219
  %v221 = vsub.s32 4294967266, %v216
  %v222 = vadd.s32 %v221, 127
  %v223 = vshll.u32 %v222, 23
  %v224 = vor.u32 4788187, %v223
  %v225 = vand.u32 2147483647, %v224
  %v227 = vcvt.s32.f32 %v220
  %v228 = vmul.f32 %v227, %v225
  %v229 = vxor.u32 %v228, 2147483648
  %v230 = vsel %vm147, %v229, %v228
  %v231 = vsub.s32 4, %v207
  %v232 = vsel %vm147, %v231, %v207
  %v233 = vsel %vm146, %v33, %v230
  %v234 = vsel %vm146, 0, %v232
  %v235 = vcosq.f32.pop %v233
  %v236 = vsinq.f32.pop %v233
  %vm237 = vweird.f32 %v33
  %v238 = vadd.s32 %v234, 3
  %v239 = vand.u32 %v238, 3
  %vm240 = vcmp.lt.s32.totalorder %v239, 2
  %vm241 = vcmp.eq.s32.totalorder %v239, 0
  %v242 = vxor.u32 %v236, 2147483648
  %v243 = vsel %vm241, %v235, %v242
  %vm244 = vcmp.eq.s32.totalorder %v239, 2
  %v245 = vxor.u32 %v235, 2147483648
  %v246 = vsel %vm244, %v245, %v236
  %v247 = vsel %vm240, %v243, %v246
  %v248 = vsel %vm237, nan, %v247
  %v249 = vand.u32 2147483647, %v34
  %vm250 = vcmp.le.f32.partialorder %v249, 0.7853982
  %vm251 = vcmp.lt.s32.totalorder %v34, 0
  %v252 = vand.u32 %v34, 2139095040
  %v253 = vshrl.u32 %v252, 23
  %v254 = vsub.s32 %v253, 127
  %v255 = vand.u32 2147483647, %v34
  %v256 = vand.u32 %v255, 8388607
  %v257 = vor.u32 %v256, 8388608
  %v258 = vsub.s32 0, %v257
  %v259 = vadd.s32 %v254, 1
  %vm260 = vcmp.gt.s32.totalorder %v259, 0
  %v261 = vsel %vm260, %v259, 0
  %v262 = vshrl.u32 %v261, 5
  %v263 = vand.u32 %v261, 31
  %v264 = vsub.s32 32, %v263
  %v265 = vshrl.u32 683565275, %v264
  %v266 = vshll.u32 683565275, %v263
  %v267 = vshrl.u32 2475754826, %v264
  %v268 = vor.u32 %v266, %v267
  %v269 = vshll.u32 2475754826, %v263
  %v270 = vshrl.u32 2131351028, %v264
  %v271 = vor.u32 %v269, %v270
  %v272 = vshll.u32 2131351028, %v263
  %v273 = vshrl.u32 2102212464, %v264
  %v274 = vor.u32 %v272, %v273
  %v275 = vshll.u32 2102212464, %v263
  %v276 = vshrl.u32 920167782, %v264
  %v277 = vor.u32 %v275, %v276
  %v278 = vshll.u32 920167782, %v263
  %v279 = vshrl.u32 1326507024, %v264
  %v280 = vor.u32 %v278, %v279
  %vm281 = vcmp.lt.s32.totalorder %v262, 1
  %vm282 = vcmp.lt.s32.totalorder %v262, 2
  %vm283 = vcmp.lt.s32.totalorder %v262, 3
  %vm284 = vcmp.lt.s32.totalorder %v262, 4
  %v285 = vsel %vm281, %v265, %v268
  %v286 = vsel %vm284, %v274, 2102212464
  %v287 = vsel %vm283, %v271, %v286
  %v288 = vsel %vm282, %v285, %v287
  %v289 = vsel %vm281, %v268, %v271
  %v290 = vsel %vm284, %v277, 920167782
  %v291 = vsel %vm283, %v274, %v290
  %v292 = vsel %vm282, %v289, %v291
  %v293 = vsel %vm281, %v271, %v274
  %v294 = vsel %vm284, %v280, 1326507024
  %v295 = vsel %vm283, %v277, %v294
  %v296 = vsel %vm282, %v293, %v295
  %v297 = vshll.u32 %v257, 8
  %v298 = vmul.u32.u64.compose %v297, %v296
  %v299 = vextract.low.u32 %v298
  %v300 = vextract.high.u32 %v298
  %v301 = vmul.u32.u64.compose %v297, %v292
  %v302 = vextract.low.u32 %v301
  %v303 = vextract.high.u32 %v301
  %v304 = vmul.u32 %v297, %v288
  %v305 = vadd.s32 %v300, %v302
  %vm306 = vc.u32 %v300, %v302
  %v307 = vadd.s32 %v303, 1
  %v308 = vsel %vm306, %v307, %v303
  %v309 = vadd.s32 %v304, %v308
  %v310 = vadd.s32 %v309, 536870912
  %v311 = vshrl.u32 %v310, 30
  %v312 = vshll.u32 %v311, 30
  %v313 = vsub.s32 %v309, %v312
  %vm314 = vcmp.lt.s32.totalorder %v313, 0
  %v315 = vsub.s32 0, %v313
  %v316 = vsel %vm314, %v315, %v313
  %v317 = vclz %v316
  %v318 = vsub.s32 %v317, 2
  %vm319 = vcmp.gt.s32.totalorder 0, %v318
  %v320 = vsel %vm319, 0, %v318
  %v321 = vsub.s32 32, %v320
  %v322 = vshll.u32 %v313, %v320
  %v323 = vshrl.u32 %v305, %v321
  %v324 = vor.u32 %v322, %v323
  %v325 = vsub.s32 4294967266, %v320
  %v326 = vadd.s32 %v325, 127
  %v327 = vshll.u32 %v326, 23
  %v328 = vor.u32 4788187, %v327
  %v329 = vand.u32 2147483647, %v328
  %v331 = vcvt.s32.f32 %v324
  %v332 = vmul.f32 %v331, %v329
  %v333 = vxor.u32 %v332, 2147483648
  %v334 = vsel %vm251, %v333, %v332
  %v335 = vsub.s32 4, %v311
  %v336 = vsel %vm251, %v335, %v311
  %v337 = vsel %vm250, %v34, %v334
  %v338 = vsel %vm250, 0, %v336
  %v339 = vcosq.f32.pop %v337
  %v340 = vsinq.f32.pop %v337
  %vm341 = vweird.f32 %v34
  %v342 = vadd.s32 %v338, 3
  %v343 = vand.u32 %v342, 3
  %vm344 = vcmp.lt.s32.totalorder %v343, 2
  %vm345 = vcmp.eq.s32.totalorder %v343, 0
  %v346 = vxor.u32 %v340, 2147483648
  %v347 = vsel %vm345, %v339, %v346
  %vm348 = vcmp.eq.s32.totalorder %v343, 2
  %v349 = vxor.u32 %v339, 2147483648
  %v350 = vsel %vm348, %v349, %v340
  %v351 = vsel %vm344, %v347, %v350
  %v352 = vsel %vm341, nan, %v351
  %v353 = vrcp.pop %v38
  %v354 = vmul.f32 %v144, %v353
  %v355 = vrcp.pop %v39
  %v356 = vmul.f32 %v248, %v355
  %v357 = vrcp.pop %v40
  %v358 = vmul.f32 %v352, %v357
  %v359 = vsel %vm35, 1.0, %v354
  %v360 = vsel %vm36, 1.0, %v356
  %v361 = vsel %vm37, 1.0, %v358
  %v362 = vsel %vm26, 0.0, %v359
  %v363 = vsel %vm27, 0.0, %v360
  %v364 = vsel %vm28, 0.0, %v361
  %v365 = vld [vmem:[%s1] sm:$0xff]
  %v366 = vld [vmem:[%s1 + $0x8] sm:$0xff]
  %v367 = vld [vmem:[%s1 + $0x10] sm:$0x3]
  %vm371 = vcmask 1041408
  %v372 = vrot.slane %v365, 6
  %v373 = vrot.slane %v366, 6
  %v374 = vsel %vm371, %v372, %v373
  %v375 = vrot.slane %v367, 6
  %v376 = vsel %vm371, %v373, %v375
  %v378 = vsel %vm371, %v364, %v372
  %v379 = vld [vmem:[%s3] sm:$0xff]
  %v380 = vld [vmem:[%s3 + $0x8] sm:$0xff]
  %v381 = vld [vmem:[%s3 + $0x10] sm:$0xff]
  %v382 = vld [vmem:[%s3 + $0x18] sm:$0xff]
  %vm383 = vcmask 261120
  %v385 = vsel %vm383, %v362, 0
  %v388 = vsel %vm383, %v363, 0
  %v391 = vsel %vm383, %v378, 0
  %v393 = vsel %vm383, %v374, 0
  %v395 = vsel %vm383, %v376, 0
  %397 = vmatprep.subr.mxu0 0.0
  %398 = vmatpush1.msra.mxu0 0.0
  %399 = vmatprep.subr.mxu0 0.0
  %400 = vmatpush1.msra.mxu0 0.0
  %401 = vmatprep.subr.mxu0 0.0
  %402 = vmatpush1.msra.mxu0 0.0
  %403 = vmatprep.subr.mxu0 0.0
  %404 = vmatpush1.msra.mxu0 0.0
  %405 = vmatprep.subr.mxu0 0.0
  %406 = vmatpush1.msra.mxu0 0.0
  %407 = vmatprep.subr.mxu0 0.0
  %408 = vmatpush1.msra.mxu0 0.0
  %409 = vmatprep.subr.mxu0 0.0
  %410 = vmatpush1.msra.mxu0 0.0
  %411 = vmatprep.subr.mxu0 0.0
  %412 = vmatpush1.msra.mxu0 0.0
  %413 = vmatprep.subr.mxu0 0.0
  %414 = vmatpush1.msra.mxu0 0.0
  %415 = vmatprep.subr.mxu0 0.0
  %416 = vmatpush1.msra.mxu0 0.0
  %417 = vmatprep.subr.mxu0 0.0
  %418 = vmatpush1.msra.mxu0 0.0
  %419 = vmatprep.subr.mxu0 0.0
  %420 = vmatpush1.msra.mxu0 0.0
  %421 = vmatprep.subr.mxu0 0.0
  %422 = vmatpush1.msra.mxu0 %v382
  %423 = vmatprep.subr.mxu0 0.0
  %424 = vmatpush1.msra.mxu0 %v381
  %425 = vmatprep.subr.mxu0 0.0
  %426 = vmatpush1.msra.mxu0 %v380
  %427 = vmatprep.subr.mxu0 0.0
  %428 = vmatpush1.msra.mxu0 %v379
  %429 = vmatprep.subr.mxu0 0.0
  %430 = vmatpush2.msra.mxu0 0.0
  %431 = vmatprep.subr.mxu0 0.0
  %432 = vmatpush2.msra.mxu0 0.0
  %433 = vmatprep.subr.mxu0 0.0
  %434 = vmatpush2.msra.mxu0 0.0
  %435 = vmatprep.subr.mxu0 0.0
  %436 = vmatpush2.msra.mxu0 0.0
  %437 = vmatprep.subr.mxu0 0.0
  %438 = vmatpush2.msra.mxu0 0.0
  %439 = vmatprep.subr.mxu0 0.0
  %440 = vmatpush2.msra.mxu0 0.0
  %441 = vmatprep.subr.mxu0 0.0
  %442 = vmatpush2.msra.mxu0 0.0
  %443 = vmatprep.subr.mxu0 0.0
  %444 = vmatpush2.msra.mxu0 0.0
  %445 = vmatprep.subr.mxu0 0.0
  %446 = vmatpush2.msra.mxu0 0.0
  %447 = vmatprep.subr.mxu0 0.0
  %448 = vmatpush2.msra.mxu0 0.0
  %449 = vmatprep.subr.mxu0 0.0
  %450 = vmatpush2.msra.mxu0 0.0
  %451 = vmatprep.subr.mxu0 0.0
  %452 = vmatpush2.msra.mxu0 0.0
  %453 = vmatprep.subr.mxu0 0.0
  %454 = vmatpush2.msra.mxu0 0.0
  %455 = vmatprep.subr.mxu0 0.0
  %456 = vmatpush2.msra.mxu0 0.0
  %457 = vmatprep.subr.mxu0 0.0
  %458 = vmatpush2.msra.mxu0 0.0
  %459 = vmatprep.subr.mxu0 0.0
  %460 = vmatpush2.msra.mxu0 0.0
  %461 = vmatprep.mubr.f32.mxu0 0.0
  %462 = vmatmul.mubr.f32.gmra.mxu0 %v385
  %v463 = vpop.f32.mrf.mxu0
  %v464 = vadd.f32 0.0, %v463
  %v465 = vpop.f32.mrf.mxu0
  %466 = vmatprep.mubr.f32.mxu0 0.0
  %467 = vmatmul.mubr.f32.gmra.mxu0 %v388
  %v468 = vpop.f32.mrf.mxu0
  %v469 = vadd.f32 0.0, %v468
  %v470 = vpop.f32.mrf.mxu0
  %471 = vmatprep.mubr.f32.mxu0 0.0
  %472 = vmatmul.mubr.f32.gmra.mxu0 %v391
  %v473 = vpop.f32.mrf.mxu0
  %v474 = vadd.f32 0.0, %v473
  %v475 = vpop.f32.mrf.mxu0
  %476 = vmatprep.mubr.f32.mxu0 0.0
  %477 = vmatmul.mubr.f32.gmra.mxu0 %v393
  %v478 = vpop.f32.mrf.mxu0
  %v479 = vadd.f32 0.0, %v478
  %v480 = vpop.f32.mrf.mxu0
  %481 = vmatprep.mubr.f32.mxu0 0.0
  %482 = vmatmul.mubr.f32.gmra.mxu0 %v395
  %v483 = vpop.f32.mrf.mxu0
  %v484 = vadd.f32 0.0, %v483
  %v485 = vpop.f32.mrf.mxu0
  %486 = vdwg.mxu0
  %v487 = vld [vmem:[%s2] sm:$0xff]
  %v488 = vld [vmem:[%s2 + $0x8] sm:$0xff]
  %v489 = vld [vmem:[%s2 + $0x10] sm:$0x3]
  %v490 = vmul.f32 %v487, 1.442695
  %v491 = vpow.pop %v490
  %v492 = vmul.f32 %v488, 1.442695
  %v493 = vpow.pop %v492
  %v494 = vmul.f32 %v489, 1.442695
  %v495 = vpow.pop %v494
  %v496 = vmul.f32 %v487, 3.1415927
  %v497 = vmul.f32 %v488, 3.1415927
  %v498 = vmul.f32 %v489, 3.1415927
  %v499 = vand.u32 2147483647, %v496
  %vm500 = vcmp.le.f32.partialorder %v499, 0.7853982
  %vm501 = vcmp.lt.s32.totalorder %v496, 0
  %v502 = vand.u32 %v496, 2139095040
  %v503 = vshrl.u32 %v502, 23
  %v504 = vsub.s32 %v503, 127
  %v505 = vand.u32 2147483647, %v496
  %v506 = vand.u32 %v505, 8388607
  %v507 = vor.u32 %v506, 8388608
  %v508 = vsub.s32 0, %v507
  %v509 = vadd.s32 %v504, 1
  %vm510 = vcmp.gt.s32.totalorder %v509, 0
  %v511 = vsel %vm510, %v509, 0
  %v512 = vshrl.u32 %v511, 5
  %v513 = vand.u32 %v511, 31
  %v514 = vsub.s32 32, %v513
  %v515 = vshrl.u32 683565275, %v514
  %v516 = vshll.u32 683565275, %v513
  %v517 = vshrl.u32 2475754826, %v514
  %v518 = vor.u32 %v516, %v517
  %v519 = vshll.u32 2475754826, %v513
  %v520 = vshrl.u32 2131351028, %v514
  %v521 = vor.u32 %v519, %v520
  %v522 = vshll.u32 2131351028, %v513
  %v523 = vshrl.u32 2102212464, %v514
  %v524 = vor.u32 %v522, %v523
  %v525 = vshll.u32 2102212464, %v513
  %v526 = vshrl.u32 920167782, %v514
  %v527 = vor.u32 %v525, %v526
  %v528 = vshll.u32 920167782, %v513
  %v529 = vshrl.u32 1326507024, %v514
  %v530 = vor.u32 %v528, %v529
  %vm531 = vcmp.lt.s32.totalorder %v512, 1
  %vm532 = vcmp.lt.s32.totalorder %v512, 2
  %vm533 = vcmp.lt.s32.totalorder %v512, 3
  %vm534 = vcmp.lt.s32.totalorder %v512, 4
  %v535 = vsel %vm531, %v515, %v518
  %v536 = vsel %vm534, %v524, 2102212464
  %v537 = vsel %vm533, %v521, %v536
  %v538 = vsel %vm532, %v535, %v537
  %v539 = vsel %vm531, %v518, %v521
  %v540 = vsel %vm534, %v527, 920167782
  %v541 = vsel %vm533, %v524, %v540
  %v542 = vsel %vm532, %v539, %v541
  %v543 = vsel %vm531, %v521, %v524
  %v544 = vsel %vm534, %v530, 1326507024
  %v545 = vsel %vm533, %v527, %v544
  %v546 = vsel %vm532, %v543, %v545
  %v547 = vshll.u32 %v507, 8
  %v548 = vmul.u32.u64.compose %v547, %v546
  %v549 = vextract.low.u32 %v548
  %v550 = vextract.high.u32 %v548
  %v551 = vmul.u32.u64.compose %v547, %v542
  %v552 = vextract.low.u32 %v551
  %v553 = vextract.high.u32 %v551
  %v554 = vmul.u32 %v547, %v538
  %v555 = vadd.s32 %v550, %v552
  %vm556 = vc.u32 %v550, %v552
  %v557 = vadd.s32 %v553, 1
  %v558 = vsel %vm556, %v557, %v553
  %v559 = vadd.s32 %v554, %v558
  %v560 = vadd.s32 %v559, 536870912
  %v561 = vshrl.u32 %v560, 30
  %v562 = vshll.u32 %v561, 30
  %v563 = vsub.s32 %v559, %v562
  %vm564 = vcmp.lt.s32.totalorder %v563, 0
  %v565 = vsub.s32 0, %v563
  %v566 = vsel %vm564, %v565, %v563
  %v567 = vclz %v566
  %v568 = vsub.s32 %v567, 2
  %vm569 = vcmp.gt.s32.totalorder 0, %v568
  %v570 = vsel %vm569, 0, %v568
  %v571 = vsub.s32 32, %v570
  %v572 = vshll.u32 %v563, %v570
  %v573 = vshrl.u32 %v555, %v571
  %v574 = vor.u32 %v572, %v573
  %v575 = vsub.s32 4294967266, %v570
  %v576 = vadd.s32 %v575, 127
  %v577 = vshll.u32 %v576, 23
  %v578 = vor.u32 4788187, %v577
  %v579 = vand.u32 2147483647, %v578
  %v581 = vcvt.s32.f32 %v574
  %v582 = vmul.f32 %v581, %v579
  %v583 = vxor.u32 %v582, 2147483648
  %v584 = vsel %vm501, %v583, %v582
  %v585 = vsub.s32 4, %v561
  %v586 = vsel %vm501, %v585, %v561
  %v587 = vsel %vm500, %v496, %v584
  %v588 = vsel %vm500, 0, %v586
  %v589 = vcosq.f32.pop %v587
  %v590 = vsinq.f32.pop %v587
  %vm591 = vweird.f32 %v496
  %v592 = vand.u32 %v588, 3
  %vm593 = vcmp.lt.s32.totalorder %v592, 2
  %vm594 = vcmp.eq.s32.totalorder %v592, 0
  %v595 = vxor.u32 %v590, 2147483648
  %v596 = vsel %vm594, %v589, %v595
  %vm597 = vcmp.eq.s32.totalorder %v592, 2
  %v598 = vxor.u32 %v589, 2147483648
  %v599 = vsel %vm597, %v598, %v590
  %v600 = vsel %vm593, %v596, %v599
  %v601 = vsel %vm591, nan, %v600
  %v602 = vand.u32 2147483647, %v497
  %vm603 = vcmp.le.f32.partialorder %v602, 0.7853982
  %vm604 = vcmp.lt.s32.totalorder %v497, 0
  %v605 = vand.u32 %v497, 2139095040
  %v606 = vshrl.u32 %v605, 23
  %v607 = vsub.s32 %v606, 127
  %v608 = vand.u32 2147483647, %v497
  %v609 = vand.u32 %v608, 8388607
  %v610 = vor.u32 %v609, 8388608
  %v611 = vsub.s32 0, %v610
  %v612 = vadd.s32 %v607, 1
  %vm613 = vcmp.gt.s32.totalorder %v612, 0
  %v614 = vsel %vm613, %v612, 0
  %v615 = vshrl.u32 %v614, 5
  %v616 = vand.u32 %v614, 31
  %v617 = vsub.s32 32, %v616
  %v618 = vshrl.u32 683565275, %v617
  %v619 = vshll.u32 683565275, %v616
  %v620 = vshrl.u32 2475754826, %v617
  %v621 = vor.u32 %v619, %v620
  %v622 = vshll.u32 2475754826, %v616
  %v623 = vshrl.u32 2131351028, %v617
  %v624 = vor.u32 %v622, %v623
  %v625 = vshll.u32 2131351028, %v616
  %v626 = vshrl.u32 2102212464, %v617
  %v627 = vor.u32 %v625, %v626
  %v628 = vshll.u32 2102212464, %v616
  %v629 = vshrl.u32 920167782, %v617
  %v630 = vor.u32 %v628, %v629
  %v631 = vshll.u32 920167782, %v616
  %v632 = vshrl.u32 1326507024, %v617
  %v633 = vor.u32 %v631, %v632
  %vm634 = vcmp.lt.s32.totalorder %v615, 1
  %vm635 = vcmp.lt.s32.totalorder %v615, 2
  %vm636 = vcmp.lt.s32.totalorder %v615, 3
  %vm637 = vcmp.lt.s32.totalorder %v615, 4
  %v638 = vsel %vm634, %v618, %v621
  %v639 = vsel %vm637, %v627, 2102212464
  %v640 = vsel %vm636, %v624, %v639
  %v641 = vsel %vm635, %v638, %v640
  %v642 = vsel %vm634, %v621, %v624
  %v643 = vsel %vm637, %v630, 920167782
  %v644 = vsel %vm636, %v627, %v643
  %v645 = vsel %vm635, %v642, %v644
  %v646 = vsel %vm634, %v624, %v627
  %v647 = vsel %vm637, %v633, 1326507024
  %v648 = vsel %vm636, %v630, %v647
  %v649 = vsel %vm635, %v646, %v648
  %v650 = vshll.u32 %v610, 8
  %v651 = vmul.u32.u64.compose %v650, %v649
  %v652 = vextract.low.u32 %v651
  %v653 = vextract.high.u32 %v651
  %v654 = vmul.u32.u64.compose %v650, %v645
  %v655 = vextract.low.u32 %v654
  %v656 = vextract.high.u32 %v654
  %v657 = vmul.u32 %v650, %v641
  %v658 = vadd.s32 %v653, %v655
  %vm659 = vc.u32 %v653, %v655
  %v660 = vadd.s32 %v656, 1
  %v661 = vsel %vm659, %v660, %v656
  %v662 = vadd.s32 %v657, %v661
  %v663 = vadd.s32 %v662, 536870912
  %v664 = vshrl.u32 %v663, 30
  %v665 = vshll.u32 %v664, 30
  %v666 = vsub.s32 %v662, %v665
  %vm667 = vcmp.lt.s32.totalorder %v666, 0
  %v668 = vsub.s32 0, %v666
  %v669 = vsel %vm667, %v668, %v666
  %v670 = vclz %v669
  %v671 = vsub.s32 %v670, 2
  %vm672 = vcmp.gt.s32.totalorder 0, %v671
  %v673 = vsel %vm672, 0, %v671
  %v674 = vsub.s32 32, %v673
  %v675 = vshll.u32 %v666, %v673
  %v676 = vshrl.u32 %v658, %v674
  %v677 = vor.u32 %v675, %v676
  %v678 = vsub.s32 4294967266, %v673
  %v679 = vadd.s32 %v678, 127
  %v680 = vshll.u32 %v679, 23
  %v681 = vor.u32 4788187, %v680
  %v682 = vand.u32 2147483647, %v681
  %v684 = vcvt.s32.f32 %v677
  %v685 = vmul.f32 %v684, %v682
  %v686 = vxor.u32 %v685, 2147483648
  %v687 = vsel %vm604, %v686, %v685
  %v688 = vsub.s32 4, %v664
  %v689 = vsel %vm604, %v688, %v664
  %v690 = vsel %vm603, %v497, %v687
  %v691 = vsel %vm603, 0, %v689
  %v692 = vcosq.f32.pop %v690
  %v693 = vsinq.f32.pop %v690
  %vm694 = vweird.f32 %v497
  %v695 = vand.u32 %v691, 3
  %vm696 = vcmp.lt.s32.totalorder %v695, 2
  %vm697 = vcmp.eq.s32.totalorder %v695, 0
  %v698 = vxor.u32 %v693, 2147483648
  %v699 = vsel %vm697, %v692, %v698
  %vm700 = vcmp.eq.s32.totalorder %v695, 2
  %v701 = vxor.u32 %v692, 2147483648
  %v702 = vsel %vm700, %v701, %v693
  %v703 = vsel %vm696, %v699, %v702
  %v704 = vsel %vm694, nan, %v703
  %v705 = vand.u32 2147483647, %v498
  %vm706 = vcmp.le.f32.partialorder %v705, 0.7853982
  %vm707 = vcmp.lt.s32.totalorder %v498, 0
  %v708 = vand.u32 %v498, 2139095040
  %v709 = vshrl.u32 %v708, 23
  %v710 = vsub.s32 %v709, 127
  %v711 = vand.u32 2147483647, %v498
  %v712 = vand.u32 %v711, 8388607
  %v713 = vor.u32 %v712, 8388608
  %v714 = vsub.s32 0, %v713
  %v715 = vadd.s32 %v710, 1
  %vm716 = vcmp.gt.s32.totalorder %v715, 0
  %v717 = vsel %vm716, %v715, 0
  %v718 = vshrl.u32 %v717, 5
  %v719 = vand.u32 %v717, 31
  %v720 = vsub.s32 32, %v719
  %v721 = vshrl.u32 683565275, %v720
  %v722 = vshll.u32 683565275, %v719
  %v723 = vshrl.u32 2475754826, %v720
  %v724 = vor.u32 %v722, %v723
  %v725 = vshll.u32 2475754826, %v719
  %v726 = vshrl.u32 2131351028, %v720
  %v727 = vor.u32 %v725, %v726
  %v728 = vshll.u32 2131351028, %v719
  %v729 = vshrl.u32 2102212464, %v720
  %v730 = vor.u32 %v728, %v729
  %v731 = vshll.u32 2102212464, %v719
  %v732 = vshrl.u32 920167782, %v720
  %v733 = vor.u32 %v731, %v732
  %v734 = vshll.u32 920167782, %v719
  %v735 = vshrl.u32 1326507024, %v720
  %v736 = vor.u32 %v734, %v735
  %vm737 = vcmp.lt.s32.totalorder %v718, 1
  %vm738 = vcmp.lt.s32.totalorder %v718, 2
  %vm739 = vcmp.lt.s32.totalorder %v718, 3
  %vm740 = vcmp.lt.s32.totalorder %v718, 4
  %v741 = vsel %vm737, %v721, %v724
  %v742 = vsel %vm740, %v730, 2102212464
  %v743 = vsel %vm739, %v727, %v742
  %v744 = vsel %vm738, %v741, %v743
  %v745 = vsel %vm737, %v724, %v727
  %v746 = vsel %vm740, %v733, 920167782
  %v747 = vsel %vm739, %v730, %v746
  %v748 = vsel %vm738, %v745, %v747
  %v749 = vsel %vm737, %v727, %v730
  %v750 = vsel %vm740, %v736, 1326507024
  %v751 = vsel %vm739, %v733, %v750
  %v752 = vsel %vm738, %v749, %v751
  %v753 = vshll.u32 %v713, 8
  %v754 = vmul.u32.u64.compose %v753, %v752
  %v755 = vextract.low.u32 %v754
  %v756 = vextract.high.u32 %v754
  %v757 = vmul.u32.u64.compose %v753, %v748
  %v758 = vextract.low.u32 %v757
  %v759 = vextract.high.u32 %v757
  %v760 = vmul.u32 %v753, %v744
  %v761 = vadd.s32 %v756, %v758
  %vm762 = vc.u32 %v756, %v758
  %v763 = vadd.s32 %v759, 1
  %v764 = vsel %vm762, %v763, %v759
  %v765 = vadd.s32 %v760, %v764
  %v766 = vadd.s32 %v765, 536870912
  %v767 = vshrl.u32 %v766, 30
  %v768 = vshll.u32 %v767, 30
  %v769 = vsub.s32 %v765, %v768
  %vm770 = vcmp.lt.s32.totalorder %v769, 0
  %v771 = vsub.s32 0, %v769
  %v772 = vsel %vm770, %v771, %v769
  %v773 = vclz %v772
  %v774 = vsub.s32 %v773, 2
  %vm775 = vcmp.gt.s32.totalorder 0, %v774
  %v776 = vsel %vm775, 0, %v774
  %v777 = vsub.s32 32, %v776
  %v778 = vshll.u32 %v769, %v776
  %v779 = vshrl.u32 %v761, %v777
  %v780 = vor.u32 %v778, %v779
  %v781 = vsub.s32 4294967266, %v776
  %v782 = vadd.s32 %v781, 127
  %v783 = vshll.u32 %v782, 23
  %v784 = vor.u32 4788187, %v783
  %v785 = vand.u32 2147483647, %v784
  %v787 = vcvt.s32.f32 %v780
  %v788 = vmul.f32 %v787, %v785
  %v789 = vxor.u32 %v788, 2147483648
  %v790 = vsel %vm707, %v789, %v788
  %v791 = vsub.s32 4, %v767
  %v792 = vsel %vm707, %v791, %v767
  %v793 = vsel %vm706, %v498, %v790
  %v794 = vsel %vm706, 0, %v792
  %v795 = vcosq.f32.pop %v793
  %v796 = vsinq.f32.pop %v793
  %vm797 = vweird.f32 %v498
  %v798 = vand.u32 %v794, 3
  %vm799 = vcmp.lt.s32.totalorder %v798, 2
  %vm800 = vcmp.eq.s32.totalorder %v798, 0
  %v801 = vxor.u32 %v796, 2147483648
  %v802 = vsel %vm800, %v795, %v801
  %vm803 = vcmp.eq.s32.totalorder %v798, 2
  %v804 = vxor.u32 %v795, 2147483648
  %v805 = vsel %vm803, %v804, %v796
  %v806 = vsel %vm799, %v802, %v805
  %v807 = vsel %vm797, nan, %v806
  %811 = vrot.lane.b32.xlu0 %v601, 111
  %v812 = vpop.permute.xlu0 %811
  %813 = vrot.lane.b32.xlu0 %v704, 111
  %v814 = vpop.permute.xlu0 %813
  %815 = vrot.lane.b32.xlu0 %v807, 111
  %v816 = vpop.permute.xlu0 %815
  %v820 = vmul.f32 %v491, %v812
  %v821 = vmul.f32 %v493, %v814
  %v822 = vmul.f32 %v495, %v816
  %v823 = vand.u32 2147483647, %v496
  %vm824 = vcmp.le.f32.partialorder %v823, 0.7853982
  %vm825 = vcmp.lt.s32.totalorder %v496, 0
  %v826 = vand.u32 %v496, 2139095040
  %v827 = vshrl.u32 %v826, 23
  %v828 = vsub.s32 %v827, 127
  %v829 = vand.u32 2147483647, %v496
  %v830 = vand.u32 %v829, 8388607
  %v831 = vor.u32 %v830, 8388608
  %v832 = vsub.s32 0, %v831
  %v833 = vadd.s32 %v828, 1
  %vm834 = vcmp.gt.s32.totalorder %v833, 0
  %v835 = vsel %vm834, %v833, 0
  %v836 = vshrl.u32 %v835, 5
  %v837 = vand.u32 %v835, 31
  %v838 = vsub.s32 32, %v837
  %v839 = vshrl.u32 683565275, %v838
  %v840 = vshll.u32 683565275, %v837
  %v841 = vshrl.u32 2475754826, %v838
  %v842 = vor.u32 %v840, %v841
  %v843 = vshll.u32 2475754826, %v837
  %v844 = vshrl.u32 2131351028, %v838
  %v845 = vor.u32 %v843, %v844
  %v846 = vshll.u32 2131351028, %v837
  %v847 = vshrl.u32 2102212464, %v838
  %v848 = vor.u32 %v846, %v847
  %v849 = vshll.u32 2102212464, %v837
  %v850 = vshrl.u32 920167782, %v838
  %v851 = vor.u32 %v849, %v850
  %v852 = vshll.u32 920167782, %v837
  %v853 = vshrl.u32 1326507024, %v838
  %v854 = vor.u32 %v852, %v853
  %vm855 = vcmp.lt.s32.totalorder %v836, 1
  %vm856 = vcmp.lt.s32.totalorder %v836, 2
  %vm857 = vcmp.lt.s32.totalorder %v836, 3
  %vm858 = vcmp.lt.s32.totalorder %v836, 4
  %v859 = vsel %vm855, %v839, %v842
  %v860 = vsel %vm858, %v848, 2102212464
  %v861 = vsel %vm857, %v845, %v860
  %v862 = vsel %vm856, %v859, %v861
  %v863 = vsel %vm855, %v842, %v845
  %v864 = vsel %vm858, %v851, 920167782
  %v865 = vsel %vm857, %v848, %v864
  %v866 = vsel %vm856, %v863, %v865
  %v867 = vsel %vm855, %v845, %v848
  %v868 = vsel %vm858, %v854, 1326507024
  %v869 = vsel %vm857, %v851, %v868
  %v870 = vsel %vm856, %v867, %v869
  %v871 = vshll.u32 %v831, 8
  %v872 = vmul.u32.u64.compose %v871, %v870
  %v873 = vextract.low.u32 %v872
  %v874 = vextract.high.u32 %v872
  %v875 = vmul.u32.u64.compose %v871, %v866
  %v876 = vextract.low.u32 %v875
  %v877 = vextract.high.u32 %v875
  %v878 = vmul.u32 %v871, %v862
  %v879 = vadd.s32 %v874, %v876
  %vm880 = vc.u32 %v874, %v876
  %v881 = vadd.s32 %v877, 1
  %v882 = vsel %vm880, %v881, %v877
  %v883 = vadd.s32 %v878, %v882
  %v884 = vadd.s32 %v883, 536870912
  %v885 = vshrl.u32 %v884, 30
  %v886 = vshll.u32 %v885, 30
  %v887 = vsub.s32 %v883, %v886
  %vm888 = vcmp.lt.s32.totalorder %v887, 0
  %v889 = vsub.s32 0, %v887
  %v890 = vsel %vm888, %v889, %v887
  %v891 = vclz %v890
  %v892 = vsub.s32 %v891, 2
  %vm893 = vcmp.gt.s32.totalorder 0, %v892
  %v894 = vsel %vm893, 0, %v892
  %v895 = vsub.s32 32, %v894
  %v896 = vshll.u32 %v887, %v894
  %v897 = vshrl.u32 %v879, %v895
  %v898 = vor.u32 %v896, %v897
  %v899 = vsub.s32 4294967266, %v894
  %v900 = vadd.s32 %v899, 127
  %v901 = vshll.u32 %v900, 23
  %v902 = vor.u32 4788187, %v901
  %v903 = vand.u32 2147483647, %v902
  %v905 = vcvt.s32.f32 %v898
  %v906 = vmul.f32 %v905, %v903
  %v907 = vxor.u32 %v906, 2147483648
  %v908 = vsel %vm825, %v907, %v906
  %v909 = vsub.s32 4, %v885
  %v910 = vsel %vm825, %v909, %v885
  %v911 = vsel %vm824, %v496, %v908
  %v912 = vsel %vm824, 0, %v910
  %v913 = vcosq.f32.pop %v911
  %v914 = vsinq.f32.pop %v911
  %vm915 = vweird.f32 %v496
  %v916 = vadd.s32 %v912, 3
  %v917 = vand.u32 %v916, 3
  %vm918 = vcmp.lt.s32.totalorder %v917, 2
  %vm919 = vcmp.eq.s32.totalorder %v917, 0
  %v920 = vxor.u32 %v914, 2147483648
  %v921 = vsel %vm919, %v913, %v920
  %vm922 = vcmp.eq.s32.totalorder %v917, 2
  %v923 = vxor.u32 %v913, 2147483648
  %v924 = vsel %vm922, %v923, %v914
  %v925 = vsel %vm918, %v921, %v924
  %v926 = vsel %vm915, nan, %v925
  %v927 = vand.u32 2147483647, %v497
  %vm928 = vcmp.le.f32.partialorder %v927, 0.7853982
  %vm929 = vcmp.lt.s32.totalorder %v497, 0
  %v930 = vand.u32 %v497, 2139095040
  %v931 = vshrl.u32 %v930, 23
  %v932 = vsub.s32 %v931, 127
  %v933 = vand.u32 2147483647, %v497
  %v934 = vand.u32 %v933, 8388607
  %v935 = vor.u32 %v934, 8388608
  %v936 = vsub.s32 0, %v935
  %v937 = vadd.s32 %v932, 1
  %vm938 = vcmp.gt.s32.totalorder %v937, 0
  %v939 = vsel %vm938, %v937, 0
  %v940 = vshrl.u32 %v939, 5
  %v941 = vand.u32 %v939, 31
  %v942 = vsub.s32 32, %v941
  %v943 = vshrl.u32 683565275, %v942
  %v944 = vshll.u32 683565275, %v941
  %v945 = vshrl.u32 2475754826, %v942
  %v946 = vor.u32 %v944, %v945
  %v947 = vshll.u32 2475754826, %v941
  %v948 = vshrl.u32 2131351028, %v942
  %v949 = vor.u32 %v947, %v948
  %v950 = vshll.u32 2131351028, %v941
  %v951 = vshrl.u32 2102212464, %v942
  %v952 = vor.u32 %v950, %v951
  %v953 = vshll.u32 2102212464, %v941
  %v954 = vshrl.u32 920167782, %v942
  %v955 = vor.u32 %v953, %v954
  %v956 = vshll.u32 920167782, %v941
  %v957 = vshrl.u32 1326507024, %v942
  %v958 = vor.u32 %v956, %v957
  %vm959 = vcmp.lt.s32.totalorder %v940, 1
  %vm960 = vcmp.lt.s32.totalorder %v940, 2
  %vm961 = vcmp.lt.s32.totalorder %v940, 3
  %vm962 = vcmp.lt.s32.totalorder %v940, 4
  %v963 = vsel %vm959, %v943, %v946
  %v964 = vsel %vm962, %v952, 2102212464
  %v965 = vsel %vm961, %v949, %v964
  %v966 = vsel %vm960, %v963, %v965
  %v967 = vsel %vm959, %v946, %v949
  %v968 = vsel %vm962, %v955, 920167782
  %v969 = vsel %vm961, %v952, %v968
  %v970 = vsel %vm960, %v967, %v969
  %v971 = vsel %vm959, %v949, %v952
  %v972 = vsel %vm962, %v958, 1326507024
  %v973 = vsel %vm961, %v955, %v972
  %v974 = vsel %vm960, %v971, %v973
  %v975 = vshll.u32 %v935, 8
  %v976 = vmul.u32.u64.compose %v975, %v974
  %v977 = vextract.low.u32 %v976
  %v978 = vextract.high.u32 %v976
  %v979 = vmul.u32.u64.compose %v975, %v970
  %v980 = vextract.low.u32 %v979
  %v981 = vextract.high.u32 %v979
  %v982 = vmul.u32 %v975, %v966
  %v983 = vadd.s32 %v978, %v980
  %vm984 = vc.u32 %v978, %v980
  %v985 = vadd.s32 %v981, 1
  %v986 = vsel %vm984, %v985, %v981
  %v987 = vadd.s32 %v982, %v986
  %v988 = vadd.s32 %v987, 536870912
  %v989 = vshrl.u32 %v988, 30
  %v990 = vshll.u32 %v989, 30
  %v991 = vsub.s32 %v987, %v990
  %vm992 = vcmp.lt.s32.totalorder %v991, 0
  %v993 = vsub.s32 0, %v991
  %v994 = vsel %vm992, %v993, %v991
  %v995 = vclz %v994
  %v996 = vsub.s32 %v995, 2
  %vm997 = vcmp.gt.s32.totalorder 0, %v996
  %v998 = vsel %vm997, 0, %v996
  %v999 = vsub.s32 32, %v998
  %v1000 = vshll.u32 %v991, %v998
  %v1001 = vshrl.u32 %v983, %v999
  %v1002 = vor.u32 %v1000, %v1001
  %v1003 = vsub.s32 4294967266, %v998
  %v1004 = vadd.s32 %v1003, 127
  %v1005 = vshll.u32 %v1004, 23
  %v1006 = vor.u32 4788187, %v1005
  %v1007 = vand.u32 2147483647, %v1006
  %v1009 = vcvt.s32.f32 %v1002
  %v1010 = vmul.f32 %v1009, %v1007
  %v1011 = vxor.u32 %v1010, 2147483648
  %v1012 = vsel %vm929, %v1011, %v1010
  %v1013 = vsub.s32 4, %v989
  %v1014 = vsel %vm929, %v1013, %v989
  %v1015 = vsel %vm928, %v497, %v1012
  %v1016 = vsel %vm928, 0, %v1014
  %v1017 = vcosq.f32.pop %v1015
  %v1018 = vsinq.f32.pop %v1015
  %vm1019 = vweird.f32 %v497
  %v1020 = vadd.s32 %v1016, 3
  %v1021 = vand.u32 %v1020, 3
  %vm1022 = vcmp.lt.s32.totalorder %v1021, 2
  %vm1023 = vcmp.eq.s32.totalorder %v1021, 0
  %v1024 = vxor.u32 %v1018, 2147483648
  %v1025 = vsel %vm1023, %v1017, %v1024
  %vm1026 = vcmp.eq.s32.totalorder %v1021, 2
  %v1027 = vxor.u32 %v1017, 2147483648
  %v1028 = vsel %vm1026, %v1027, %v1018
  %v1029 = vsel %vm1022, %v1025, %v1028
  %v1030 = vsel %vm1019, nan, %v1029
  %v1031 = vand.u32 2147483647, %v498
  %vm1032 = vcmp.le.f32.partialorder %v1031, 0.7853982
  %vm1033 = vcmp.lt.s32.totalorder %v498, 0
  %v1034 = vand.u32 %v498, 2139095040
  %v1035 = vshrl.u32 %v1034, 23
  %v1036 = vsub.s32 %v1035, 127
  %v1037 = vand.u32 2147483647, %v498
  %v1038 = vand.u32 %v1037, 8388607
  %v1039 = vor.u32 %v1038, 8388608
  %v1040 = vsub.s32 0, %v1039
  %v1041 = vadd.s32 %v1036, 1
  %vm1042 = vcmp.gt.s32.totalorder %v1041, 0
  %v1043 = vsel %vm1042, %v1041, 0
  %v1044 = vshrl.u32 %v1043, 5
  %v1045 = vand.u32 %v1043, 31
  %v1046 = vsub.s32 32, %v1045
  %v1047 = vshrl.u32 683565275, %v1046
  %v1048 = vshll.u32 683565275, %v1045
  %v1049 = vshrl.u32 2475754826, %v1046
  %v1050 = vor.u32 %v1048, %v1049
  %v1051 = vshll.u32 2475754826, %v1045
  %v1052 = vshrl.u32 2131351028, %v1046
  %v1053 = vor.u32 %v1051, %v1052
  %v1054 = vshll.u32 2131351028, %v1045
  %v1055 = vshrl.u32 2102212464, %v1046
  %v1056 = vor.u32 %v1054, %v1055
  %v1057 = vshll.u32 2102212464, %v1045
  %v1058 = vshrl.u32 920167782, %v1046
  %v1059 = vor.u32 %v1057, %v1058
  %v1060 = vshll.u32 920167782, %v1045
  %v1061 = vshrl.u32 1326507024, %v1046
  %v1062 = vor.u32 %v1060, %v1061
  %vm1063 = vcmp.lt.s32.totalorder %v1044, 1
  %vm1064 = vcmp.lt.s32.totalorder %v1044, 2
  %vm1065 = vcmp.lt.s32.totalorder %v1044, 3
  %vm1066 = vcmp.lt.s32.totalorder %v1044, 4
  %v1067 = vsel %vm1063, %v1047, %v1050
  %v1068 = vsel %vm1066, %v1056, 2102212464
  %v1069 = vsel %vm1065, %v1053, %v1068
  %v1070 = vsel %vm1064, %v1067, %v1069
  %v1071 = vsel %vm1063, %v1050, %v1053
  %v1072 = vsel %vm1066, %v1059, 920167782
  %v1073 = vsel %vm1065, %v1056, %v1072
  %v1074 = vsel %vm1064, %v1071, %v1073
  %v1075 = vsel %vm1063, %v1053, %v1056
  %v1076 = vsel %vm1066, %v1062, 1326507024
  %v1077 = vsel %vm1065, %v1059, %v1076
  %v1078 = vsel %vm1064, %v1075, %v1077
  %v1079 = vshll.u32 %v1039, 8
  %v1080 = vmul.u32.u64.compose %v1079, %v1078
  %v1081 = vextract.low.u32 %v1080
  %v1082 = vextract.high.u32 %v1080
  %v1083 = vmul.u32.u64.compose %v1079, %v1074
  %v1084 = vextract.low.u32 %v1083
  %v1085 = vextract.high.u32 %v1083
  %v1086 = vmul.u32 %v1079, %v1070
  %v1087 = vadd.s32 %v1082, %v1084
  %vm1088 = vc.u32 %v1082, %v1084
  %v1089 = vadd.s32 %v1085, 1
  %v1090 = vsel %vm1088, %v1089, %v1085
  %v1091 = vadd.s32 %v1086, %v1090
  %v1092 = vadd.s32 %v1091, 536870912
  %v1093 = vshrl.u32 %v1092, 30
  %v1094 = vshll.u32 %v1093, 30
  %v1095 = vsub.s32 %v1091, %v1094
  %vm1096 = vcmp.lt.s32.totalorder %v1095, 0
  %v1097 = vsub.s32 0, %v1095
  %v1098 = vsel %vm1096, %v1097, %v1095
  %v1099 = vclz %v1098
  %v1100 = vsub.s32 %v1099, 2
  %vm1101 = vcmp.gt.s32.totalorder 0, %v1100
  %v1102 = vsel %vm1101, 0, %v1100
  %v1103 = vsub.s32 32, %v1102
  %v1104 = vshll.u32 %v1095, %v1102
  %v1105 = vshrl.u32 %v1087, %v1103
  %v1106 = vor.u32 %v1104, %v1105
  %v1107 = vsub.s32 4294967266, %v1102
  %v1108 = vadd.s32 %v1107, 127
  %v1109 = vshll.u32 %v1108, 23
  %v1110 = vor.u32 4788187, %v1109
  %v1111 = vand.u32 2147483647, %v1110
  %v1113 = vcvt.s32.f32 %v1106
  %v1114 = vmul.f32 %v1113, %v1111
  %v1115 = vxor.u32 %v1114, 2147483648
  %v1116 = vsel %vm1033, %v1115, %v1114
  %v1117 = vsub.s32 4, %v1093
  %v1118 = vsel %vm1033, %v1117, %v1093
  %v1119 = vsel %vm1032, %v498, %v1116
  %v1120 = vsel %vm1032, 0, %v1118
  %v1121 = vcosq.f32.pop %v1119
  %v1122 = vsinq.f32.pop %v1119
  %vm1123 = vweird.f32 %v498
  %v1124 = vadd.s32 %v1120, 3
  %v1125 = vand.u32 %v1124, 3
  %vm1126 = vcmp.lt.s32.totalorder %v1125, 2
  %vm1127 = vcmp.eq.s32.totalorder %v1125, 0
  %v1128 = vxor.u32 %v1122, 2147483648
  %v1129 = vsel %vm1127, %v1121, %v1128
  %vm1130 = vcmp.eq.s32.totalorder %v1125, 2
  %v1131 = vxor.u32 %v1121, 2147483648
  %v1132 = vsel %vm1130, %v1131, %v1122
  %v1133 = vsel %vm1126, %v1129, %v1132
  %v1134 = vsel %vm1123, nan, %v1133
  %1138 = vrot.lane.b32.xlu0 %v926, 111
  %v1139 = vpop.permute.xlu0 %1138
  %1140 = vrot.lane.b32.xlu0 %v1030, 111
  %v1141 = vpop.permute.xlu0 %1140
  %1142 = vrot.lane.b32.xlu0 %v1134, 111
  %v1143 = vpop.permute.xlu0 %1142
  %v1147 = vmul.f32 %v491, %v1139
  %v1148 = vmul.f32 %v493, %v1141
  %v1149 = vmul.f32 %v495, %v1143
  %v1150 = vsub.f32 %v487, 4.8520303
  %v1151 = vsub.f32 %v488, 4.8520303
  %v1152 = vsub.f32 %v489, 4.8520303
  %v1153 = vmul.f32 %v1150, 1.442695
  %v1154 = vpow.pop %v1153
  %v1155 = vmul.f32 %v1151, 1.442695
  %v1156 = vpow.pop %v1155
  %v1157 = vmul.f32 %v1152, 1.442695
  %v1158 = vpow.pop %v1157
  %v1159 = vmul.f32 %v464, %v820
  %v1160 = vmul.f32 %v469, %v821
  %v1161 = vmul.f32 %v474, %v822
  %1165 = vrot.lane.b32.xlu0 %v1147, 17
  %v1166 = vpop.permute.xlu0 %1165
  %1167 = vrot.lane.b32.xlu0 %v1148, 17
  %v1168 = vpop.permute.xlu0 %1167
  %1169 = vrot.lane.b32.xlu0 %v1149, 17
  %v1170 = vpop.permute.xlu0 %1169
  %v1174 = vmul.f32 %v464, %v1166
  %v1175 = vmul.f32 %v469, %v1168
  %v1176 = vmul.f32 %v474, %v1170
  %1180 = vrot.lane.b32.xlu0 %v1174, 111
  %v1181 = vpop.permute.xlu0 %1180
  %1182 = vrot.lane.b32.xlu0 %v1175, 111
  %v1183 = vpop.permute.xlu0 %1182
  %1184 = vrot.lane.b32.xlu0 %v1176, 111
  %v1185 = vpop.permute.xlu0 %1184
  %v1189 = vsub.f32 %v1159, %v1181
  %v1190 = vsub.f32 %v1160, %v1183
  %v1191 = vsub.f32 %v1161, %v1185
  %v1195 = vrot.slane %v1154, 6
  %v1196 = vrot.slane %v1156, 6
  %v1197 = vsel %vm371, %v1195, %v1196
  %v1198 = vrot.slane %v1158, 6
  %v1199 = vsel %vm371, %v1196, %v1198
  %1200 = vrot.lane.b32.xlu0 %v1195, 94
  %v1201 = vpop.permute.xlu0 %1200
  %1202 = vrot.lane.b32.xlu0 %v1197, 94
  %v1203 = vpop.permute.xlu0 %1202
  %1204 = vrot.lane.b32.xlu0 %v1199, 94
  %v1205 = vpop.permute.xlu0 %1204
  %v1209 = vmul.f32 %v474, %v1201
  %v1210 = vmul.f32 %v479, %v1203
  %v1211 = vmul.f32 %v484, %v1205
  %vm1215 = vcmask 1045504
  %v1216 = vrot.slane %v1209, 2
  %v1217 = vrot.slane %v1210, 2
  %v1218 = vsel %vm1215, %v1216, %v1217
  %v1219 = vrot.slane %v1211, 2
  %v1220 = vsel %vm1215, %v1217, %v1219
  %v1224 = vadd.f32 %v1189, %v1218
  %v1225 = vadd.f32 %v1190, %v1220
  %v1226 = vadd.f32 %v1191, %v1219
  %v1227 = vmul.f32 %v464, %v1147
  %v1228 = vmul.f32 %v469, %v1148
  %v1229 = vmul.f32 %v474, %v1149
  %1233 = vrot.lane.b32.xlu0 %v820, 17
  %v1234 = vpop.permute.xlu0 %1233
  %1235 = vrot.lane.b32.xlu0 %v821, 17
  %v1236 = vpop.permute.xlu0 %1235
  %1237 = vrot.lane.b32.xlu0 %v822, 17
  %v1238 = vpop.permute.xlu0 %1237
  %v1242 = vmul.f32 %v464, %v1234
  %v1243 = vmul.f32 %v469, %v1236
  %v1244 = vmul.f32 %v474, %v1238
  %1248 = vrot.lane.b32.xlu0 %v1242, 111
  %v1249 = vpop.permute.xlu0 %1248
  %1250 = vrot.lane.b32.xlu0 %v1243, 111
  %v1251 = vpop.permute.xlu0 %1250
  %1252 = vrot.lane.b32.xlu0 %v1244, 111
  %v1253 = vpop.permute.xlu0 %1252
  %v1257 = vadd.f32 %v1227, %v1249
  %v1258 = vadd.f32 %v1228, %v1251
  %v1259 = vadd.f32 %v1229, %v1253
  %1260 = vrot.lane.b32.xlu0 %v1195, 111
  %v1261 = vpop.permute.xlu0 %1260
  %1262 = vrot.lane.b32.xlu0 %v1197, 111
  %v1263 = vpop.permute.xlu0 %1262
  %1264 = vrot.lane.b32.xlu0 %v1199, 111
  %v1265 = vpop.permute.xlu0 %1264
  %v1269 = vmul.f32 %v474, %v1261
  %v1270 = vmul.f32 %v479, %v1263
  %v1271 = vmul.f32 %v484, %v1265
  %v1275 = vrot.slane %v1269, 2
  %v1276 = vrot.slane %v1270, 2
  %v1277 = vsel %vm1215, %v1275, %v1276
  %v1278 = vrot.slane %v1271, 2
  %v1279 = vsel %vm1215, %v1276, %v1278
  %1280 = vrot.lane.b32.xlu0 %v1277, 111
  %v1281 = vpop.permute.xlu0 %1280
  %1282 = vrot.lane.b32.xlu0 %v1279, 111
  %v1283 = vpop.permute.xlu0 %1282
  %1284 = vrot.lane.b32.xlu0 %v1278, 111
  %v1285 = vpop.permute.xlu0 %1284
  %v1289 = vadd.f32 %v1257, %v1281
  %v1290 = vadd.f32 %v1258, %v1283
  %v1291 = vadd.f32 %v1259, %v1285
  %1295 = vrot.lane.b32.xlu0 %v1289, 17
  %v1296 = vpop.permute.xlu0 %1295
  %1297 = vrot.lane.b32.xlu0 %v1290, 17
  %v1298 = vpop.permute.xlu0 %1297
  %1299 = vrot.lane.b32.xlu0 %v1291, 17
  %v1300 = vpop.permute.xlu0 %1299
  %vm1304 = vcmask 138240
  %v1305 = vsel %vm1304, %v1224, %v1296
  %v1306 = vsel %vm1304, %v1225, %v1298
  %v1307 = vsel %vm1304, %v1226, %v1300
  %v1308 = vld [vmem:[%s4] sm:$0xff]
  %v1309 = vld [vmem:[%s4 + $0x8] sm:$0xff]
  %v1310 = vld [vmem:[%s4 + $0x10] sm:$0xff]
  %v1311 = vld [vmem:[%s4 + $0x18] sm:$0xff]
  %v1312 = vld [vmem:[%s4 + $0x20] sm:$0x3]
  %vm1313 = vcmask 277504
  %v1315 = vsel %vm1313, %v1305, 0
  %v1318 = vsel %vm1313, %v1306, 0
  %v1321 = vsel %vm1313, %v1307, 0
  %v1324 = vsel %vm371, %v1312, 0
  %1326 = vmatprep.subr.mxu0 0.0
  %1327 = vmatpush1.msra.mxu0 0.0
  %1328 = vmatprep.subr.mxu0 0.0
  %1329 = vmatpush1.msra.mxu0 0.0
  %1330 = vmatprep.subr.mxu0 0.0
  %1331 = vmatpush1.msra.mxu0 0.0
  %1332 = vmatprep.subr.mxu0 0.0
  %1333 = vmatpush1.msra.mxu0 0.0
  %1334 = vmatprep.subr.mxu0 0.0
  %1335 = vmatpush1.msra.mxu0 0.0
  %1336 = vmatprep.subr.mxu0 0.0
  %1337 = vmatpush1.msra.mxu0 0.0
  %1338 = vmatprep.subr.mxu0 0.0
  %1339 = vmatpush1.msra.mxu0 0.0
  %1340 = vmatprep.subr.mxu0 0.0
  %1341 = vmatpush1.msra.mxu0 0.0
  %1342 = vmatprep.subr.mxu0 0.0
  %1343 = vmatpush1.msra.mxu0 0.0
  %1344 = vmatprep.subr.mxu0 0.0
  %1345 = vmatpush1.msra.mxu0 0.0
  %1346 = vmatprep.subr.mxu0 0.0
  %1347 = vmatpush1.msra.mxu0 0.0
  %1348 = vmatprep.subr.mxu0 0.0
  %1349 = vmatpush1.msra.mxu0 %v1324
  %1350 = vmatprep.subr.mxu0 0.0
  %1351 = vmatpush1.msra.mxu0 %v1311
  %1352 = vmatprep.subr.mxu0 0.0
  %1353 = vmatpush1.msra.mxu0 %v1310
  %1354 = vmatprep.subr.mxu0 0.0
  %1355 = vmatpush1.msra.mxu0 %v1309
  %1356 = vmatprep.subr.mxu0 0.0
  %1357 = vmatpush1.msra.mxu0 %v1308
  %1358 = vmatprep.subr.mxu0 0.0
  %1359 = vmatpush2.msra.mxu0 0.0
  %1360 = vmatprep.subr.mxu0 0.0
  %1361 = vmatpush2.msra.mxu0 0.0
  %1362 = vmatprep.subr.mxu0 0.0
  %1363 = vmatpush2.msra.mxu0 0.0
  %1364 = vmatprep.subr.mxu0 0.0
  %1365 = vmatpush2.msra.mxu0 0.0
  %1366 = vmatprep.subr.mxu0 0.0
  %1367 = vmatpush2.msra.mxu0 0.0
  %1368 = vmatprep.subr.mxu0 0.0
  %1369 = vmatpush2.msra.mxu0 0.0
  %1370 = vmatprep.subr.mxu0 0.0
  %1371 = vmatpush2.msra.mxu0 0.0
  %1372 = vmatprep.subr.mxu0 0.0
  %1373 = vmatpush2.msra.mxu0 0.0
  %1374 = vmatprep.subr.mxu0 0.0
  %1375 = vmatpush2.msra.mxu0 0.0
  %1376 = vmatprep.subr.mxu0 0.0
  %1377 = vmatpush2.msra.mxu0 0.0
  %1378 = vmatprep.subr.mxu0 0.0
  %1379 = vmatpush2.msra.mxu0 0.0
  %1380 = vmatprep.subr.mxu0 0.0
  %1381 = vmatpush2.msra.mxu0 0.0
  %1382 = vmatprep.subr.mxu0 0.0
  %1383 = vmatpush2.msra.mxu0 0.0
  %1384 = vmatprep.subr.mxu0 0.0
  %1385 = vmatpush2.msra.mxu0 0.0
  %1386 = vmatprep.subr.mxu0 0.0
  %1387 = vmatpush2.msra.mxu0 0.0
  %1388 = vmatprep.subr.mxu0 0.0
  %1389 = vmatpush2.msra.mxu0 0.0
  %1390 = vmatprep.mubr.f32.mxu0 0.0
  %1391 = vmatmul.mubr.f32.gmra.mxu0 %v1315
  %v1392 = vpop.f32.mrf.mxu0
  %v1393 = vadd.f32 0.0, %v1392
  %v1394 = vpop.f32.mrf.mxu0
  %1395 = vmatprep.mubr.f32.mxu0 0.0
  %1396 = vmatmul.mubr.f32.gmra.mxu0 %v1318
  %v1397 = vpop.f32.mrf.mxu0
  %v1398 = vadd.f32 0.0, %v1397
  %v1399 = vpop.f32.mrf.mxu0
  %1400 = vmatprep.mubr.f32.mxu0 0.0
  %1401 = vmatmul.mubr.f32.gmra.mxu0 %v1321
  %v1402 = vpop.f32.mrf.mxu0
  %v1403 = vadd.f32 0.0, %v1402
  %v1404 = vpop.f32.mrf.mxu0
  %1405 = vdwg.mxu0
  %1406 = vst.msk [vmem:[%s5] sm:$0xff] %vm383, %v1393
  %1407 = vst.msk [vmem:[%s5 + $0x8] sm:$0xff] %vm383, %v1398
  %vm1408 = vcmask 254976
  %1409 = vst.msk [vmem:[%s5 + $0x10] sm:$0x3] %vm1408, %v1403
  // Predicated region
  $region22: #{comb_sub_fast_forward.11} parent=0 // pred_check
    _
  $region23: #{comb_sub_fast_forward.11} parent=0 // pred_check_branch
    %1411 = sbr.rel (0) target = $region25
  $region24: #{comb_sub_fast_forward.11} parent=0 // pred_region
    _
  $region25: #{comb_sub_fast_forward.11} parent=0 // pred_fallthru
    _
  // Predicated region
  $region26: #{comb_sub_fast_forward.11} parent=0 // pred_check
    _
  $region27: #{comb_sub_fast_forward.11} parent=0 // pred_check_branch
    %1413 = sbr.rel (0) target = $region29
  $region28: #{comb_sub_fast_forward.11} parent=0 // pred_region
    _
  $region29: #{comb_sub_fast_forward.11} parent=0 // pred_fallthru
    _

</llo_original>
